<compile_context>
chip_gen: v7x
topology: tpu7x:2x2x1
jax: 0.10.0
libtpu: 0.0.40
codegen_flags: <defaults>
</compile_context>

<pallas_src>
import functools

import jax
import jax.numpy as jnp
from jax.experimental import pallas as pl
from jax.experimental.pallas import tpu as pltpu

# ---- small synthetic CLIP-ViT config (structure matches the CLIP tower) ----
IMAGE_SIZE = 16
PATCH_SIZE = 8
HIDDEN = 64
HEADS = 4
HEAD_DIM = HIDDEN // HEADS
INTERMEDIATE = 4 * HIDDEN
LAYERS = 2
OUT_DIM = 512                      # matches RGBEncoder(out_dim=512)
EPS = 1e-5
NUM_PATCHES = (IMAGE_SIZE // PATCH_SIZE) ** 2   # 4
SEQ = NUM_PATCHES + 1                           # 5 = CLS + patches
SEQ_PAD = 8                                     # pad to a full sublane tile
PATCH_DIM = 3 * PATCH_SIZE * PATCH_SIZE         # 192
PATCH_DIM_PAD = 256                             # pad to a multiple of 128
SCALE = HEAD_DIM ** -0.5                        # folded into Q weight at init
MAX_B_TILE = 8                                  # images per grid step (cap)


# ------------------------------ fused kernel -------------------------------

def _layernorm(x, g, b):
    mu = jnp.mean(x, axis=-1, keepdims=True)
    var = jnp.mean(jnp.square(x - mu), axis=-1, keepdims=True)
    return (x - mu) * jax.lax.rsqrt(var + EPS) * g + b


def _encoder_kernel(b_tile,
                    tok_ref, patch_w_ref, pos_ref, pre_g_ref, pre_b_ref,
                    ln1_g_ref, ln1_b_ref, qkv_w_ref, qkv_b_ref,
                    o_w_ref, o_b_ref, ln2_g_ref, ln2_b_ref,
                    fc1_w_ref, fc1_b_ref, fc2_w_ref, fc2_b_ref,
                    post_g_ref, post_b_ref, proj_w_ref, proj_b_ref,
                    out_ref):
    """One grid step == b_tile images: full CLIP vision tower + projection."""
    bf16 = jnp.bfloat16
    m = b_tile * SEQ_PAD

    # Key-padding bias: 0 for valid key positions, -1e9 for the padded rows.
    key_idx = jax.lax.broadcasted_iota(jnp.int32, (1, 1, SEQ_PAD), 2)
    key_bias = jnp.where(key_idx < SEQ, 0.0, -1e9).astype(jnp.float32)

    # Patch embedding over the whole image tile at once (M = b_tile*SEQ_PAD).
    # CLS / padded rows of `tok` are zeros (0 @ W == 0); the class embedding
    # enters through pos row 0, so no in-kernel concat is needed.
    tok = tok_ref[...].reshape(m, PATCH_DIM_PAD)
    h = jnp.dot(tok.astype(bf16), patch_w_ref[...],
                preferred_element_type=jnp.float32)
    h = (h.reshape(b_tile, SEQ_PAD, HIDDEN) + pos_ref[...][None]).reshape(m, HIDDEN)
    h = _layernorm(h, pre_g_ref[...], pre_b_ref[...])        # CLIP pre_layrnorm

    for l in range(LAYERS):
        # ---------------- self-attention block ----------------
        hn = _layernorm(h, ln1_g_ref[l], ln1_b_ref[l])
        qkv = jnp.dot(hn.astype(bf16), qkv_w_ref[l],
                      preferred_element_type=jnp.float32) + qkv_b_ref[l]
        qkv3 = qkv.reshape(b_tile, SEQ_PAD, 3 * HIDDEN)

        # TODO(synk): at real CLIP-base scale, replace this short static head
        # loop with a head-major relayout + head-batched einsums.
        ctx_heads = []
        for hd in range(HEADS):
            lo = hd * HEAD_DIM
            q = qkv3[:, :, lo:lo + HEAD_DIM]                            # scale pre-folded
            k = qkv3[:, :, HIDDEN + lo:HIDDEN + lo + HEAD_DIM]
            v = qkv3[:, :, 2 * HIDDEN + lo:2 * HIDDEN + lo + HEAD_DIM]
            s = jnp.einsum('bqd,bkd->bqk', q.astype(bf16), k.astype(bf16),
                           preferred_element_type=jnp.float32)          # (B, S, S)
            s = s + key_bias
            s = s - jnp.max(s, axis=-1, keepdims=True)
            p = jnp.exp(s)
            p = p * pl.reciprocal(jnp.sum(p, axis=-1, keepdims=True),
                                  approx=True)
            ctx_heads.append(
                jnp.einsum('bqk,bkd->bqd', p.astype(bf16), v.astype(bf16),
                           preferred_element_type=jnp.float32))         # (B, S, dh)

        # head-merge -> single full-K output projection
        ctx = jnp.concatenate(ctx_heads, axis=-1).reshape(m, HIDDEN)
        attn = jnp.dot(ctx.astype(bf16), o_w_ref[l],
                       preferred_element_type=jnp.float32)
        h = h + attn + o_b_ref[l]                            # residual

        # ---------------------- MLP block ----------------------
        hn = _layernorm(h, ln2_g_ref[l], ln2_b_ref[l])
        mlp = jnp.dot(hn.astype(bf16), fc1_w_ref[l],
                      preferred_element_type=jnp.float32) + fc1_b_ref[l]
        mlp = mlp / (1.0 + jnp.exp(-1.702 * mlp))            # quick_gelu
        mlp = jnp.dot(mlp.astype(bf16), fc2_w_ref[l],
                      preferred_element_type=jnp.float32)
        h = h + mlp + fc2_b_ref[l]                           # residual

    # pooler (CLS token of each image) + post-LN + projection (lane-dense 512)
    pooled = h.reshape(b_tile, SEQ_PAD, HIDDEN)[:, 0:1, :].reshape(b_tile, HIDDEN)
    pooled = _layernorm(pooled, post_g_ref[...], post_b_ref[...])
    out = jnp.dot(pooled.astype(bf16), proj_w_ref[...],
                  preferred_element_type=jnp.float32) + proj_b_ref[...]
    out_ref[...] = out.astype(jnp.float32)                   # (b_tile, OUT_DIM)


# --------------------------- parameter construction ------------------------

def init_params(key):
    keys = jax.random.split(key, 8)

    def w(k, shape):
        return 0.02 * jax.random.normal(k, shape, dtype=jnp.float32)

    patch_w = jnp.zeros((PATCH_DIM_PAD, HIDDEN), jnp.float32)
    patch_w = patch_w.at[:PATCH_DIM].set(w(keys[0], (PATCH_DIM, HIDDEN)))

    pos_emb = jnp.zeros((SEQ_PAD, HIDDEN), jnp.float32)
    pos_emb = pos_emb.at[:SEQ].set(w(keys[2], (SEQ, HIDDEN)))

    # fused Q|K|V weight with the 1/sqrt(head_dim) scale folded into Q
    qkv_w = w(keys[4], (LAYERS, HIDDEN, 3 * HIDDEN))
    qkv_w = qkv_w.at[:, :, :HIDDEN].multiply(SCALE)
    qkv_b = jnp.zeros((LAYERS, 1, 3 * HIDDEN), jnp.float32)
    qkv_b = qkv_b.at[:, :, :HIDDEN].multiply(SCALE)          # keep Q bias consistent

    return {
        # patch conv (bias-free) as a padded matmul weight, bf16 for the MXU
        "patch_w": patch_w.astype(jnp.bfloat16),
        "class_emb": w(keys[1], (HIDDEN,)),
        "pos_emb": pos_emb,
        "pre_ln_g": jnp.ones((1, HIDDEN), jnp.float32),
        "pre_ln_b": jnp.zeros((1, HIDDEN), jnp.float32),
        "post_ln_g": jnp.ones((1, HIDDEN), jnp.float32),
        "post_ln_b": jnp.zeros((1, HIDDEN), jnp.float32),
        "proj_w": w(keys[3], (HIDDEN, OUT_DIM)).astype(jnp.bfloat16),
        "proj_b": jnp.zeros((1, OUT_DIM), jnp.float32),
        # per-layer params stacked along a leading LAYERS axis
        "ln1_g": jnp.ones((LAYERS, 1, HIDDEN), jnp.float32),
        "ln1_b": jnp.zeros((LAYERS, 1, HIDDEN), jnp.float32),
        "ln2_g": jnp.ones((LAYERS, 1, HIDDEN), jnp.float32),
        "ln2_b": jnp.zeros((LAYERS, 1, HIDDEN), jnp.float32),
        "qkv_w": qkv_w.astype(jnp.bfloat16),
        "qkv_b": qkv_b,
        "o_w": w(keys[5], (LAYERS, HIDDEN, HIDDEN)).astype(jnp.bfloat16),
        "o_b": jnp.zeros((LAYERS, 1, HIDDEN), jnp.float32),
        "fc1_w": w(keys[6], (LAYERS, HIDDEN, INTERMEDIATE)).astype(jnp.bfloat16),
        "fc1_b": jnp.zeros((LAYERS, 1, INTERMEDIATE), jnp.float32),
        "fc2_w": w(keys[7], (LAYERS, INTERMEDIATE, HIDDEN)).astype(jnp.bfloat16),
        "fc2_b": jnp.zeros((LAYERS, 1, HIDDEN), jnp.float32),
    }


# -------------------------------- forward ----------------------------------

def rgb_encoder_forward(params, x):
    """x: (B, 3, H, W) float32 (NCHW, as in PyTorch). Returns (B, OUT_DIM)."""
    B = x.shape[0]
    g = IMAGE_SIZE // PATCH_SIZE
    b_tile = min(MAX_B_TILE, B)
    b_pad = ((B + b_tile - 1) // b_tile) * b_tile

    # Patch extraction + zero-padding of CLS row / seq rows / patch lanes
    # (pure data rearrangement, XLA glue outside the kernel).
    patches = x.reshape(B, 3, g, PATCH_SIZE, g, PATCH_SIZE)
    patches = patches.transpose(0, 2, 4, 1, 3, 5).reshape(B, NUM_PATCHES, PATCH_DIM)
    tok = jnp.zeros((b_pad, SEQ_PAD, PATCH_DIM_PAD), jnp.float32)
    tok = tok.at[:B, 1:1 + NUM_PATCHES, :PATCH_DIM].set(patches)

    # class embedding folded into positional-embedding row 0 (one tiny add
    # per call; the zero CLS patch row then reproduces CLIP's class token).
    pos_plus = params["pos_emb"].at[0].add(params["class_emb"])

    inputs = [
        tok,
        params["patch_w"], pos_plus,
        params["pre_ln_g"], params["pre_ln_b"],
        params["ln1_g"], params["ln1_b"],
        params["qkv_w"], params["qkv_b"],
        params["o_w"], params["o_b"],
        params["ln2_g"], params["ln2_b"],
        params["fc1_w"], params["fc1_b"],
        params["fc2_w"], params["fc2_b"],
        params["post_ln_g"], params["post_ln_b"],
        params["proj_w"], params["proj_b"],
    ]

    def const_spec(a):
        # Full-array weight blocks; same block every grid step.
        return pl.BlockSpec(a.shape, lambda b, _n=a.ndim: (0,) * _n)

    in_specs = [pl.BlockSpec((b_tile, SEQ_PAD, PATCH_DIM_PAD), lambda b: (b, 0, 0))]
    in_specs += [const_spec(a) for a in inputs[1:]]

    out = pl.pallas_call(
        functools.partial(_encoder_kernel, b_tile),
        out_shape=jax.ShapeDtypeStruct((b_pad, OUT_DIM), jnp.float32),
        grid=(b_pad // b_tile,),
        in_specs=in_specs,
        out_specs=pl.BlockSpec((b_tile, OUT_DIM), lambda b: (b, 0)),
        compiler_params=pltpu.CompilerParams(
            dimension_semantics=("parallel",)),   # 2 TCs on v7x; no-op on v5e/v6e
    )(*inputs)
    return out[:B]


if __name__ == "__main__":
    key = jax.random.PRNGKey(0)
    pkey, xkey = jax.random.split(key)
    params = init_params(pkey)
    x = jax.random.normal(xkey, (2, 3, IMAGE_SIZE, IMAGE_SIZE), dtype=jnp.float32)

    out = jax.jit(rgb_encoder_forward)(params, x)
    out = jax.block_until_ready(out)
    assert out.shape == (2, OUT_DIM), out.shape
    assert out.dtype == jnp.float32
    assert bool(jnp.all(jnp.isfinite(out)))
    print("KERNEL_OK")
</pallas_src>

<mosaic_0001>
module attributes {stable_mosaic.version = 11 : i64} {
  func.func @_encoder_kernel(%arg0: i32, %arg1: memref<2x8x256xf32, #tpu.memory_space<vmem>>, %arg2: memref<256x64xbf16, #tpu.memory_space<vmem>>, %arg3: memref<8x64xf32, #tpu.memory_space<vmem>>, %arg4: memref<1x64xf32, #tpu.memory_space<vmem>>, %arg5: memref<1x64xf32, #tpu.memory_space<vmem>>, %arg6: memref<2x1x64xf32, #tpu.memory_space<vmem>>, %arg7: memref<2x1x64xf32, #tpu.memory_space<vmem>>, %arg8: memref<2x64x192xbf16, #tpu.memory_space<vmem>>, %arg9: memref<2x1x192xf32, #tpu.memory_space<vmem>>, %arg10: memref<2x64x64xbf16, #tpu.memory_space<vmem>>, %arg11: memref<2x1x64xf32, #tpu.memory_space<vmem>>, %arg12: memref<2x1x64xf32, #tpu.memory_space<vmem>>, %arg13: memref<2x1x64xf32, #tpu.memory_space<vmem>>, %arg14: memref<2x64x256xbf16, #tpu.memory_space<vmem>>, %arg15: memref<2x1x256xf32, #tpu.memory_space<vmem>>, %arg16: memref<2x256x64xbf16, #tpu.memory_space<vmem>>, %arg17: memref<2x1x64xf32, #tpu.memory_space<vmem>>, %arg18: memref<1x64xf32, #tpu.memory_space<vmem>>, %arg19: memref<1x64xf32, #tpu.memory_space<vmem>>, %arg20: memref<64x512xbf16, #tpu.memory_space<vmem>>, %arg21: memref<1x512xf32, #tpu.memory_space<vmem>>, %arg22: memref<2x512xf32, #tpu.memory_space<vmem>>) attributes {dimension_semantics = [#tpu.dimension_semantics<parallel>], iteration_bounds = array<i64: 1>, scalar_prefetch = 0 : i64, scratch_operands = 0 : i64, tpu.core_type = #tpu.core_type<tc>, window_params = [{transform_indices = @transform_0, window_bounds = array<i64: 2, 8, 256>}, {pipeline_mode = #tpu.pipeline_mode<synchronous>, transform_indices = @transform_1, window_bounds = array<i64: 256, 64>}, {pipeline_mode = #tpu.pipeline_mode<synchronous>, transform_indices = @transform_2, window_bounds = array<i64: 8, 64>}, {pipeline_mode = #tpu.pipeline_mode<synchronous>, transform_indices = @transform_3, window_bounds = array<i64: 1, 64>}, {pipeline_mode = #tpu.pipeline_mode<synchronous>, transform_indices = @transform_4, window_bounds = array<i64: 1, 64>}, {pipeline_mode = #tpu.pipeline_mode<synchronous>, transform_indices = @transform_5, window_bounds = array<i64: 2, 1, 64>}, {pipeline_mode = #tpu.pipeline_mode<synchronous>, transform_indices = @transform_6, window_bounds = array<i64: 2, 1, 64>}, {pipeline_mode = #tpu.pipeline_mode<synchronous>, transform_indices = @transform_7, window_bounds = array<i64: 2, 64, 192>}, {pipeline_mode = #tpu.pipeline_mode<synchronous>, transform_indices = @transform_8, window_bounds = array<i64: 2, 1, 192>}, {pipeline_mode = #tpu.pipeline_mode<synchronous>, transform_indices = @transform_9, window_bounds = array<i64: 2, 64, 64>}, {pipeline_mode = #tpu.pipeline_mode<synchronous>, transform_indices = @transform_10, window_bounds = array<i64: 2, 1, 64>}, {pipeline_mode = #tpu.pipeline_mode<synchronous>, transform_indices = @transform_11, window_bounds = array<i64: 2, 1, 64>}, {pipeline_mode = #tpu.pipeline_mode<synchronous>, transform_indices = @transform_12, window_bounds = array<i64: 2, 1, 64>}, {pipeline_mode = #tpu.pipeline_mode<synchronous>, transform_indices = @transform_13, window_bounds = array<i64: 2, 64, 256>}, {pipeline_mode = #tpu.pipeline_mode<synchronous>, transform_indices = @transform_14, window_bounds = array<i64: 2, 1, 256>}, {pipeline_mode = #tpu.pipeline_mode<synchronous>, transform_indices = @transform_15, window_bounds = array<i64: 2, 256, 64>}, {pipeline_mode = #tpu.pipeline_mode<synchronous>, transform_indices = @transform_16, window_bounds = array<i64: 2, 1, 64>}, {pipeline_mode = #tpu.pipeline_mode<synchronous>, transform_indices = @transform_17, window_bounds = array<i64: 1, 64>}, {pipeline_mode = #tpu.pipeline_mode<synchronous>, transform_indices = @transform_18, window_bounds = array<i64: 1, 64>}, {pipeline_mode = #tpu.pipeline_mode<synchronous>, transform_indices = @transform_19, window_bounds = array<i64: 64, 512>}, {pipeline_mode = #tpu.pipeline_mode<synchronous>, transform_indices = @transform_20, window_bounds = array<i64: 1, 512>}, {transform_indices = @transform_21, window_bounds = array<i64: 2, 512>}]} {
    %0 = tpu.iota {dimensions = array<i32: 2>} : vector<1x1x8xi32>
    %c5_i32 = arith.constant 5 : i32
    %1 = vector.broadcast %c5_i32 : i32 to vector<1x1x8xi32>
    %2 = arith.cmpi slt, %0, %1 : vector<1x1x8xi32>
    %cst = arith.constant 0.000000e+00 : f32
    %cst_0 = arith.constant -1.000000e+09 : f32
    %3 = vector.broadcast %cst : f32 to vector<1x1x8xf32>
    %4 = vector.broadcast %cst_0 : f32 to vector<1x1x8xf32>
    %5 = arith.select %2, %3, %4 : vector<1x1x8xi1>, vector<1x1x8xf32>
    %c0 = arith.constant 0 : index
    %c0_1 = arith.constant 0 : index
    %c0_2 = arith.constant 0 : index
    %6 = vector.load %arg1[%c0, %c0_1, %c0_2] : memref<2x8x256xf32, #tpu.memory_space<vmem>>, vector<2x8x256xf32>
    %7 = vector.shape_cast %6 : vector<2x8x256xf32> to vector<16x256xf32>
    %8 = arith.truncf %7 : vector<16x256xf32> to vector<16x256xbf16>
    %c0_3 = arith.constant 0 : index
    %c0_4 = arith.constant 0 : index
    %9 = vector.load %arg2[%c0_3, %c0_4] : memref<256x64xbf16, #tpu.memory_space<vmem>>, vector<256x64xbf16>
    %cst_5 = arith.constant dense<0.000000e+00> : vector<16x64xf32>
    %10 = tpu.matmul %8, %9, %cst_5 {dimension_numbers = #tpu.dot_dimension_numbers<[1], [0], [0], [1], [0, 0, 1, 1], [], []>} : vector<16x256xbf16>, vector<256x64xbf16>, vector<16x64xf32> -> vector<16x64xf32>
    %11 = vector.shape_cast %10 : vector<16x64xf32> to vector<2x8x64xf32>
    %c0_6 = arith.constant 0 : index
    %c0_7 = arith.constant 0 : index
    %12 = vector.load %arg3[%c0_6, %c0_7] : memref<8x64xf32, #tpu.memory_space<vmem>>, vector<8x64xf32>
    %13 = vector.shape_cast %12 : vector<8x64xf32> to vector<1x8x64xf32>
    %14 = vector.broadcast %13 : vector<1x8x64xf32> to vector<2x8x64xf32>
    %15 = arith.addf %11, %14 : vector<2x8x64xf32>
    %16 = vector.shape_cast %15 : vector<2x8x64xf32> to vector<16x64xf32>
    %c0_8 = arith.constant 0 : index
    %c0_9 = arith.constant 0 : index
    %17 = vector.load %arg4[%c0_8, %c0_9] : memref<1x64xf32, #tpu.memory_space<vmem>>, vector<1x64xf32>
    %c0_10 = arith.constant 0 : index
    %c0_11 = arith.constant 0 : index
    %18 = vector.load %arg5[%c0_10, %c0_11] : memref<1x64xf32, #tpu.memory_space<vmem>>, vector<1x64xf32>
    %cst_12 = arith.constant dense<0.000000e+00> : vector<16xf32>
    %19 = vector.multi_reduction <add>, %16, %cst_12 [1] : vector<16x64xf32> to vector<16xf32>
    %20 = vector.shape_cast %19 : vector<16xf32> to vector<16x1xf32>
    %cst_13 = arith.constant 6.400000e+01 : f32
    %21 = vector.broadcast %cst_13 : f32 to vector<16x1xf32>
    %22 = arith.divf %20, %21 : vector<16x1xf32>
    %23 = vector.broadcast %22 : vector<16x1xf32> to vector<16x64xf32>
    %24 = arith.subf %16, %23 : vector<16x64xf32>
    %25 = arith.mulf %24, %24 : vector<16x64xf32>
    %cst_14 = arith.constant dense<0.000000e+00> : vector<16xf32>
    %26 = vector.multi_reduction <add>, %25, %cst_14 [1] : vector<16x64xf32> to vector<16xf32>
    %27 = vector.shape_cast %26 : vector<16xf32> to vector<16x1xf32>
    %cst_15 = arith.constant 6.400000e+01 : f32
    %28 = vector.broadcast %cst_15 : f32 to vector<16x1xf32>
    %29 = arith.divf %27, %28 : vector<16x1xf32>
    %30 = vector.broadcast %22 : vector<16x1xf32> to vector<16x64xf32>
    %31 = arith.subf %16, %30 : vector<16x64xf32>
    %cst_16 = arith.constant 9.99999974E-6 : f32
    %32 = vector.broadcast %cst_16 : f32 to vector<16x1xf32>
    %33 = arith.addf %29, %32 : vector<16x1xf32>
    %34 = math.rsqrt %33 : vector<16x1xf32>
    %35 = vector.broadcast %34 : vector<16x1xf32> to vector<16x64xf32>
    %36 = arith.mulf %31, %35 : vector<16x64xf32>
    %37 = vector.broadcast %17 : vector<1x64xf32> to vector<16x64xf32>
    %38 = arith.mulf %36, %37 : vector<16x64xf32>
    %39 = vector.broadcast %18 : vector<1x64xf32> to vector<16x64xf32>
    %40 = arith.addf %38, %39 : vector<16x64xf32>
    %c0_17 = arith.constant 0 : index
    %c0_18 = arith.constant 0 : index
    %c0_19 = arith.constant 0 : index
    %41 = vector.load %arg6[%c0_17, %c0_18, %c0_19] : memref<2x1x64xf32, #tpu.memory_space<vmem>>, vector<1x1x64xf32>
    %42 = vector.shape_cast %41 : vector<1x1x64xf32> to vector<1x64xf32>
    %c0_20 = arith.constant 0 : index
    %c0_21 = arith.constant 0 : index
    %c0_22 = arith.constant 0 : index
    %43 = vector.load %arg7[%c0_20, %c0_21, %c0_22] : memref<2x1x64xf32, #tpu.memory_space<vmem>>, vector<1x1x64xf32>
    %44 = vector.shape_cast %43 : vector<1x1x64xf32> to vector<1x64xf32>
    %cst_23 = arith.constant dense<0.000000e+00> : vector<16xf32>
    %45 = vector.multi_reduction <add>, %40, %cst_23 [1] : vector<16x64xf32> to vector<16xf32>
    %46 = vector.shape_cast %45 : vector<16xf32> to vector<16x1xf32>
    %cst_24 = arith.constant 6.400000e+01 : f32
    %47 = vector.broadcast %cst_24 : f32 to vector<16x1xf32>
    %48 = arith.divf %46, %47 : vector<16x1xf32>
    %49 = vector.broadcast %48 : vector<16x1xf32> to vector<16x64xf32>
    %50 = arith.subf %40, %49 : vector<16x64xf32>
    %51 = arith.mulf %50, %50 : vector<16x64xf32>
    %cst_25 = arith.constant dense<0.000000e+00> : vector<16xf32>
    %52 = vector.multi_reduction <add>, %51, %cst_25 [1] : vector<16x64xf32> to vector<16xf32>
    %53 = vector.shape_cast %52 : vector<16xf32> to vector<16x1xf32>
    %cst_26 = arith.constant 6.400000e+01 : f32
    %54 = vector.broadcast %cst_26 : f32 to vector<16x1xf32>
    %55 = arith.divf %53, %54 : vector<16x1xf32>
    %56 = vector.broadcast %48 : vector<16x1xf32> to vector<16x64xf32>
    %57 = arith.subf %40, %56 : vector<16x64xf32>
    %cst_27 = arith.constant 9.99999974E-6 : f32
    %58 = vector.broadcast %cst_27 : f32 to vector<16x1xf32>
    %59 = arith.addf %55, %58 : vector<16x1xf32>
    %60 = math.rsqrt %59 : vector<16x1xf32>
    %61 = vector.broadcast %60 : vector<16x1xf32> to vector<16x64xf32>
    %62 = arith.mulf %57, %61 : vector<16x64xf32>
    %63 = vector.broadcast %42 : vector<1x64xf32> to vector<16x64xf32>
    %64 = arith.mulf %62, %63 : vector<16x64xf32>
    %65 = vector.broadcast %44 : vector<1x64xf32> to vector<16x64xf32>
    %66 = arith.addf %64, %65 : vector<16x64xf32>
    %67 = arith.truncf %66 : vector<16x64xf32> to vector<16x64xbf16>
    %c0_28 = arith.constant 0 : index
    %c0_29 = arith.constant 0 : index
    %c0_30 = arith.constant 0 : index
    %68 = vector.load %arg8[%c0_28, %c0_29, %c0_30] : memref<2x64x192xbf16, #tpu.memory_space<vmem>>, vector<1x64x192xbf16>
    %69 = vector.shape_cast %68 : vector<1x64x192xbf16> to vector<64x192xbf16>
    %cst_31 = arith.constant dense<0.000000e+00> : vector<16x192xf32>
    %70 = tpu.matmul %67, %69, %cst_31 {dimension_numbers = #tpu.dot_dimension_numbers<[1], [0], [0], [1], [0, 0, 1, 1], [], []>} : vector<16x64xbf16>, vector<64x192xbf16>, vector<16x192xf32> -> vector<16x192xf32>
    %c0_32 = arith.constant 0 : index
    %c0_33 = arith.constant 0 : index
    %c0_34 = arith.constant 0 : index
    %71 = vector.load %arg9[%c0_32, %c0_33, %c0_34] : memref<2x1x192xf32, #tpu.memory_space<vmem>>, vector<1x1x192xf32>
    %72 = vector.shape_cast %71 : vector<1x1x192xf32> to vector<1x192xf32>
    %73 = vector.broadcast %72 : vector<1x192xf32> to vector<16x192xf32>
    %74 = arith.addf %70, %73 : vector<16x192xf32>
    %75 = vector.shape_cast %74 : vector<16x192xf32> to vector<2x8x192xf32>
    %76 = vector.extract_strided_slice %75 {offsets = [0, 0, 0], sizes = [2, 8, 16], strides = [1, 1, 1]} : vector<2x8x192xf32> to vector<2x8x16xf32>
    %77 = vector.extract_strided_slice %75 {offsets = [0, 0, 64], sizes = [2, 8, 16], strides = [1, 1, 1]} : vector<2x8x192xf32> to vector<2x8x16xf32>
    %78 = vector.extract_strided_slice %75 {offsets = [0, 0, 128], sizes = [2, 8, 16], strides = [1, 1, 1]} : vector<2x8x192xf32> to vector<2x8x16xf32>
    %79 = arith.truncf %76 : vector<2x8x16xf32> to vector<2x8x16xbf16>
    %80 = arith.truncf %77 : vector<2x8x16xf32> to vector<2x8x16xbf16>
    "tpu.trace_start"() <{level = 10 : i32, message = "bqd,bkd->bqk"}> : () -> ()
    %cst_35 = arith.constant dense<0.000000e+00> : vector<2x8x8xf32>
    %81 = tpu.matmul %79, %80, %cst_35 {dimension_numbers = #tpu.dot_dimension_numbers<[2], [2], [1], [1], [0, 0, 0, 1, 1, 1], [0], [0]>} : vector<2x8x16xbf16>, vector<2x8x16xbf16>, vector<2x8x8xf32> -> vector<2x8x8xf32>
    "tpu.trace_stop"() : () -> ()
    %82 = vector.broadcast %5 : vector<1x1x8xf32> to vector<2x8x8xf32>
    %83 = arith.addf %81, %82 : vector<2x8x8xf32>
    %cst_36 = arith.constant dense<0xFF800000> : vector<2x8xf32>
    %84 = vector.multi_reduction <maximumf>, %83, %cst_36 [2] : vector<2x8x8xf32> to vector<2x8xf32>
    %85 = vector.shape_cast %84 : vector<2x8xf32> to vector<2x8x1xf32>
    %86 = vector.broadcast %85 : vector<2x8x1xf32> to vector<2x8x8xf32>
    %87 = arith.subf %83, %86 : vector<2x8x8xf32>
    %88 = math.exp %87 : vector<2x8x8xf32>
    %cst_37 = arith.constant dense<0.000000e+00> : vector<2x8xf32>
    %89 = vector.multi_reduction <add>, %88, %cst_37 [2] : vector<2x8x8xf32> to vector<2x8xf32>
    %90 = vector.shape_cast %89 : vector<2x8xf32> to vector<2x8x1xf32>
    %91 = tpu.reciprocal %90 {approx = true} : vector<2x8x1xf32> -> vector<2x8x1xf32>
    %92 = vector.broadcast %91 : vector<2x8x1xf32> to vector<2x8x8xf32>
    %93 = arith.mulf %88, %92 : vector<2x8x8xf32>
    %94 = arith.truncf %93 : vector<2x8x8xf32> to vector<2x8x8xbf16>
    %95 = arith.truncf %78 : vector<2x8x16xf32> to vector<2x8x16xbf16>
    "tpu.trace_start"() <{level = 10 : i32, message = "bqk,bkd->bqd"}> : () -> ()
    %cst_38 = arith.constant dense<0.000000e+00> : vector<2x8x16xf32>
    %96 = tpu.matmul %94, %95, %cst_38 {dimension_numbers = #tpu.dot_dimension_numbers<[2], [1], [1], [2], [0, 0, 0, 1, 1, 2], [0], [0]>} : vector<2x8x8xbf16>, vector<2x8x16xbf16>, vector<2x8x16xf32> -> vector<2x8x16xf32>
    "tpu.trace_stop"() : () -> ()
    %97 = vector.extract_strided_slice %75 {offsets = [0, 0, 16], sizes = [2, 8, 16], strides = [1, 1, 1]} : vector<2x8x192xf32> to vector<2x8x16xf32>
    %98 = vector.extract_strided_slice %75 {offsets = [0, 0, 80], sizes = [2, 8, 16], strides = [1, 1, 1]} : vector<2x8x192xf32> to vector<2x8x16xf32>
    %99 = vector.extract_strided_slice %75 {offsets = [0, 0, 144], sizes = [2, 8, 16], strides = [1, 1, 1]} : vector<2x8x192xf32> to vector<2x8x16xf32>
    %100 = arith.truncf %97 : vector<2x8x16xf32> to vector<2x8x16xbf16>
    %101 = arith.truncf %98 : vector<2x8x16xf32> to vector<2x8x16xbf16>
    "tpu.trace_start"() <{level = 10 : i32, message = "bqd,bkd->bqk"}> : () -> ()
    %cst_39 = arith.constant dense<0.000000e+00> : vector<2x8x8xf32>
    %102 = tpu.matmul %100, %101, %cst_39 {dimension_numbers = #tpu.dot_dimension_numbers<[2], [2], [1], [1], [0, 0, 0, 1, 1, 1], [0], [0]>} : vector<2x8x16xbf16>, vector<2x8x16xbf16>, vector<2x8x8xf32> -> vector<2x8x8xf32>
    "tpu.trace_stop"() : () -> ()
    %103 = vector.broadcast %5 : vector<1x1x8xf32> to vector<2x8x8xf32>
    %104 = arith.addf %102, %103 : vector<2x8x8xf32>
    %cst_40 = arith.constant dense<0xFF800000> : vector<2x8xf32>
    %105 = vector.multi_reduction <maximumf>, %104, %cst_40 [2] : vector<2x8x8xf32> to vector<2x8xf32>
    %106 = vector.shape_cast %105 : vector<2x8xf32> to vector<2x8x1xf32>
    %107 = vector.broadcast %106 : vector<2x8x1xf32> to vector<2x8x8xf32>
    %108 = arith.subf %104, %107 : vector<2x8x8xf32>
    %109 = math.exp %108 : vector<2x8x8xf32>
    %cst_41 = arith.constant dense<0.000000e+00> : vector<2x8xf32>
    %110 = vector.multi_reduction <add>, %109, %cst_41 [2] : vector<2x8x8xf32> to vector<2x8xf32>
    %111 = vector.shape_cast %110 : vector<2x8xf32> to vector<2x8x1xf32>
    %112 = tpu.reciprocal %111 {approx = true} : vector<2x8x1xf32> -> vector<2x8x1xf32>
    %113 = vector.broadcast %112 : vector<2x8x1xf32> to vector<2x8x8xf32>
    %114 = arith.mulf %109, %113 : vector<2x8x8xf32>
    %115 = arith.truncf %114 : vector<2x8x8xf32> to vector<2x8x8xbf16>
    %116 = arith.truncf %99 : vector<2x8x16xf32> to vector<2x8x16xbf16>
    "tpu.trace_start"() <{level = 10 : i32, message = "bqk,bkd->bqd"}> : () -> ()
    %cst_42 = arith.constant dense<0.000000e+00> : vector<2x8x16xf32>
    %117 = tpu.matmul %115, %116, %cst_42 {dimension_numbers = #tpu.dot_dimension_numbers<[2], [1], [1], [2], [0, 0, 0, 1, 1, 2], [0], [0]>} : vector<2x8x8xbf16>, vector<2x8x16xbf16>, vector<2x8x16xf32> -> vector<2x8x16xf32>
    "tpu.trace_stop"() : () -> ()
    %118 = vector.extract_strided_slice %75 {offsets = [0, 0, 32], sizes = [2, 8, 16], strides = [1, 1, 1]} : vector<2x8x192xf32> to vector<2x8x16xf32>
    %119 = vector.extract_strided_slice %75 {offsets = [0, 0, 96], sizes = [2, 8, 16], strides = [1, 1, 1]} : vector<2x8x192xf32> to vector<2x8x16xf32>
    %120 = vector.extract_strided_slice %75 {offsets = [0, 0, 160], sizes = [2, 8, 16], strides = [1, 1, 1]} : vector<2x8x192xf32> to vector<2x8x16xf32>
    %121 = arith.truncf %118 : vector<2x8x16xf32> to vector<2x8x16xbf16>
    %122 = arith.truncf %119 : vector<2x8x16xf32> to vector<2x8x16xbf16>
    "tpu.trace_start"() <{level = 10 : i32, message = "bqd,bkd->bqk"}> : () -> ()
    %cst_43 = arith.constant dense<0.000000e+00> : vector<2x8x8xf32>
    %123 = tpu.matmul %121, %122, %cst_43 {dimension_numbers = #tpu.dot_dimension_numbers<[2], [2], [1], [1], [0, 0, 0, 1, 1, 1], [0], [0]>} : vector<2x8x16xbf16>, vector<2x8x16xbf16>, vector<2x8x8xf32> -> vector<2x8x8xf32>
    "tpu.trace_stop"() : () -> ()
    %124 = vector.broadcast %5 : vector<1x1x8xf32> to vector<2x8x8xf32>
    %125 = arith.addf %123, %124 : vector<2x8x8xf32>
    %cst_44 = arith.constant dense<0xFF800000> : vector<2x8xf32>
    %126 = vector.multi_reduction <maximumf>, %125, %cst_44 [2] : vector<2x8x8xf32> to vector<2x8xf32>
    %127 = vector.shape_cast %126 : vector<2x8xf32> to vector<2x8x1xf32>
    %128 = vector.broadcast %127 : vector<2x8x1xf32> to vector<2x8x8xf32>
    %129 = arith.subf %125, %128 : vector<2x8x8xf32>
    %130 = math.exp %129 : vector<2x8x8xf32>
    %cst_45 = arith.constant dense<0.000000e+00> : vector<2x8xf32>
    %131 = vector.multi_reduction <add>, %130, %cst_45 [2] : vector<2x8x8xf32> to vector<2x8xf32>
    %132 = vector.shape_cast %131 : vector<2x8xf32> to vector<2x8x1xf32>
    %133 = tpu.reciprocal %132 {approx = true} : vector<2x8x1xf32> -> vector<2x8x1xf32>
    %134 = vector.broadcast %133 : vector<2x8x1xf32> to vector<2x8x8xf32>
    %135 = arith.mulf %130, %134 : vector<2x8x8xf32>
    %136 = arith.truncf %135 : vector<2x8x8xf32> to vector<2x8x8xbf16>
    %137 = arith.truncf %120 : vector<2x8x16xf32> to vector<2x8x16xbf16>
    "tpu.trace_start"() <{level = 10 : i32, message = "bqk,bkd->bqd"}> : () -> ()
    %cst_46 = arith.constant dense<0.000000e+00> : vector<2x8x16xf32>
    %138 = tpu.matmul %136, %137, %cst_46 {dimension_numbers = #tpu.dot_dimension_numbers<[2], [1], [1], [2], [0, 0, 0, 1, 1, 2], [0], [0]>} : vector<2x8x8xbf16>, vector<2x8x16xbf16>, vector<2x8x16xf32> -> vector<2x8x16xf32>
    "tpu.trace_stop"() : () -> ()
    %139 = vector.extract_strided_slice %75 {offsets = [0, 0, 48], sizes = [2, 8, 16], strides = [1, 1, 1]} : vector<2x8x192xf32> to vector<2x8x16xf32>
    %140 = vector.extract_strided_slice %75 {offsets = [0, 0, 112], sizes = [2, 8, 16], strides = [1, 1, 1]} : vector<2x8x192xf32> to vector<2x8x16xf32>
    %141 = vector.extract_strided_slice %75 {offsets = [0, 0, 176], sizes = [2, 8, 16], strides = [1, 1, 1]} : vector<2x8x192xf32> to vector<2x8x16xf32>
    %142 = arith.truncf %139 : vector<2x8x16xf32> to vector<2x8x16xbf16>
    %143 = arith.truncf %140 : vector<2x8x16xf32> to vector<2x8x16xbf16>
    "tpu.trace_start"() <{level = 10 : i32, message = "bqd,bkd->bqk"}> : () -> ()
    %cst_47 = arith.constant dense<0.000000e+00> : vector<2x8x8xf32>
    %144 = tpu.matmul %142, %143, %cst_47 {dimension_numbers = #tpu.dot_dimension_numbers<[2], [2], [1], [1], [0, 0, 0, 1, 1, 1], [0], [0]>} : vector<2x8x16xbf16>, vector<2x8x16xbf16>, vector<2x8x8xf32> -> vector<2x8x8xf32>
    "tpu.trace_stop"() : () -> ()
    %145 = vector.broadcast %5 : vector<1x1x8xf32> to vector<2x8x8xf32>
    %146 = arith.addf %144, %145 : vector<2x8x8xf32>
    %cst_48 = arith.constant dense<0xFF800000> : vector<2x8xf32>
    %147 = vector.multi_reduction <maximumf>, %146, %cst_48 [2] : vector<2x8x8xf32> to vector<2x8xf32>
    %148 = vector.shape_cast %147 : vector<2x8xf32> to vector<2x8x1xf32>
    %149 = vector.broadcast %148 : vector<2x8x1xf32> to vector<2x8x8xf32>
    %150 = arith.subf %146, %149 : vector<2x8x8xf32>
    %151 = math.exp %150 : vector<2x8x8xf32>
    %cst_49 = arith.constant dense<0.000000e+00> : vector<2x8xf32>
    %152 = vector.multi_reduction <add>, %151, %cst_49 [2] : vector<2x8x8xf32> to vector<2x8xf32>
    %153 = vector.shape_cast %152 : vector<2x8xf32> to vector<2x8x1xf32>
    %154 = tpu.reciprocal %153 {approx = true} : vector<2x8x1xf32> -> vector<2x8x1xf32>
    %155 = vector.broadcast %154 : vector<2x8x1xf32> to vector<2x8x8xf32>
    %156 = arith.mulf %151, %155 : vector<2x8x8xf32>
    %157 = arith.truncf %156 : vector<2x8x8xf32> to vector<2x8x8xbf16>
    %158 = arith.truncf %141 : vector<2x8x16xf32> to vector<2x8x16xbf16>
    "tpu.trace_start"() <{level = 10 : i32, message = "bqk,bkd->bqd"}> : () -> ()
    %cst_50 = arith.constant dense<0.000000e+00> : vector<2x8x16xf32>
    %159 = tpu.matmul %157, %158, %cst_50 {dimension_numbers = #tpu.dot_dimension_numbers<[2], [1], [1], [2], [0, 0, 0, 1, 1, 2], [0], [0]>} : vector<2x8x8xbf16>, vector<2x8x16xbf16>, vector<2x8x16xf32> -> vector<2x8x16xf32>
    "tpu.trace_stop"() : () -> ()
    %160 = tpu.concatenate %96, %117, %138, %159 in 2 : vector<2x8x16xf32>, vector<2x8x16xf32>, vector<2x8x16xf32>, vector<2x8x16xf32> -> vector<2x8x64xf32>
    %161 = vector.shape_cast %160 : vector<2x8x64xf32> to vector<16x64xf32>
    %162 = arith.truncf %161 : vector<16x64xf32> to vector<16x64xbf16>
    %c0_51 = arith.constant 0 : index
    %c0_52 = arith.constant 0 : index
    %c0_53 = arith.constant 0 : index
    %163 = vector.load %arg10[%c0_51, %c0_52, %c0_53] : memref<2x64x64xbf16, #tpu.memory_space<vmem>>, vector<1x64x64xbf16>
    %164 = vector.shape_cast %163 : vector<1x64x64xbf16> to vector<64x64xbf16>
    %cst_54 = arith.constant dense<0.000000e+00> : vector<16x64xf32>
    %165 = tpu.matmul %162, %164, %cst_54 {dimension_numbers = #tpu.dot_dimension_numbers<[1], [0], [0], [1], [0, 0, 1, 1], [], []>} : vector<16x64xbf16>, vector<64x64xbf16>, vector<16x64xf32> -> vector<16x64xf32>
    %166 = arith.addf %40, %165 : vector<16x64xf32>
    %c0_55 = arith.constant 0 : index
    %c0_56 = arith.constant 0 : index
    %c0_57 = arith.constant 0 : index
    %167 = vector.load %arg11[%c0_55, %c0_56, %c0_57] : memref<2x1x64xf32, #tpu.memory_space<vmem>>, vector<1x1x64xf32>
    %168 = vector.shape_cast %167 : vector<1x1x64xf32> to vector<1x64xf32>
    %169 = vector.broadcast %168 : vector<1x64xf32> to vector<16x64xf32>
    %170 = arith.addf %166, %169 : vector<16x64xf32>
    %c0_58 = arith.constant 0 : index
    %c0_59 = arith.constant 0 : index
    %c0_60 = arith.constant 0 : index
    %171 = vector.load %arg12[%c0_58, %c0_59, %c0_60] : memref<2x1x64xf32, #tpu.memory_space<vmem>>, vector<1x1x64xf32>
    %172 = vector.shape_cast %171 : vector<1x1x64xf32> to vector<1x64xf32>
    %c0_61 = arith.constant 0 : index
    %c0_62 = arith.constant 0 : index
    %c0_63 = arith.constant 0 : index
    %173 = vector.load %arg13[%c0_61, %c0_62, %c0_63] : memref<2x1x64xf32, #tpu.memory_space<vmem>>, vector<1x1x64xf32>
    %174 = vector.shape_cast %173 : vector<1x1x64xf32> to vector<1x64xf32>
    %cst_64 = arith.constant dense<0.000000e+00> : vector<16xf32>
    %175 = vector.multi_reduction <add>, %170, %cst_64 [1] : vector<16x64xf32> to vector<16xf32>
    %176 = vector.shape_cast %175 : vector<16xf32> to vector<16x1xf32>
    %cst_65 = arith.constant 6.400000e+01 : f32
    %177 = vector.broadcast %cst_65 : f32 to vector<16x1xf32>
    %178 = arith.divf %176, %177 : vector<16x1xf32>
    %179 = vector.broadcast %178 : vector<16x1xf32> to vector<16x64xf32>
    %180 = arith.subf %170, %179 : vector<16x64xf32>
    %181 = arith.mulf %180, %180 : vector<16x64xf32>
    %cst_66 = arith.constant dense<0.000000e+00> : vector<16xf32>
    %182 = vector.multi_reduction <add>, %181, %cst_66 [1] : vector<16x64xf32> to vector<16xf32>
    %183 = vector.shape_cast %182 : vector<16xf32> to vector<16x1xf32>
    %cst_67 = arith.constant 6.400000e+01 : f32
    %184 = vector.broadcast %cst_67 : f32 to vector<16x1xf32>
    %185 = arith.divf %183, %184 : vector<16x1xf32>
    %186 = vector.broadcast %178 : vector<16x1xf32> to vector<16x64xf32>
    %187 = arith.subf %170, %186 : vector<16x64xf32>
    %cst_68 = arith.constant 9.99999974E-6 : f32
    %188 = vector.broadcast %cst_68 : f32 to vector<16x1xf32>
    %189 = arith.addf %185, %188 : vector<16x1xf32>
    %190 = math.rsqrt %189 : vector<16x1xf32>
    %191 = vector.broadcast %190 : vector<16x1xf32> to vector<16x64xf32>
    %192 = arith.mulf %187, %191 : vector<16x64xf32>
    %193 = vector.broadcast %172 : vector<1x64xf32> to vector<16x64xf32>
    %194 = arith.mulf %192, %193 : vector<16x64xf32>
    %195 = vector.broadcast %174 : vector<1x64xf32> to vector<16x64xf32>
    %196 = arith.addf %194, %195 : vector<16x64xf32>
    %197 = arith.truncf %196 : vector<16x64xf32> to vector<16x64xbf16>
    %c0_69 = arith.constant 0 : index
    %c0_70 = arith.constant 0 : index
    %c0_71 = arith.constant 0 : index
    %198 = vector.load %arg14[%c0_69, %c0_70, %c0_71] : memref<2x64x256xbf16, #tpu.memory_space<vmem>>, vector<1x64x256xbf16>
    %199 = vector.shape_cast %198 : vector<1x64x256xbf16> to vector<64x256xbf16>
    %cst_72 = arith.constant dense<0.000000e+00> : vector<16x256xf32>
    %200 = tpu.matmul %197, %199, %cst_72 {dimension_numbers = #tpu.dot_dimension_numbers<[1], [0], [0], [1], [0, 0, 1, 1], [], []>} : vector<16x64xbf16>, vector<64x256xbf16>, vector<16x256xf32> -> vector<16x256xf32>
    %c0_73 = arith.constant 0 : index
    %c0_74 = arith.constant 0 : index
    %c0_75 = arith.constant 0 : index
    %201 = vector.load %arg15[%c0_73, %c0_74, %c0_75] : memref<2x1x256xf32, #tpu.memory_space<vmem>>, vector<1x1x256xf32>
    %202 = vector.shape_cast %201 : vector<1x1x256xf32> to vector<1x256xf32>
    %203 = vector.broadcast %202 : vector<1x256xf32> to vector<16x256xf32>
    %204 = arith.addf %200, %203 : vector<16x256xf32>
    %cst_76 = arith.constant -1.702000e+00 : f32
    %205 = vector.broadcast %cst_76 : f32 to vector<16x256xf32>
    %206 = arith.mulf %205, %204 : vector<16x256xf32>
    %207 = math.exp %206 : vector<16x256xf32>
    %cst_77 = arith.constant 1.000000e+00 : f32
    %208 = vector.broadcast %cst_77 : f32 to vector<16x256xf32>
    %209 = arith.addf %208, %207 : vector<16x256xf32>
    %210 = arith.divf %204, %209 : vector<16x256xf32>
    %211 = arith.truncf %210 : vector<16x256xf32> to vector<16x256xbf16>
    %c0_78 = arith.constant 0 : index
    %c0_79 = arith.constant 0 : index
    %c0_80 = arith.constant 0 : index
    %212 = vector.load %arg16[%c0_78, %c0_79, %c0_80] : memref<2x256x64xbf16, #tpu.memory_space<vmem>>, vector<1x256x64xbf16>
    %213 = vector.shape_cast %212 : vector<1x256x64xbf16> to vector<256x64xbf16>
    %cst_81 = arith.constant dense<0.000000e+00> : vector<16x64xf32>
    %214 = tpu.matmul %211, %213, %cst_81 {dimension_numbers = #tpu.dot_dimension_numbers<[1], [0], [0], [1], [0, 0, 1, 1], [], []>} : vector<16x256xbf16>, vector<256x64xbf16>, vector<16x64xf32> -> vector<16x64xf32>
    %215 = arith.addf %170, %214 : vector<16x64xf32>
    %c0_82 = arith.constant 0 : index
    %c0_83 = arith.constant 0 : index
    %c0_84 = arith.constant 0 : index
    %216 = vector.load %arg17[%c0_82, %c0_83, %c0_84] : memref<2x1x64xf32, #tpu.memory_space<vmem>>, vector<1x1x64xf32>
    %217 = vector.shape_cast %216 : vector<1x1x64xf32> to vector<1x64xf32>
    %218 = vector.broadcast %217 : vector<1x64xf32> to vector<16x64xf32>
    %219 = arith.addf %215, %218 : vector<16x64xf32>
    %c1 = arith.constant 1 : index
    %c0_85 = arith.constant 0 : index
    %c0_86 = arith.constant 0 : index
    %220 = vector.load %arg6[%c1, %c0_85, %c0_86] : memref<2x1x64xf32, #tpu.memory_space<vmem>>, vector<1x1x64xf32>
    %221 = vector.shape_cast %220 : vector<1x1x64xf32> to vector<1x64xf32>
    %c1_87 = arith.constant 1 : index
    %c0_88 = arith.constant 0 : index
    %c0_89 = arith.constant 0 : index
    %222 = vector.load %arg7[%c1_87, %c0_88, %c0_89] : memref<2x1x64xf32, #tpu.memory_space<vmem>>, vector<1x1x64xf32>
    %223 = vector.shape_cast %222 : vector<1x1x64xf32> to vector<1x64xf32>
    %cst_90 = arith.constant dense<0.000000e+00> : vector<16xf32>
    %224 = vector.multi_reduction <add>, %219, %cst_90 [1] : vector<16x64xf32> to vector<16xf32>
    %225 = vector.shape_cast %224 : vector<16xf32> to vector<16x1xf32>
    %cst_91 = arith.constant 6.400000e+01 : f32
    %226 = vector.broadcast %cst_91 : f32 to vector<16x1xf32>
    %227 = arith.divf %225, %226 : vector<16x1xf32>
    %228 = vector.broadcast %227 : vector<16x1xf32> to vector<16x64xf32>
    %229 = arith.subf %219, %228 : vector<16x64xf32>
    %230 = arith.mulf %229, %229 : vector<16x64xf32>
    %cst_92 = arith.constant dense<0.000000e+00> : vector<16xf32>
    %231 = vector.multi_reduction <add>, %230, %cst_92 [1] : vector<16x64xf32> to vector<16xf32>
    %232 = vector.shape_cast %231 : vector<16xf32> to vector<16x1xf32>
    %cst_93 = arith.constant 6.400000e+01 : f32
    %233 = vector.broadcast %cst_93 : f32 to vector<16x1xf32>
    %234 = arith.divf %232, %233 : vector<16x1xf32>
    %235 = vector.broadcast %227 : vector<16x1xf32> to vector<16x64xf32>
    %236 = arith.subf %219, %235 : vector<16x64xf32>
    %cst_94 = arith.constant 9.99999974E-6 : f32
    %237 = vector.broadcast %cst_94 : f32 to vector<16x1xf32>
    %238 = arith.addf %234, %237 : vector<16x1xf32>
    %239 = math.rsqrt %238 : vector<16x1xf32>
    %240 = vector.broadcast %239 : vector<16x1xf32> to vector<16x64xf32>
    %241 = arith.mulf %236, %240 : vector<16x64xf32>
    %242 = vector.broadcast %221 : vector<1x64xf32> to vector<16x64xf32>
    %243 = arith.mulf %241, %242 : vector<16x64xf32>
    %244 = vector.broadcast %223 : vector<1x64xf32> to vector<16x64xf32>
    %245 = arith.addf %243, %244 : vector<16x64xf32>
    %246 = arith.truncf %245 : vector<16x64xf32> to vector<16x64xbf16>
    %c1_95 = arith.constant 1 : index
    %c0_96 = arith.constant 0 : index
    %c0_97 = arith.constant 0 : index
    %247 = vector.load %arg8[%c1_95, %c0_96, %c0_97] : memref<2x64x192xbf16, #tpu.memory_space<vmem>>, vector<1x64x192xbf16>
    %248 = vector.shape_cast %247 : vector<1x64x192xbf16> to vector<64x192xbf16>
    %cst_98 = arith.constant dense<0.000000e+00> : vector<16x192xf32>
    %249 = tpu.matmul %246, %248, %cst_98 {dimension_numbers = #tpu.dot_dimension_numbers<[1], [0], [0], [1], [0, 0, 1, 1], [], []>} : vector<16x64xbf16>, vector<64x192xbf16>, vector<16x192xf32> -> vector<16x192xf32>
    %c1_99 = arith.constant 1 : index
    %c0_100 = arith.constant 0 : index
    %c0_101 = arith.constant 0 : index
    %250 = vector.load %arg9[%c1_99, %c0_100, %c0_101] : memref<2x1x192xf32, #tpu.memory_space<vmem>>, vector<1x1x192xf32>
    %251 = vector.shape_cast %250 : vector<1x1x192xf32> to vector<1x192xf32>
    %252 = vector.broadcast %251 : vector<1x192xf32> to vector<16x192xf32>
    %253 = arith.addf %249, %252 : vector<16x192xf32>
    %254 = vector.shape_cast %253 : vector<16x192xf32> to vector<2x8x192xf32>
    %255 = vector.extract_strided_slice %254 {offsets = [0, 0, 0], sizes = [2, 8, 16], strides = [1, 1, 1]} : vector<2x8x192xf32> to vector<2x8x16xf32>
    %256 = vector.extract_strided_slice %254 {offsets = [0, 0, 64], sizes = [2, 8, 16], strides = [1, 1, 1]} : vector<2x8x192xf32> to vector<2x8x16xf32>
    %257 = vector.extract_strided_slice %254 {offsets = [0, 0, 128], sizes = [2, 8, 16], strides = [1, 1, 1]} : vector<2x8x192xf32> to vector<2x8x16xf32>
    %258 = arith.truncf %255 : vector<2x8x16xf32> to vector<2x8x16xbf16>
    %259 = arith.truncf %256 : vector<2x8x16xf32> to vector<2x8x16xbf16>
    "tpu.trace_start"() <{level = 10 : i32, message = "bqd,bkd->bqk"}> : () -> ()
    %cst_102 = arith.constant dense<0.000000e+00> : vector<2x8x8xf32>
    %260 = tpu.matmul %258, %259, %cst_102 {dimension_numbers = #tpu.dot_dimension_numbers<[2], [2], [1], [1], [0, 0, 0, 1, 1, 1], [0], [0]>} : vector<2x8x16xbf16>, vector<2x8x16xbf16>, vector<2x8x8xf32> -> vector<2x8x8xf32>
    "tpu.trace_stop"() : () -> ()
    %261 = vector.broadcast %5 : vector<1x1x8xf32> to vector<2x8x8xf32>
    %262 = arith.addf %260, %261 : vector<2x8x8xf32>
    %cst_103 = arith.constant dense<0xFF800000> : vector<2x8xf32>
    %263 = vector.multi_reduction <maximumf>, %262, %cst_103 [2] : vector<2x8x8xf32> to vector<2x8xf32>
    %264 = vector.shape_cast %263 : vector<2x8xf32> to vector<2x8x1xf32>
    %265 = vector.broadcast %264 : vector<2x8x1xf32> to vector<2x8x8xf32>
    %266 = arith.subf %262, %265 : vector<2x8x8xf32>
    %267 = math.exp %266 : vector<2x8x8xf32>
    %cst_104 = arith.constant dense<0.000000e+00> : vector<2x8xf32>
    %268 = vector.multi_reduction <add>, %267, %cst_104 [2] : vector<2x8x8xf32> to vector<2x8xf32>
    %269 = vector.shape_cast %268 : vector<2x8xf32> to vector<2x8x1xf32>
    %270 = tpu.reciprocal %269 {approx = true} : vector<2x8x1xf32> -> vector<2x8x1xf32>
    %271 = vector.broadcast %270 : vector<2x8x1xf32> to vector<2x8x8xf32>
    %272 = arith.mulf %267, %271 : vector<2x8x8xf32>
    %273 = arith.truncf %272 : vector<2x8x8xf32> to vector<2x8x8xbf16>
    %274 = arith.truncf %257 : vector<2x8x16xf32> to vector<2x8x16xbf16>
    "tpu.trace_start"() <{level = 10 : i32, message = "bqk,bkd->bqd"}> : () -> ()
    %cst_105 = arith.constant dense<0.000000e+00> : vector<2x8x16xf32>
    %275 = tpu.matmul %273, %274, %cst_105 {dimension_numbers = #tpu.dot_dimension_numbers<[2], [1], [1], [2], [0, 0, 0, 1, 1, 2], [0], [0]>} : vector<2x8x8xbf16>, vector<2x8x16xbf16>, vector<2x8x16xf32> -> vector<2x8x16xf32>
    "tpu.trace_stop"() : () -> ()
    %276 = vector.extract_strided_slice %254 {offsets = [0, 0, 16], sizes = [2, 8, 16], strides = [1, 1, 1]} : vector<2x8x192xf32> to vector<2x8x16xf32>
    %277 = vector.extract_strided_slice %254 {offsets = [0, 0, 80], sizes = [2, 8, 16], strides = [1, 1, 1]} : vector<2x8x192xf32> to vector<2x8x16xf32>
    %278 = vector.extract_strided_slice %254 {offsets = [0, 0, 144], sizes = [2, 8, 16], strides = [1, 1, 1]} : vector<2x8x192xf32> to vector<2x8x16xf32>
    %279 = arith.truncf %276 : vector<2x8x16xf32> to vector<2x8x16xbf16>
    %280 = arith.truncf %277 : vector<2x8x16xf32> to vector<2x8x16xbf16>
    "tpu.trace_start"() <{level = 10 : i32, message = "bqd,bkd->bqk"}> : () -> ()
    %cst_106 = arith.constant dense<0.000000e+00> : vector<2x8x8xf32>
    %281 = tpu.matmul %279, %280, %cst_106 {dimension_numbers = #tpu.dot_dimension_numbers<[2], [2], [1], [1], [0, 0, 0, 1, 1, 1], [0], [0]>} : vector<2x8x16xbf16>, vector<2x8x16xbf16>, vector<2x8x8xf32> -> vector<2x8x8xf32>
    "tpu.trace_stop"() : () -> ()
    %282 = vector.broadcast %5 : vector<1x1x8xf32> to vector<2x8x8xf32>
    %283 = arith.addf %281, %282 : vector<2x8x8xf32>
    %cst_107 = arith.constant dense<0xFF800000> : vector<2x8xf32>
    %284 = vector.multi_reduction <maximumf>, %283, %cst_107 [2] : vector<2x8x8xf32> to vector<2x8xf32>
    %285 = vector.shape_cast %284 : vector<2x8xf32> to vector<2x8x1xf32>
    %286 = vector.broadcast %285 : vector<2x8x1xf32> to vector<2x8x8xf32>
    %287 = arith.subf %283, %286 : vector<2x8x8xf32>
    %288 = math.exp %287 : vector<2x8x8xf32>
    %cst_108 = arith.constant dense<0.000000e+00> : vector<2x8xf32>
    %289 = vector.multi_reduction <add>, %288, %cst_108 [2] : vector<2x8x8xf32> to vector<2x8xf32>
    %290 = vector.shape_cast %289 : vector<2x8xf32> to vector<2x8x1xf32>
    %291 = tpu.reciprocal %290 {approx = true} : vector<2x8x1xf32> -> vector<2x8x1xf32>
    %292 = vector.broadcast %291 : vector<2x8x1xf32> to vector<2x8x8xf32>
    %293 = arith.mulf %288, %292 : vector<2x8x8xf32>
    %294 = arith.truncf %293 : vector<2x8x8xf32> to vector<2x8x8xbf16>
    %295 = arith.truncf %278 : vector<2x8x16xf32> to vector<2x8x16xbf16>
    "tpu.trace_start"() <{level = 10 : i32, message = "bqk,bkd->bqd"}> : () -> ()
    %cst_109 = arith.constant dense<0.000000e+00> : vector<2x8x16xf32>
    %296 = tpu.matmul %294, %295, %cst_109 {dimension_numbers = #tpu.dot_dimension_numbers<[2], [1], [1], [2], [0, 0, 0, 1, 1, 2], [0], [0]>} : vector<2x8x8xbf16>, vector<2x8x16xbf16>, vector<2x8x16xf32> -> vector<2x8x16xf32>
    "tpu.trace_stop"() : () -> ()
    %297 = vector.extract_strided_slice %254 {offsets = [0, 0, 32], sizes = [2, 8, 16], strides = [1, 1, 1]} : vector<2x8x192xf32> to vector<2x8x16xf32>
    %298 = vector.extract_strided_slice %254 {offsets = [0, 0, 96], sizes = [2, 8, 16], strides = [1, 1, 1]} : vector<2x8x192xf32> to vector<2x8x16xf32>
    %299 = vector.extract_strided_slice %254 {offsets = [0, 0, 160], sizes = [2, 8, 16], strides = [1, 1, 1]} : vector<2x8x192xf32> to vector<2x8x16xf32>
    %300 = arith.truncf %297 : vector<2x8x16xf32> to vector<2x8x16xbf16>
    %301 = arith.truncf %298 : vector<2x8x16xf32> to vector<2x8x16xbf16>
    "tpu.trace_start"() <{level = 10 : i32, message = "bqd,bkd->bqk"}> : () -> ()
    %cst_110 = arith.constant dense<0.000000e+00> : vector<2x8x8xf32>
    %302 = tpu.matmul %300, %301, %cst_110 {dimension_numbers = #tpu.dot_dimension_numbers<[2], [2], [1], [1], [0, 0, 0, 1, 1, 1], [0], [0]>} : vector<2x8x16xbf16>, vector<2x8x16xbf16>, vector<2x8x8xf32> -> vector<2x8x8xf32>
    "tpu.trace_stop"() : () -> ()
    %303 = vector.broadcast %5 : vector<1x1x8xf32> to vector<2x8x8xf32>
    %304 = arith.addf %302, %303 : vector<2x8x8xf32>
    %cst_111 = arith.constant dense<0xFF800000> : vector<2x8xf32>
    %305 = vector.multi_reduction <maximumf>, %304, %cst_111 [2] : vector<2x8x8xf32> to vector<2x8xf32>
    %306 = vector.shape_cast %305 : vector<2x8xf32> to vector<2x8x1xf32>
    %307 = vector.broadcast %306 : vector<2x8x1xf32> to vector<2x8x8xf32>
    %308 = arith.subf %304, %307 : vector<2x8x8xf32>
    %309 = math.exp %308 : vector<2x8x8xf32>
    %cst_112 = arith.constant dense<0.000000e+00> : vector<2x8xf32>
    %310 = vector.multi_reduction <add>, %309, %cst_112 [2] : vector<2x8x8xf32> to vector<2x8xf32>
    %311 = vector.shape_cast %310 : vector<2x8xf32> to vector<2x8x1xf32>
    %312 = tpu.reciprocal %311 {approx = true} : vector<2x8x1xf32> -> vector<2x8x1xf32>
    %313 = vector.broadcast %312 : vector<2x8x1xf32> to vector<2x8x8xf32>
    %314 = arith.mulf %309, %313 : vector<2x8x8xf32>
    %315 = arith.truncf %314 : vector<2x8x8xf32> to vector<2x8x8xbf16>
    %316 = arith.truncf %299 : vector<2x8x16xf32> to vector<2x8x16xbf16>
    "tpu.trace_start"() <{level = 10 : i32, message = "bqk,bkd->bqd"}> : () -> ()
    %cst_113 = arith.constant dense<0.000000e+00> : vector<2x8x16xf32>
    %317 = tpu.matmul %315, %316, %cst_113 {dimension_numbers = #tpu.dot_dimension_numbers<[2], [1], [1], [2], [0, 0, 0, 1, 1, 2], [0], [0]>} : vector<2x8x8xbf16>, vector<2x8x16xbf16>, vector<2x8x16xf32> -> vector<2x8x16xf32>
    "tpu.trace_stop"() : () -> ()
    %318 = vector.extract_strided_slice %254 {offsets = [0, 0, 48], sizes = [2, 8, 16], strides = [1, 1, 1]} : vector<2x8x192xf32> to vector<2x8x16xf32>
    %319 = vector.extract_strided_slice %254 {offsets = [0, 0, 112], sizes = [2, 8, 16], strides = [1, 1, 1]} : vector<2x8x192xf32> to vector<2x8x16xf32>
    %320 = vector.extract_strided_slice %254 {offsets = [0, 0, 176], sizes = [2, 8, 16], strides = [1, 1, 1]} : vector<2x8x192xf32> to vector<2x8x16xf32>
    %321 = arith.truncf %318 : vector<2x8x16xf32> to vector<2x8x16xbf16>
    %322 = arith.truncf %319 : vector<2x8x16xf32> to vector<2x8x16xbf16>
    "tpu.trace_start"() <{level = 10 : i32, message = "bqd,bkd->bqk"}> : () -> ()
    %cst_114 = arith.constant dense<0.000000e+00> : vector<2x8x8xf32>
    %323 = tpu.matmul %321, %322, %cst_114 {dimension_numbers = #tpu.dot_dimension_numbers<[2], [2], [1], [1], [0, 0, 0, 1, 1, 1], [0], [0]>} : vector<2x8x16xbf16>, vector<2x8x16xbf16>, vector<2x8x8xf32> -> vector<2x8x8xf32>
    "tpu.trace_stop"() : () -> ()
    %324 = vector.broadcast %5 : vector<1x1x8xf32> to vector<2x8x8xf32>
    %325 = arith.addf %323, %324 : vector<2x8x8xf32>
    %cst_115 = arith.constant dense<0xFF800000> : vector<2x8xf32>
    %326 = vector.multi_reduction <maximumf>, %325, %cst_115 [2] : vector<2x8x8xf32> to vector<2x8xf32>
    %327 = vector.shape_cast %326 : vector<2x8xf32> to vector<2x8x1xf32>
    %328 = vector.broadcast %327 : vector<2x8x1xf32> to vector<2x8x8xf32>
    %329 = arith.subf %325, %328 : vector<2x8x8xf32>
    %330 = math.exp %329 : vector<2x8x8xf32>
    %cst_116 = arith.constant dense<0.000000e+00> : vector<2x8xf32>
    %331 = vector.multi_reduction <add>, %330, %cst_116 [2] : vector<2x8x8xf32> to vector<2x8xf32>
    %332 = vector.shape_cast %331 : vector<2x8xf32> to vector<2x8x1xf32>
    %333 = tpu.reciprocal %332 {approx = true} : vector<2x8x1xf32> -> vector<2x8x1xf32>
    %334 = vector.broadcast %333 : vector<2x8x1xf32> to vector<2x8x8xf32>
    %335 = arith.mulf %330, %334 : vector<2x8x8xf32>
    %336 = arith.truncf %335 : vector<2x8x8xf32> to vector<2x8x8xbf16>
    %337 = arith.truncf %320 : vector<2x8x16xf32> to vector<2x8x16xbf16>
    "tpu.trace_start"() <{level = 10 : i32, message = "bqk,bkd->bqd"}> : () -> ()
    %cst_117 = arith.constant dense<0.000000e+00> : vector<2x8x16xf32>
    %338 = tpu.matmul %336, %337, %cst_117 {dimension_numbers = #tpu.dot_dimension_numbers<[2], [1], [1], [2], [0, 0, 0, 1, 1, 2], [0], [0]>} : vector<2x8x8xbf16>, vector<2x8x16xbf16>, vector<2x8x16xf32> -> vector<2x8x16xf32>
    "tpu.trace_stop"() : () -> ()
    %339 = tpu.concatenate %275, %296, %317, %338 in 2 : vector<2x8x16xf32>, vector<2x8x16xf32>, vector<2x8x16xf32>, vector<2x8x16xf32> -> vector<2x8x64xf32>
    %340 = vector.shape_cast %339 : vector<2x8x64xf32> to vector<16x64xf32>
    %341 = arith.truncf %340 : vector<16x64xf32> to vector<16x64xbf16>
    %c1_118 = arith.constant 1 : index
    %c0_119 = arith.constant 0 : index
    %c0_120 = arith.constant 0 : index
    %342 = vector.load %arg10[%c1_118, %c0_119, %c0_120] : memref<2x64x64xbf16, #tpu.memory_space<vmem>>, vector<1x64x64xbf16>
    %343 = vector.shape_cast %342 : vector<1x64x64xbf16> to vector<64x64xbf16>
    %cst_121 = arith.constant dense<0.000000e+00> : vector<16x64xf32>
    %344 = tpu.matmul %341, %343, %cst_121 {dimension_numbers = #tpu.dot_dimension_numbers<[1], [0], [0], [1], [0, 0, 1, 1], [], []>} : vector<16x64xbf16>, vector<64x64xbf16>, vector<16x64xf32> -> vector<16x64xf32>
    %345 = arith.addf %219, %344 : vector<16x64xf32>
    %c1_122 = arith.constant 1 : index
    %c0_123 = arith.constant 0 : index
    %c0_124 = arith.constant 0 : index
    %346 = vector.load %arg11[%c1_122, %c0_123, %c0_124] : memref<2x1x64xf32, #tpu.memory_space<vmem>>, vector<1x1x64xf32>
    %347 = vector.shape_cast %346 : vector<1x1x64xf32> to vector<1x64xf32>
    %348 = vector.broadcast %347 : vector<1x64xf32> to vector<16x64xf32>
    %349 = arith.addf %345, %348 : vector<16x64xf32>
    %c1_125 = arith.constant 1 : index
    %c0_126 = arith.constant 0 : index
    %c0_127 = arith.constant 0 : index
    %350 = vector.load %arg12[%c1_125, %c0_126, %c0_127] : memref<2x1x64xf32, #tpu.memory_space<vmem>>, vector<1x1x64xf32>
    %351 = vector.shape_cast %350 : vector<1x1x64xf32> to vector<1x64xf32>
    %c1_128 = arith.constant 1 : index
    %c0_129 = arith.constant 0 : index
    %c0_130 = arith.constant 0 : index
    %352 = vector.load %arg13[%c1_128, %c0_129, %c0_130] : memref<2x1x64xf32, #tpu.memory_space<vmem>>, vector<1x1x64xf32>
    %353 = vector.shape_cast %352 : vector<1x1x64xf32> to vector<1x64xf32>
    %cst_131 = arith.constant dense<0.000000e+00> : vector<16xf32>
    %354 = vector.multi_reduction <add>, %349, %cst_131 [1] : vector<16x64xf32> to vector<16xf32>
    %355 = vector.shape_cast %354 : vector<16xf32> to vector<16x1xf32>
    %cst_132 = arith.constant 6.400000e+01 : f32
    %356 = vector.broadcast %cst_132 : f32 to vector<16x1xf32>
    %357 = arith.divf %355, %356 : vector<16x1xf32>
    %358 = vector.broadcast %357 : vector<16x1xf32> to vector<16x64xf32>
    %359 = arith.subf %349, %358 : vector<16x64xf32>
    %360 = arith.mulf %359, %359 : vector<16x64xf32>
    %cst_133 = arith.constant dense<0.000000e+00> : vector<16xf32>
    %361 = vector.multi_reduction <add>, %360, %cst_133 [1] : vector<16x64xf32> to vector<16xf32>
    %362 = vector.shape_cast %361 : vector<16xf32> to vector<16x1xf32>
    %cst_134 = arith.constant 6.400000e+01 : f32
    %363 = vector.broadcast %cst_134 : f32 to vector<16x1xf32>
    %364 = arith.divf %362, %363 : vector<16x1xf32>
    %365 = vector.broadcast %357 : vector<16x1xf32> to vector<16x64xf32>
    %366 = arith.subf %349, %365 : vector<16x64xf32>
    %cst_135 = arith.constant 9.99999974E-6 : f32
    %367 = vector.broadcast %cst_135 : f32 to vector<16x1xf32>
    %368 = arith.addf %364, %367 : vector<16x1xf32>
    %369 = math.rsqrt %368 : vector<16x1xf32>
    %370 = vector.broadcast %369 : vector<16x1xf32> to vector<16x64xf32>
    %371 = arith.mulf %366, %370 : vector<16x64xf32>
    %372 = vector.broadcast %351 : vector<1x64xf32> to vector<16x64xf32>
    %373 = arith.mulf %371, %372 : vector<16x64xf32>
    %374 = vector.broadcast %353 : vector<1x64xf32> to vector<16x64xf32>
    %375 = arith.addf %373, %374 : vector<16x64xf32>
    %376 = arith.truncf %375 : vector<16x64xf32> to vector<16x64xbf16>
    %c1_136 = arith.constant 1 : index
    %c0_137 = arith.constant 0 : index
    %c0_138 = arith.constant 0 : index
    %377 = vector.load %arg14[%c1_136, %c0_137, %c0_138] : memref<2x64x256xbf16, #tpu.memory_space<vmem>>, vector<1x64x256xbf16>
    %378 = vector.shape_cast %377 : vector<1x64x256xbf16> to vector<64x256xbf16>
    %cst_139 = arith.constant dense<0.000000e+00> : vector<16x256xf32>
    %379 = tpu.matmul %376, %378, %cst_139 {dimension_numbers = #tpu.dot_dimension_numbers<[1], [0], [0], [1], [0, 0, 1, 1], [], []>} : vector<16x64xbf16>, vector<64x256xbf16>, vector<16x256xf32> -> vector<16x256xf32>
    %c1_140 = arith.constant 1 : index
    %c0_141 = arith.constant 0 : index
    %c0_142 = arith.constant 0 : index
    %380 = vector.load %arg15[%c1_140, %c0_141, %c0_142] : memref<2x1x256xf32, #tpu.memory_space<vmem>>, vector<1x1x256xf32>
    %381 = vector.shape_cast %380 : vector<1x1x256xf32> to vector<1x256xf32>
    %382 = vector.broadcast %381 : vector<1x256xf32> to vector<16x256xf32>
    %383 = arith.addf %379, %382 : vector<16x256xf32>
    %cst_143 = arith.constant -1.702000e+00 : f32
    %384 = vector.broadcast %cst_143 : f32 to vector<16x256xf32>
    %385 = arith.mulf %384, %383 : vector<16x256xf32>
    %386 = math.exp %385 : vector<16x256xf32>
    %cst_144 = arith.constant 1.000000e+00 : f32
    %387 = vector.broadcast %cst_144 : f32 to vector<16x256xf32>
    %388 = arith.addf %387, %386 : vector<16x256xf32>
    %389 = arith.divf %383, %388 : vector<16x256xf32>
    %390 = arith.truncf %389 : vector<16x256xf32> to vector<16x256xbf16>
    %c1_145 = arith.constant 1 : index
    %c0_146 = arith.constant 0 : index
    %c0_147 = arith.constant 0 : index
    %391 = vector.load %arg16[%c1_145, %c0_146, %c0_147] : memref<2x256x64xbf16, #tpu.memory_space<vmem>>, vector<1x256x64xbf16>
    %392 = vector.shape_cast %391 : vector<1x256x64xbf16> to vector<256x64xbf16>
    %cst_148 = arith.constant dense<0.000000e+00> : vector<16x64xf32>
    %393 = tpu.matmul %390, %392, %cst_148 {dimension_numbers = #tpu.dot_dimension_numbers<[1], [0], [0], [1], [0, 0, 1, 1], [], []>} : vector<16x256xbf16>, vector<256x64xbf16>, vector<16x64xf32> -> vector<16x64xf32>
    %394 = arith.addf %349, %393 : vector<16x64xf32>
    %c1_149 = arith.constant 1 : index
    %c0_150 = arith.constant 0 : index
    %c0_151 = arith.constant 0 : index
    %395 = vector.load %arg17[%c1_149, %c0_150, %c0_151] : memref<2x1x64xf32, #tpu.memory_space<vmem>>, vector<1x1x64xf32>
    %396 = vector.shape_cast %395 : vector<1x1x64xf32> to vector<1x64xf32>
    %397 = vector.broadcast %396 : vector<1x64xf32> to vector<16x64xf32>
    %398 = arith.addf %394, %397 : vector<16x64xf32>
    %399 = vector.shape_cast %398 : vector<16x64xf32> to vector<2x8x64xf32>
    %400 = vector.extract_strided_slice %399 {offsets = [0, 0, 0], sizes = [2, 1, 64], strides = [1, 1, 1]} : vector<2x8x64xf32> to vector<2x1x64xf32>
    %401 = vector.shape_cast %400 : vector<2x1x64xf32> to vector<2x64xf32>
    %c0_152 = arith.constant 0 : index
    %c0_153 = arith.constant 0 : index
    %402 = vector.load %arg18[%c0_152, %c0_153] : memref<1x64xf32, #tpu.memory_space<vmem>>, vector<1x64xf32>
    %c0_154 = arith.constant 0 : index
    %c0_155 = arith.constant 0 : index
    %403 = vector.load %arg19[%c0_154, %c0_155] : memref<1x64xf32, #tpu.memory_space<vmem>>, vector<1x64xf32>
    %cst_156 = arith.constant dense<0.000000e+00> : vector<2xf32>
    %404 = vector.multi_reduction <add>, %401, %cst_156 [1] : vector<2x64xf32> to vector<2xf32>
    %405 = vector.shape_cast %404 : vector<2xf32> to vector<2x1xf32>
    %cst_157 = arith.constant 6.400000e+01 : f32
    %406 = vector.broadcast %cst_157 : f32 to vector<2x1xf32>
    %407 = arith.divf %405, %406 : vector<2x1xf32>
    %408 = vector.broadcast %407 : vector<2x1xf32> to vector<2x64xf32>
    %409 = arith.subf %401, %408 : vector<2x64xf32>
    %410 = arith.mulf %409, %409 : vector<2x64xf32>
    %cst_158 = arith.constant dense<0.000000e+00> : vector<2xf32>
    %411 = vector.multi_reduction <add>, %410, %cst_158 [1] : vector<2x64xf32> to vector<2xf32>
    %412 = vector.shape_cast %411 : vector<2xf32> to vector<2x1xf32>
    %cst_159 = arith.constant 6.400000e+01 : f32
    %413 = vector.broadcast %cst_159 : f32 to vector<2x1xf32>
    %414 = arith.divf %412, %413 : vector<2x1xf32>
    %415 = vector.broadcast %407 : vector<2x1xf32> to vector<2x64xf32>
    %416 = arith.subf %401, %415 : vector<2x64xf32>
    %cst_160 = arith.constant 9.99999974E-6 : f32
    %417 = vector.broadcast %cst_160 : f32 to vector<2x1xf32>
    %418 = arith.addf %414, %417 : vector<2x1xf32>
    %419 = math.rsqrt %418 : vector<2x1xf32>
    %420 = vector.broadcast %419 : vector<2x1xf32> to vector<2x64xf32>
    %421 = arith.mulf %416, %420 : vector<2x64xf32>
    %422 = vector.broadcast %402 : vector<1x64xf32> to vector<2x64xf32>
    %423 = arith.mulf %421, %422 : vector<2x64xf32>
    %424 = vector.broadcast %403 : vector<1x64xf32> to vector<2x64xf32>
    %425 = arith.addf %423, %424 : vector<2x64xf32>
    %426 = arith.truncf %425 : vector<2x64xf32> to vector<2x64xbf16>
    %c0_161 = arith.constant 0 : index
    %c0_162 = arith.constant 0 : index
    %427 = vector.load %arg20[%c0_161, %c0_162] : memref<64x512xbf16, #tpu.memory_space<vmem>>, vector<64x512xbf16>
    %cst_163 = arith.constant dense<0.000000e+00> : vector<2x512xf32>
    %428 = tpu.matmul %426, %427, %cst_163 {dimension_numbers = #tpu.dot_dimension_numbers<[1], [0], [0], [1], [0, 0, 1, 1], [], []>} : vector<2x64xbf16>, vector<64x512xbf16>, vector<2x512xf32> -> vector<2x512xf32>
    %c0_164 = arith.constant 0 : index
    %c0_165 = arith.constant 0 : index
    %429 = vector.load %arg21[%c0_164, %c0_165] : memref<1x512xf32, #tpu.memory_space<vmem>>, vector<1x512xf32>
    %430 = vector.broadcast %429 : vector<1x512xf32> to vector<2x512xf32>
    %431 = arith.addf %428, %430 : vector<2x512xf32>
    %c0_166 = arith.constant 0 : index
    %c0_167 = arith.constant 0 : index
    %432 = vector.load %arg22[%c0_166, %c0_167] : memref<2x512xf32, #tpu.memory_space<vmem>>, vector<2x512xf32>
    tpu.vector_store %arg22[%c0_166, %c0_167], %431 {strides = array<i32>} : memref<2x512xf32, #tpu.memory_space<vmem>>, vector<2x512xf32>,
    return
  }
  func.func @transform_0(%arg0: i32) -> (i32, i32, i32) {
    %c0_i32 = arith.constant 0 : i32
    %c0_i32_0 = arith.constant 0 : i32
    %c0_i32_1 = arith.constant 0 : i32
    return %arg0, %c0_i32, %c0_i32_0 : i32, i32, i32
  }
  func.func @transform_1(%arg0: i32) -> (i32, i32) {
    %c0_i32 = arith.constant 0 : i32
    %c0_i32_0 = arith.constant 0 : i32
    %c0_i32_1 = arith.constant 0 : i32
    return %c0_i32, %c0_i32_0 : i32, i32
  }
  func.func @transform_2(%arg0: i32) -> (i32, i32) {
    %c0_i32 = arith.constant 0 : i32
    %c0_i32_0 = arith.constant 0 : i32
    %c0_i32_1 = arith.constant 0 : i32
    return %c0_i32, %c0_i32_0 : i32, i32
  }
  func.func @transform_3(%arg0: i32) -> (i32, i32) {
    %c0_i32 = arith.constant 0 : i32
    %c0_i32_0 = arith.constant 0 : i32
    %c0_i32_1 = arith.constant 0 : i32
    return %c0_i32, %c0_i32_0 : i32, i32
  }
  func.func @transform_4(%arg0: i32) -> (i32, i32) {
    %c0_i32 = arith.constant 0 : i32
    %c0_i32_0 = arith.constant 0 : i32
    %c0_i32_1 = arith.constant 0 : i32
    return %c0_i32, %c0_i32_0 : i32, i32
  }
  func.func @transform_5(%arg0: i32) -> (i32, i32, i32) {
    %c0_i32 = arith.constant 0 : i32
    %c0_i32_0 = arith.constant 0 : i32
    %c0_i32_1 = arith.constant 0 : i32
    %c0_i32_2 = arith.constant 0 : i32
    return %c0_i32, %c0_i32_0, %c0_i32_1 : i32, i32, i32
  }
  func.func @transform_6(%arg0: i32) -> (i32, i32, i32) {
    %c0_i32 = arith.constant 0 : i32
    %c0_i32_0 = arith.constant 0 : i32
    %c0_i32_1 = arith.constant 0 : i32
    %c0_i32_2 = arith.constant 0 : i32
    return %c0_i32, %c0_i32_0, %c0_i32_1 : i32, i32, i32
  }
  func.func @transform_7(%arg0: i32) -> (i32, i32, i32) {
    %c0_i32 = arith.constant 0 : i32
    %c0_i32_0 = arith.constant 0 : i32
    %c0_i32_1 = arith.constant 0 : i32
    %c0_i32_2 = arith.constant 0 : i32
    return %c0_i32, %c0_i32_0, %c0_i32_1 : i32, i32, i32
  }
  func.func @transform_8(%arg0: i32) -> (i32, i32, i32) {
    %c0_i32 = arith.constant 0 : i32
    %c0_i32_0 = arith.constant 0 : i32
    %c0_i32_1 = arith.constant 0 : i32
    %c0_i32_2 = arith.constant 0 : i32
    return %c0_i32, %c0_i32_0, %c0_i32_1 : i32, i32, i32
  }
  func.func @transform_9(%arg0: i32) -> (i32, i32, i32) {
    %c0_i32 = arith.constant 0 : i32
    %c0_i32_0 = arith.constant 0 : i32
    %c0_i32_1 = arith.constant 0 : i32
    %c0_i32_2 = arith.constant 0 : i32
    return %c0_i32, %c0_i32_0, %c0_i32_1 : i32, i32, i32
  }
  func.func @transform_10(%arg0: i32) -> (i32, i32, i32) {
    %c0_i32 = arith.constant 0 : i32
    %c0_i32_0 = arith.constant 0 : i32
    %c0_i32_1 = arith.constant 0 : i32
    %c0_i32_2 = arith.constant 0 : i32
    return %c0_i32, %c0_i32_0, %c0_i32_1 : i32, i32, i32
  }
  func.func @transform_11(%arg0: i32) -> (i32, i32, i32) {
    %c0_i32 = arith.constant 0 : i32
    %c0_i32_0 = arith.constant 0 : i32
    %c0_i32_1 = arith.constant 0 : i32
    %c0_i32_2 = arith.constant 0 : i32
    return %c0_i32, %c0_i32_0, %c0_i32_1 : i32, i32, i32
  }
  func.func @transform_12(%arg0: i32) -> (i32, i32, i32) {
    %c0_i32 = arith.constant 0 : i32
    %c0_i32_0 = arith.constant 0 : i32
    %c0_i32_1 = arith.constant 0 : i32
    %c0_i32_2 = arith.constant 0 : i32
    return %c0_i32, %c0_i32_0, %c0_i32_1 : i32, i32, i32
  }
  func.func @transform_13(%arg0: i32) -> (i32, i32, i32) {
    %c0_i32 = arith.constant 0 : i32
    %c0_i32_0 = arith.constant 0 : i32
    %c0_i32_1 = arith.constant 0 : i32
    %c0_i32_2 = arith.constant 0 : i32
    return %c0_i32, %c0_i32_0, %c0_i32_1 : i32, i32, i32
  }
  func.func @transform_14(%arg0: i32) -> (i32, i32, i32) {
    %c0_i32 = arith.constant 0 : i32
    %c0_i32_0 = arith.constant 0 : i32
    %c0_i32_1 = arith.constant 0 : i32
    %c0_i32_2 = arith.constant 0 : i32
    return %c0_i32, %c0_i32_0, %c0_i32_1 : i32, i32, i32
  }
  func.func @transform_15(%arg0: i32) -> (i32, i32, i32) {
    %c0_i32 = arith.constant 0 : i32
    %c0_i32_0 = arith.constant 0 : i32
    %c0_i32_1 = arith.constant 0 : i32
    %c0_i32_2 = arith.constant 0 : i32
    return %c0_i32, %c0_i32_0, %c0_i32_1 : i32, i32, i32
  }
  func.func @transform_16(%arg0: i32) -> (i32, i32, i32) {
    %c0_i32 = arith.constant 0 : i32
    %c0_i32_0 = arith.constant 0 : i32
    %c0_i32_1 = arith.constant 0 : i32
    %c0_i32_2 = arith.constant 0 : i32
    return %c0_i32, %c0_i32_0, %c0_i32_1 : i32, i32, i32
  }
  func.func @transform_17(%arg0: i32) -> (i32, i32) {
    %c0_i32 = arith.constant 0 : i32
    %c0_i32_0 = arith.constant 0 : i32
    %c0_i32_1 = arith.constant 0 : i32
    return %c0_i32, %c0_i32_0 : i32, i32
  }
  func.func @transform_18(%arg0: i32) -> (i32, i32) {
    %c0_i32 = arith.constant 0 : i32
    %c0_i32_0 = arith.constant 0 : i32
    %c0_i32_1 = arith.constant 0 : i32
    return %c0_i32, %c0_i32_0 : i32, i32
  }
  func.func @transform_19(%arg0: i32) -> (i32, i32) {
    %c0_i32 = arith.constant 0 : i32
    %c0_i32_0 = arith.constant 0 : i32
    %c0_i32_1 = arith.constant 0 : i32
    return %c0_i32, %c0_i32_0 : i32, i32
  }
  func.func @transform_20(%arg0: i32) -> (i32, i32) {
    %c0_i32 = arith.constant 0 : i32
    %c0_i32_0 = arith.constant 0 : i32
    %c0_i32_1 = arith.constant 0 : i32
    return %c0_i32, %c0_i32_0 : i32, i32
  }
  func.func @transform_21(%arg0: i32) -> (i32, i32) {
    %c0_i32 = arith.constant 0 : i32
    %c0_i32_0 = arith.constant 0 : i32
    return %arg0, %c0_i32 : i32, i32
  }
}

</mosaic_0001>

<llo_original>
// kernel: rgb_encoder_forward.1
$region0: #{rgb_encoder_forward.1}
  #allocation0 [shape = 'u32[]', space=smem, size = 0x4, offset = 0x4, fixed_abs, tag = 'smem constant byte address 0x4 - core index']
  #allocation1 [shape = 'u32[144,128]{1,0:T(1,128)}', space=vmem, size = 0x12000, scoped, tag = 'internal scratch']
  %s0 = inlined_call_operand.vmem [shape: f32[2,8,256], index: 0, kind: input, shape index: {}]
  %s1 = inlined_call_operand.vmem [shape: bf16[256,64], index: 1, kind: input, shape index: {}]
  %s2 = inlined_call_operand.vmem [shape: f32[8,64], index: 2, kind: input, shape index: {}]
  %s3 = inlined_call_operand.vmem [shape: f32[1,64], index: 3, kind: input, shape index: {}]
  %s4 = inlined_call_operand.vmem [shape: f32[1,64], index: 4, kind: input, shape index: {}]
  %s5 = inlined_call_operand.vmem [shape: f32[2,1,64], index: 5, kind: input, shape index: {}]
  %s6 = inlined_call_operand.vmem [shape: f32[2,1,64], index: 6, kind: input, shape index: {}]
  %s7 = inlined_call_operand.vmem [shape: bf16[2,64,192], index: 7, kind: input, shape index: {}]
  %s8 = inlined_call_operand.vmem [shape: f32[2,1,192], index: 8, kind: input, shape index: {}]
  %s9 = inlined_call_operand.vmem [shape: bf16[2,64,64], index: 9, kind: input, shape index: {}]
  %s10 = inlined_call_operand.vmem [shape: f32[2,1,64], index: 10, kind: input, shape index: {}]
  %s11 = inlined_call_operand.vmem [shape: f32[2,1,64], index: 11, kind: input, shape index: {}]
  %s12 = inlined_call_operand.vmem [shape: f32[2,1,64], index: 12, kind: input, shape index: {}]
  %s13 = inlined_call_operand.vmem [shape: bf16[2,64,256], index: 13, kind: input, shape index: {}]
  %s14 = inlined_call_operand.vmem [shape: f32[2,1,256], index: 14, kind: input, shape index: {}]
  %s15 = inlined_call_operand.vmem [shape: bf16[2,256,64], index: 15, kind: input, shape index: {}]
  %s16 = inlined_call_operand.vmem [shape: f32[2,1,64], index: 16, kind: input, shape index: {}]
  %s17 = inlined_call_operand.vmem [shape: f32[1,64], index: 17, kind: input, shape index: {}]
  %s18 = inlined_call_operand.vmem [shape: f32[1,64], index: 18, kind: input, shape index: {}]
  %s19 = inlined_call_operand.vmem [shape: bf16[64,512], index: 19, kind: input, shape index: {}]
  %s20 = inlined_call_operand.vmem [shape: f32[1,512], index: 20, kind: input, shape index: {}]
  %s21 = inlined_call_operand.hbm [shape: f32[2,512], index: 21, kind: output, shape index: {}]
  %s22 = sld [smem:[#allocation0]]
  $region94: #{rgb_encoder_forward.1} parent=0
    _
  %s24 = ssub.s32 1, %s22
  %s25 = scalar_select 0, %s24, %s22
  $region1: #{rgb_encoder_forward.1} parent=0
    #allocation2 [shape = 'u8[4096]{0}', space=vmem, size = 0x1000, scoped, tag = 'output window, operand 0, single buffered']
    #allocation3 [shape = 's32[1]{0}', space=sflag, size = 0x4, scoped, tag = 'scoped memory for rgb_encoder_forward.1']
    %26 = vsyncpa [#allocation3], 0
    // Predicated region
    $region2: #{rgb_encoder_forward.1} parent=1 // pred_check
      _
    $region3: #{rgb_encoder_forward.1} parent=1 // pred_check_branch
      %28 = sbr.rel (0) target = $region5
    $region4: #{rgb_encoder_forward.1} parent=1 // pred_region
      _
    $region5: #{rgb_encoder_forward.1} parent=1 // pred_fallthru
      _
    // Predicated region
    $region6: #{rgb_encoder_forward.1} parent=1 // pred_check
      _
    $region7: #{rgb_encoder_forward.1} parent=1 // pred_check_branch
      %30 = sbr.rel (0) target = $region9
    $region8: #{rgb_encoder_forward.1} parent=1 // pred_region
      _
    $region9: #{rgb_encoder_forward.1} parent=1 // pred_fallthru
      _
    // Predicated region
    $region10: #{rgb_encoder_forward.1} parent=1 // pred_check
      _
    $region11: #{rgb_encoder_forward.1} parent=1 // pred_check_branch
      %32 = sbr.rel (0) target = $region13
    $region12: #{rgb_encoder_forward.1} parent=1 // pred_region
      _
    $region13: #{rgb_encoder_forward.1} parent=1 // pred_fallthru
      _
    // Predicated region
    $region14: #{rgb_encoder_forward.1} parent=1 // pred_check
      _
    $region15: #{rgb_encoder_forward.1} parent=1 // pred_check_branch
      %34 = sbr.rel (0) target = $region17
    $region16: #{rgb_encoder_forward.1} parent=1 // pred_region
      _
    $region17: #{rgb_encoder_forward.1} parent=1 // pred_fallthru
      _
    // Predicated region
    $region18: #{rgb_encoder_forward.1} parent=1 // pred_check
      _
    $region19: #{rgb_encoder_forward.1} parent=1 // pred_check_branch
      %36 = sbr.rel (0) target = $region21
    $region20: #{rgb_encoder_forward.1} parent=1 // pred_region
      _
    $region21: #{rgb_encoder_forward.1} parent=1 // pred_fallthru
      _
    // Predicated region
    $region22: #{rgb_encoder_forward.1} parent=1 // pred_check
      _
    $region23: #{rgb_encoder_forward.1} parent=1 // pred_check_branch
      %38 = sbr.rel (0) target = $region25
    $region24: #{rgb_encoder_forward.1} parent=1 // pred_region
      _
    $region25: #{rgb_encoder_forward.1} parent=1 // pred_fallthru
      _
    // Predicated region
    $region26: #{rgb_encoder_forward.1} parent=1 // pred_check
      _
    $region27: #{rgb_encoder_forward.1} parent=1 // pred_check_branch
      %40 = sbr.rel (0) target = $region29
    $region28: #{rgb_encoder_forward.1} parent=1 // pred_region
      _
    $region29: #{rgb_encoder_forward.1} parent=1 // pred_fallthru
      _
    // Predicated region
    $region30: #{rgb_encoder_forward.1} parent=1 // pred_check
      _
    $region31: #{rgb_encoder_forward.1} parent=1 // pred_check_branch
      %42 = sbr.rel (0) target = $region33
    $region32: #{rgb_encoder_forward.1} parent=1 // pred_region
      _
    $region33: #{rgb_encoder_forward.1} parent=1 // pred_fallthru
      _
    // Predicated region
    $region34: #{rgb_encoder_forward.1} parent=1 // pred_check
      _
    $region35: #{rgb_encoder_forward.1} parent=1 // pred_check_branch
      %44 = sbr.rel (0) target = $region37
    $region36: #{rgb_encoder_forward.1} parent=1 // pred_region
      _
    $region37: #{rgb_encoder_forward.1} parent=1 // pred_fallthru
      _
    // Predicated region
    $region38: #{rgb_encoder_forward.1} parent=1 // pred_check
      _
    $region39: #{rgb_encoder_forward.1} parent=1 // pred_check_branch
      %46 = sbr.rel (0) target = $region41
    $region40: #{rgb_encoder_forward.1} parent=1 // pred_region
      _
    $region41: #{rgb_encoder_forward.1} parent=1 // pred_fallthru
      _
    // Predicated region
    $region42: #{rgb_encoder_forward.1} parent=1 // pred_check
      _
    $region43: #{rgb_encoder_forward.1} parent=1 // pred_check_branch
      %48 = sbr.rel (0) target = $region45
    $region44: #{rgb_encoder_forward.1} parent=1 // pred_region
      _
    $region45: #{rgb_encoder_forward.1} parent=1 // pred_fallthru
      _
    // Predicated region
    $region46: #{rgb_encoder_forward.1} parent=1 // pred_check
      _
    $region47: #{rgb_encoder_forward.1} parent=1 // pred_check_branch
      %50 = sbr.rel (0) target = $region49
    $region48: #{rgb_encoder_forward.1} parent=1 // pred_region
      _
    $region49: #{rgb_encoder_forward.1} parent=1 // pred_fallthru
      _
    // Predicated region
    $region50: #{rgb_encoder_forward.1} parent=1 // pred_check
      _
    $region51: #{rgb_encoder_forward.1} parent=1 // pred_check_branch
      %52 = sbr.rel (0) target = $region53
    $region52: #{rgb_encoder_forward.1} parent=1 // pred_region
      _
    $region53: #{rgb_encoder_forward.1} parent=1 // pred_fallthru
      _
    // Predicated region
    $region54: #{rgb_encoder_forward.1} parent=1 // pred_check
      _
    $region55: #{rgb_encoder_forward.1} parent=1 // pred_check_branch
      %54 = sbr.rel (0) target = $region57
    $region56: #{rgb_encoder_forward.1} parent=1 // pred_region
      _
    $region57: #{rgb_encoder_forward.1} parent=1 // pred_fallthru
      _
    // Predicated region
    $region58: #{rgb_encoder_forward.1} parent=1 // pred_check
      _
    $region59: #{rgb_encoder_forward.1} parent=1 // pred_check_branch
      %56 = sbr.rel (0) target = $region61
    $region60: #{rgb_encoder_forward.1} parent=1 // pred_region
      _
    $region61: #{rgb_encoder_forward.1} parent=1 // pred_fallthru
      _
    // Predicated region
    $region62: #{rgb_encoder_forward.1} parent=1 // pred_check
      _
    $region63: #{rgb_encoder_forward.1} parent=1 // pred_check_branch
      %58 = sbr.rel (0) target = $region65
    $region64: #{rgb_encoder_forward.1} parent=1 // pred_region
      _
    $region65: #{rgb_encoder_forward.1} parent=1 // pred_fallthru
      _
    // Predicated region
    $region66: #{rgb_encoder_forward.1} parent=1 // pred_check
      _
    $region67: #{rgb_encoder_forward.1} parent=1 // pred_check_branch
      %60 = sbr.rel (0) target = $region69
    $region68: #{rgb_encoder_forward.1} parent=1 // pred_region
      _
    $region69: #{rgb_encoder_forward.1} parent=1 // pred_fallthru
      _
    // Predicated region
    $region70: #{rgb_encoder_forward.1} parent=1 // pred_check
      _
    $region71: #{rgb_encoder_forward.1} parent=1 // pred_check_branch
      %62 = sbr.rel (0) target = $region73
    $region72: #{rgb_encoder_forward.1} parent=1 // pred_region
      _
    $region73: #{rgb_encoder_forward.1} parent=1 // pred_fallthru
      _
    // Predicated region
    $region74: #{rgb_encoder_forward.1} parent=1 // pred_check
      _
    $region75: #{rgb_encoder_forward.1} parent=1 // pred_check_branch
      %64 = sbr.rel (0) target = $region77
    $region76: #{rgb_encoder_forward.1} parent=1 // pred_region
      _
    $region77: #{rgb_encoder_forward.1} parent=1 // pred_fallthru
      _
    // Predicated region
    $region78: #{rgb_encoder_forward.1} parent=1 // pred_check
      _
    $region79: #{rgb_encoder_forward.1} parent=1 // pred_check_branch
      %66 = sbr.rel (0) target = $region81
    $region80: #{rgb_encoder_forward.1} parent=1 // pred_region
      _
    $region81: #{rgb_encoder_forward.1} parent=1 // pred_fallthru
      _
    // Predicated region
    $region82: #{rgb_encoder_forward.1} parent=1 // pred_check
      _
    $region83: #{rgb_encoder_forward.1} parent=1 // pred_check_branch
      %68 = sbr.rel (0) target = $region85
    $region84: #{rgb_encoder_forward.1} parent=1 // pred_region
      _
    $region85: #{rgb_encoder_forward.1} parent=1 // pred_fallthru
      _
    %v70 = vlaneseq
    %v71 = vand.u32 %v70, 127
    %vm72 = vcmp.lt.s32.totalorder %v71, 5
    %v73 = vsel %vm72, 0.0, -1e+09
    %v74 = vld [vmem:[%s0] sm:$0xff]
    %v75 = vld [vmem:[%s0 + $0x8] sm:$0xff]
    %v76 = vld [vmem:[%s0 + $0x10] sm:$0xff]
    %v77 = vld [vmem:[%s0 + $0x18] sm:$0xff]
    %v78 = vpack.c.bf16 %v76, %v74
    %v79 = vpack.c.bf16 %v77, %v75
    %v80 = vld [vmem:[%s1] sm:$0xf]
    %v81 = vld [vmem:[%s1 + $0x4] sm:$0xf]
    %v82 = vld [vmem:[%s1 + $0x8] sm:$0xf]
    %v83 = vld [vmem:[%s1 + $0xc] sm:$0xf]
    %v84 = vld [vmem:[%s1 + $0x10] sm:$0xf]
    %v85 = vld [vmem:[%s1 + $0x14] sm:$0xf]
    %v86 = vld [vmem:[%s1 + $0x18] sm:$0xf]
    %v87 = vld [vmem:[%s1 + $0x1c] sm:$0xf]
    %v88 = vld [vmem:[%s1 + $0x20] sm:$0xf]
    %v89 = vld [vmem:[%s1 + $0x24] sm:$0xf]
    %v90 = vld [vmem:[%s1 + $0x28] sm:$0xf]
    %v91 = vld [vmem:[%s1 + $0x2c] sm:$0xf]
    %v92 = vld [vmem:[%s1 + $0x30] sm:$0xf]
    %v93 = vld [vmem:[%s1 + $0x34] sm:$0xf]
    %v94 = vld [vmem:[%s1 + $0x38] sm:$0xf]
    %v95 = vld [vmem:[%s1 + $0x3c] sm:$0xf]
    %v96 = vld [vmem:[%s1 + $0x40] sm:$0xf]
    %v97 = vld [vmem:[%s1 + $0x44] sm:$0xf]
    %v98 = vld [vmem:[%s1 + $0x48] sm:$0xf]
    %v99 = vld [vmem:[%s1 + $0x4c] sm:$0xf]
    %v100 = vld [vmem:[%s1 + $0x50] sm:$0xf]
    %v101 = vld [vmem:[%s1 + $0x54] sm:$0xf]
    %v102 = vld [vmem:[%s1 + $0x58] sm:$0xf]
    %v103 = vld [vmem:[%s1 + $0x5c] sm:$0xf]
    %v104 = vld [vmem:[%s1 + $0x60] sm:$0xf]
    %v105 = vld [vmem:[%s1 + $0x64] sm:$0xf]
    %v106 = vld [vmem:[%s1 + $0x68] sm:$0xf]
    %v107 = vld [vmem:[%s1 + $0x6c] sm:$0xf]
    %v108 = vld [vmem:[%s1 + $0x70] sm:$0xf]
    %v109 = vld [vmem:[%s1 + $0x74] sm:$0xf]
    %v110 = vld [vmem:[%s1 + $0x78] sm:$0xf]
    %v111 = vld [vmem:[%s1 + $0x7c] sm:$0xf]
    %v144 = vunpack.c.l.b16 %v80
    %v145 = vunpack.c.l.b16 %v81
    %v146 = vunpack.c.l.b16 %v82
    %v147 = vunpack.c.l.b16 %v83
    %v148 = vunpack.c.l.b16 %v84
    %v149 = vunpack.c.l.b16 %v85
    %v150 = vunpack.c.l.b16 %v86
    %v151 = vunpack.c.l.b16 %v87
    %v152 = vunpack.c.l.b16 %v88
    %v153 = vunpack.c.l.b16 %v89
    %v154 = vunpack.c.l.b16 %v90
    %v155 = vunpack.c.l.b16 %v91
    %v156 = vunpack.c.l.b16 %v92
    %v157 = vunpack.c.l.b16 %v93
    %v158 = vunpack.c.l.b16 %v94
    %v159 = vunpack.c.l.b16 %v95
    %v160 = vunpack.c.l.b16 %v96
    %v161 = vunpack.c.l.b16 %v97
    %v162 = vunpack.c.l.b16 %v98
    %v163 = vunpack.c.l.b16 %v99
    %v164 = vunpack.c.l.b16 %v100
    %v165 = vunpack.c.l.b16 %v101
    %v166 = vunpack.c.l.b16 %v102
    %v167 = vunpack.c.l.b16 %v103
    %v168 = vunpack.c.l.b16 %v104
    %v169 = vunpack.c.l.b16 %v105
    %v170 = vunpack.c.l.b16 %v106
    %v171 = vunpack.c.l.b16 %v107
    %v172 = vunpack.c.l.b16 %v108
    %v173 = vunpack.c.l.b16 %v109
    %v174 = vunpack.c.l.b16 %v110
    %v175 = vunpack.c.l.b16 %v111
    %v176 = vpack.c.b16 %v145, %v144
    %v177 = vpack.c.b16 %v147, %v146
    %v178 = vpack.c.b16 %v149, %v148
    %v179 = vpack.c.b16 %v151, %v150
    %v180 = vpack.c.b16 %v153, %v152
    %v181 = vpack.c.b16 %v155, %v154
    %v182 = vpack.c.b16 %v157, %v156
    %v183 = vpack.c.b16 %v159, %v158
    %v184 = vpack.c.b16 %v161, %v160
    %v185 = vpack.c.b16 %v163, %v162
    %v186 = vpack.c.b16 %v165, %v164
    %v187 = vpack.c.b16 %v167, %v166
    %v188 = vpack.c.b16 %v169, %v168
    %v189 = vpack.c.b16 %v171, %v170
    %v190 = vpack.c.b16 %v173, %v172
    %v191 = vpack.c.b16 %v175, %v174
    %208 = vmatprep.subr.bf16.mxu0 0
    %209 = vmatpush1.bf16.msra.mxu0 %v176
    %210 = vmatprep.subr.bf16.mxu0 0
    %211 = vmatpush1.bf16.msra.mxu0 %v177
    %212 = vmatprep.subr.bf16.mxu0 0
    %213 = vmatpush1.bf16.msra.mxu0 %v178
    %214 = vmatprep.subr.bf16.mxu0 0
    %215 = vmatpush1.bf16.msra.mxu0 %v179
    %216 = vmatprep.subr.bf16.mxu0 0
    %217 = vmatpush1.bf16.msra.mxu0 %v180
    %218 = vmatprep.subr.bf16.mxu0 0
    %219 = vmatpush1.bf16.msra.mxu0 %v181
    %220 = vmatprep.subr.bf16.mxu0 0
    %221 = vmatpush1.bf16.msra.mxu0 %v182
    %222 = vmatprep.subr.bf16.mxu0 0
    %223 = vmatpush1.bf16.msra.mxu0 %v183
    %224 = vmatprep.subr.bf16.mxu0 0
    %225 = vmatpush1.bf16.msra.mxu0 %v184
    %226 = vmatprep.subr.bf16.mxu0 0
    %227 = vmatpush1.bf16.msra.mxu0 %v185
    %228 = vmatprep.subr.bf16.mxu0 0
    %229 = vmatpush1.bf16.msra.mxu0 %v186
    %230 = vmatprep.subr.bf16.mxu0 0
    %231 = vmatpush1.bf16.msra.mxu0 %v187
    %232 = vmatprep.subr.bf16.mxu0 0
    %233 = vmatpush1.bf16.msra.mxu0 %v188
    %234 = vmatprep.subr.bf16.mxu0 0
    %235 = vmatpush1.bf16.msra.mxu0 %v189
    %236 = vmatprep.subr.bf16.mxu0 0
    %237 = vmatpush1.bf16.msra.mxu0 %v190
    %238 = vmatprep.subr.bf16.mxu0 0
    %239 = vmatpush1.bf16.msra.mxu0 %v191
    %240 = vmatprep.mubr.bf16.mxu0 %v79
    %241 = vmatmul.mubr.bf16.gmra.mrb[0].mxu0 %v78
    %v242 = vpop.f32.mrb[0].mxu0
    %v243 = vadd.f32 0.0, %v242
    %v244 = vpop.f32.mrb[0].mxu0
    %v245 = vpop.f32.mrb[0].mxu0
    %v246 = vadd.f32 0.0, %v245
    %v247 = vpop.f32.mrb[0].mxu0
    %248 = vdwg.mxu0
    %v249 = vld [vmem:[%s2] sm:$0xff]
    %v250 = vadd.f32 %v243, %v249
    %v251 = vadd.f32 %v246, %v249
    %v252 = vld [vmem:[%s3] sm:$0x1]
    %v253 = vld [vmem:[%s4] sm:$0x1]
    %vm254 = vcmask 523264
    %v255 = vsel %vm254, %v250, 0.0
    %256 = vadd.xlane.f32.xlu0 %v255
    %v257 = vpop.xlane.xlu0 %256
    %v258 = vsel %vm254, %v251, 0.0
    %259 = vadd.xlane.f32.xlu0 %v258
    %v260 = vpop.xlane.xlu0 %259
    %v261 = vrcp.pop 64.0
    %v262 = vmul.f32 %v257, %v261
    %v263 = vmul.f32 %v260, %v261
    %v264 = vsub.f32 %v250, %v262
    %v265 = vsub.f32 %v251, %v263
    %v266 = vmul.f32 %v264, %v264
    %v267 = vmul.f32 %v265, %v265
    %v268 = vsel %vm254, %v266, 0.0
    %269 = vadd.xlane.f32.xlu0 %v268
    %v270 = vpop.xlane.xlu0 %269
    %v271 = vsel %vm254, %v267, 0.0
    %272 = vadd.xlane.f32.xlu0 %v271
    %v273 = vpop.xlane.xlu0 %272
    %v274 = vmul.f32 %v270, %v261
    %v275 = vmul.f32 %v273, %v261
    %v276 = vadd.f32 %v274, 1e-05
    %v277 = vadd.f32 %v275, 1e-05
    %v278 = vrsqrt.pop %v276
    %v279 = vrsqrt.pop %v277
    %v280 = vmul.f32 %v264, %v278
    %v281 = vmul.f32 %v265, %v279
    %v283 = vlaneseq
    %v284 = vshrl.u32 %v283, 7
    %v285 = vsub.s32 0, %v284
    %v286 = vrot.slane %v252, %v285
    %v288 = vmul.f32 %v280, %v286
    %v289 = vmul.f32 %v281, %v286
    %v291 = vlaneseq
    %v292 = vshrl.u32 %v291, 7
    %v293 = vsub.s32 0, %v292
    %v294 = vrot.slane %v253, %v293
    %v296 = vadd.f32 %v288, %v294
    %v297 = vadd.f32 %v289, %v294
    %v298 = vld [vmem:[%s5] sm:$0x1]
    %v299 = vld [vmem:[%s6] sm:$0x1]
    %v300 = vsel %vm254, %v296, 0.0
    %301 = vadd.xlane.f32.xlu0 %v300
    %v302 = vpop.xlane.xlu0 %301
    %v303 = vsel %vm254, %v297, 0.0
    %304 = vadd.xlane.f32.xlu0 %v303
    %v305 = vpop.xlane.xlu0 %304
    %v306 = vmul.f32 %v302, %v261
    %v307 = vmul.f32 %v305, %v261
    %v308 = vsub.f32 %v296, %v306
    %v309 = vsub.f32 %v297, %v307
    %v310 = vmul.f32 %v308, %v308
    %v311 = vmul.f32 %v309, %v309
    %v312 = vsel %vm254, %v310, 0.0
    %313 = vadd.xlane.f32.xlu0 %v312
    %v314 = vpop.xlane.xlu0 %313
    %v315 = vsel %vm254, %v311, 0.0
    %316 = vadd.xlane.f32.xlu0 %v315
    %v317 = vpop.xlane.xlu0 %316
    %v318 = vmul.f32 %v314, %v261
    %v319 = vmul.f32 %v317, %v261
    %v320 = vadd.f32 %v318, 1e-05
    %v321 = vadd.f32 %v319, 1e-05
    %v322 = vrsqrt.pop %v320
    %v323 = vrsqrt.pop %v321
    %v324 = vmul.f32 %v308, %v322
    %v325 = vmul.f32 %v309, %v323
    %v327 = vlaneseq
    %v328 = vshrl.u32 %v327, 7
    %v329 = vsub.s32 0, %v328
    %v330 = vrot.slane %v298, %v329
    %v332 = vmul.f32 %v324, %v330
    %v333 = vmul.f32 %v325, %v330
    %v335 = vlaneseq
    %v336 = vshrl.u32 %v335, 7
    %v337 = vsub.s32 0, %v336
    %v338 = vrot.slane %v299, %v337
    %v340 = vadd.f32 %v332, %v338
    %v341 = vadd.f32 %v333, %v338
    %v342 = vpack.c.bf16 %v341, %v340
    %v343 = vld [vmem:[%s7] sm:$0xff]
    %v344 = vld [vmem:[%s7 + $0x8] sm:$0xff]
    %v345 = vld [vmem:[%s7 + $0x10] sm:$0xff]
    %v346 = vld [vmem:[%s7 + $0x18] sm:$0xff]
    %v347 = vld [vmem:[%s7 + $0x20] sm:$0xff]
    %v348 = vld [vmem:[%s7 + $0x28] sm:$0xff]
    %v349 = vld [vmem:[%s7 + $0x30] sm:$0xff]
    %v350 = vld [vmem:[%s7 + $0x38] sm:$0xff]
    %v351 = vld [vmem:[%s8] sm:$0x3]
    %v353 = vlaneseq
    %v354 = vshrl.u32 %v353, 7
    %v355 = vsub.s32 0, %v354
    %v356 = vrot.slane %v351, %v355
    %v357 = vlaneseq
    %v358 = vshrl.u32 %v357, 7
    %v359 = vsub.s32 1, %v358
    %v360 = vrot.slane %v351, %v359
    %v371 = vunpack.c.l.b16 %v343
    %v372 = vunpack.c.h.b16 %v343
    %v373 = vunpack.c.l.b16 %v344
    %v374 = vunpack.c.h.b16 %v344
    %v375 = vunpack.c.l.b16 %v345
    %v376 = vunpack.c.h.b16 %v345
    %v377 = vunpack.c.l.b16 %v346
    %v378 = vunpack.c.h.b16 %v346
    %v379 = vunpack.c.l.b16 %v347
    %v380 = vunpack.c.h.b16 %v347
    %v381 = vunpack.c.l.b16 %v348
    %v382 = vunpack.c.h.b16 %v348
    %v383 = vunpack.c.l.b16 %v349
    %v384 = vunpack.c.h.b16 %v349
    %v385 = vunpack.c.l.b16 %v350
    %v386 = vunpack.c.h.b16 %v350
    %v387 = vpack.c.b16 %v373, %v371
    %v388 = vpack.c.b16 %v374, %v372
    %v389 = vpack.c.b16 %v377, %v375
    %v390 = vpack.c.b16 %v378, %v376
    %v391 = vpack.c.b16 %v381, %v379
    %v392 = vpack.c.b16 %v382, %v380
    %v393 = vpack.c.b16 %v385, %v383
    %v394 = vpack.c.b16 %v386, %v384
    %v404 = vsel %vm254, %v342, 0
    %406 = vmatprep.subr.bf16.mxu0 %v388
    %407 = vmatpush1.bf16.msra.mxu0 %v387
    %408 = vmatprep.subr.bf16.mxu0 %v390
    %409 = vmatpush1.bf16.msra.mxu0 %v389
    %410 = vmatprep.subr.bf16.mxu0 %v392
    %411 = vmatpush1.bf16.msra.mxu0 %v391
    %412 = vmatprep.subr.bf16.mxu0 %v394
    %413 = vmatpush1.bf16.msra.mxu0 %v393
    %414 = vmatprep.subr.bf16.mxu0 0
    %415 = vmatpush1.bf16.msra.mxu0 0
    %416 = vmatprep.subr.bf16.mxu0 0
    %417 = vmatpush1.bf16.msra.mxu0 0
    %418 = vmatprep.subr.bf16.mxu0 0
    %419 = vmatpush1.bf16.msra.mxu0 0
    %420 = vmatprep.subr.bf16.mxu0 0
    %421 = vmatpush1.bf16.msra.mxu0 0
    %422 = vmatprep.subr.bf16.mxu0 0
    %423 = vmatpush1.bf16.msra.mxu0 0
    %424 = vmatprep.subr.bf16.mxu0 0
    %425 = vmatpush1.bf16.msra.mxu0 0
    %426 = vmatprep.subr.bf16.mxu0 0
    %427 = vmatpush1.bf16.msra.mxu0 0
    %428 = vmatprep.subr.bf16.mxu0 0
    %429 = vmatpush1.bf16.msra.mxu0 0
    %430 = vmatprep.subr.bf16.mxu0 0
    %431 = vmatpush1.bf16.msra.mxu0 0
    %432 = vmatprep.subr.bf16.mxu0 0
    %433 = vmatpush1.bf16.msra.mxu0 0
    %434 = vmatprep.subr.bf16.mxu0 0
    %435 = vmatpush1.bf16.msra.mxu0 0
    %436 = vmatprep.subr.bf16.mxu0 0
    %437 = vmatpush1.bf16.msra.mxu0 0
    %438 = vmatprep.mubr.bf16.mxu0 0
    %439 = vmatmul.mubr.bf16.gmra.mrb[0].mxu0 %v404
    %v440 = vpop.f32.mrb[0].mxu0
    %v441 = vadd.f32 %v356, %v440
    %v442 = vpop.f32.mrb[0].mxu0
    %v443 = vadd.f32 %v360, %v442
    %v444 = vpop.f32.mrb[0].mxu0
    %v445 = vadd.f32 %v356, %v444
    %v446 = vpop.f32.mrb[0].mxu0
    %v447 = vadd.f32 %v360, %v446
    %448 = vdwg.mxu0
    %v449 = vpack.c.bf16 %v441, %v441
    %v450 = vpack.c.bf16 %v445, %v445
    %452 = vrot.lane.b32.xlu0 %v449, 64
    %v453 = vpop.permute.xlu0 %452
    %vm454 = vcmask 130048
    %v456 = vsel %vm454, %v449, 0
    %v459 = vsel %vm454, %v453, 0
    %461 = vmatprep.subr.bf16.mxu0 0
    %462 = vmatpush1.bf16.xpose.msra.mxu0 %v459
    %463 = vmatprep.subr.bf16.mxu0 0
    %464 = vmatpush1.bf16.xpose.msra.mxu0 0
    %465 = vmatprep.subr.bf16.mxu0 0
    %466 = vmatpush1.bf16.xpose.msra.mxu0 0
    %467 = vmatprep.subr.bf16.mxu0 0
    %468 = vmatpush1.bf16.xpose.msra.mxu0 0
    %469 = vmatprep.subr.bf16.mxu0 0
    %470 = vmatpush1.bf16.xpose.msra.mxu0 0
    %471 = vmatprep.subr.bf16.mxu0 0
    %472 = vmatpush1.bf16.xpose.msra.mxu0 0
    %473 = vmatprep.subr.bf16.mxu0 0
    %474 = vmatpush1.bf16.xpose.msra.mxu0 0
    %475 = vmatprep.subr.bf16.mxu0 0
    %476 = vmatpush1.bf16.xpose.msra.mxu0 0
    %477 = vmatprep.subr.bf16.mxu0 0
    %478 = vmatpush1.bf16.xpose.msra.mxu0 0
    %479 = vmatprep.subr.bf16.mxu0 0
    %480 = vmatpush1.bf16.xpose.msra.mxu0 0
    %481 = vmatprep.subr.bf16.mxu0 0
    %482 = vmatpush1.bf16.xpose.msra.mxu0 0
    %483 = vmatprep.subr.bf16.mxu0 0
    %484 = vmatpush1.bf16.xpose.msra.mxu0 0
    %485 = vmatprep.subr.bf16.mxu0 0
    %486 = vmatpush1.bf16.xpose.msra.mxu0 0
    %487 = vmatprep.subr.bf16.mxu0 0
    %488 = vmatpush1.bf16.xpose.msra.mxu0 0
    %489 = vmatprep.subr.bf16.mxu0 0
    %490 = vmatpush1.bf16.xpose.msra.mxu0 0
    %491 = vmatprep.subr.bf16.mxu0 0
    %492 = vmatpush1.bf16.xpose.msra.mxu0 0
    %493 = vmatprep.mubr.bf16.mxu0 0
    %494 = vmatmul.mubr.bf16.gmra.mrb[0].mxu0 %v456
    %v495 = vpop.f32.mrb[0].mxu0
    %v496 = vadd.f32 %v73, %v495
    %v497 = vpop.f32.mrb[0].mxu0
    %v498 = vpop.f32.mrb[0].mxu0
    %v499 = vpop.f32.mrb[0].mxu0
    %500 = vdwg.mxu0
    %502 = vrot.lane.b32.xlu0 %v450, 64
    %v503 = vpop.permute.xlu0 %502
    %v505 = vsel %vm454, %v450, 0
    %v508 = vsel %vm454, %v503, 0
    %510 = vmatprep.subr.bf16.mxu0 0
    %511 = vmatpush1.bf16.xpose.msra.mxu0 %v508
    %512 = vmatprep.subr.bf16.mxu0 0
    %513 = vmatpush1.bf16.xpose.msra.mxu0 0
    %514 = vmatprep.subr.bf16.mxu0 0
    %515 = vmatpush1.bf16.xpose.msra.mxu0 0
    %516 = vmatprep.subr.bf16.mxu0 0
    %517 = vmatpush1.bf16.xpose.msra.mxu0 0
    %518 = vmatprep.subr.bf16.mxu0 0
    %519 = vmatpush1.bf16.xpose.msra.mxu0 0
    %520 = vmatprep.subr.bf16.mxu0 0
    %521 = vmatpush1.bf16.xpose.msra.mxu0 0
    %522 = vmatprep.subr.bf16.mxu0 0
    %523 = vmatpush1.bf16.xpose.msra.mxu0 0
    %524 = vmatprep.subr.bf16.mxu0 0
    %525 = vmatpush1.bf16.xpose.msra.mxu0 0
    %526 = vmatprep.subr.bf16.mxu0 0
    %527 = vmatpush1.bf16.xpose.msra.mxu0 0
    %528 = vmatprep.subr.bf16.mxu0 0
    %529 = vmatpush1.bf16.xpose.msra.mxu0 0
    %530 = vmatprep.subr.bf16.mxu0 0
    %531 = vmatpush1.bf16.xpose.msra.mxu0 0
    %532 = vmatprep.subr.bf16.mxu0 0
    %533 = vmatpush1.bf16.xpose.msra.mxu0 0
    %534 = vmatprep.subr.bf16.mxu0 0
    %535 = vmatpush1.bf16.xpose.msra.mxu0 0
    %536 = vmatprep.subr.bf16.mxu0 0
    %537 = vmatpush1.bf16.xpose.msra.mxu0 0
    %538 = vmatprep.subr.bf16.mxu0 0
    %539 = vmatpush1.bf16.xpose.msra.mxu0 0
    %540 = vmatprep.subr.bf16.mxu0 0
    %541 = vmatpush1.bf16.xpose.msra.mxu0 0
    %542 = vmatprep.mubr.bf16.mxu0 0
    %543 = vmatmul.mubr.bf16.gmra.mrb[0].mxu0 %v505
    %v544 = vpop.f32.mrb[0].mxu0
    %v545 = vadd.f32 %v73, %v544
    %v546 = vpop.f32.mrb[0].mxu0
    %v547 = vpop.f32.mrb[0].mxu0
    %v548 = vpop.f32.mrb[0].mxu0
    %549 = vdwg.mxu0
    %vm550 = vcmask 64512
    %v551 = vsel %vm550, %v496, -inf
    %552 = vmax.xlane.f32.xlu0 %v551
    %v553 = vpop.xlane.xlu0 %552
    %v554 = vsel %vm550, %v545, -inf
    %555 = vmax.xlane.f32.xlu0 %v554
    %v556 = vpop.xlane.xlu0 %555
    %v557 = vsub.f32 %v496, %v553
    %v558 = vsub.f32 %v545, %v556
    %v559 = vmul.f32 %v557, 1.442695
    %v560 = vpow.pop %v559
    %v561 = vmul.f32 %v558, 1.442695
    %v562 = vpow.pop %v561
    %v563 = vsel %vm550, %v560, 0.0
    %564 = vadd.xlane.f32.xlu0 %v563
    %v565 = vpop.xlane.xlu0 %564
    %v566 = vsel %vm550, %v562, 0.0
    %567 = vadd.xlane.f32.xlu0 %v566
    %v568 = vpop.xlane.xlu0 %567
    %v569 = vrcp.pop %v565
    %v570 = vrcp.pop %v568
    %v571 = vmul.f32 %v560, %v569
    %v572 = vmul.f32 %v562, %v570
    %v573 = vpack.c.bf16 %v571, %v571
    %v574 = vpack.c.bf16 %v572, %v572
    %v575 = vpack.c.bf16 %v443, %v443
    %v576 = vpack.c.bf16 %v447, %v447
    %v578 = vsel %vm550, %v573, 0
    %vm580 = vcmask 1043456
    %v582 = vsel %vm580, %v575, 0
    %584 = vmatprep.subr.bf16.mxu0 0
    %585 = vmatpush1.bf16.msra.mxu0 %v582
    %586 = vmatprep.subr.bf16.mxu0 0
    %587 = vmatpush1.bf16.msra.mxu0 0
    %588 = vmatprep.subr.bf16.mxu0 0
    %589 = vmatpush1.bf16.msra.mxu0 0
    %590 = vmatprep.subr.bf16.mxu0 0
    %591 = vmatpush1.bf16.msra.mxu0 0
    %592 = vmatprep.subr.bf16.mxu0 0
    %593 = vmatpush1.bf16.msra.mxu0 0
    %594 = vmatprep.subr.bf16.mxu0 0
    %595 = vmatpush1.bf16.msra.mxu0 0
    %596 = vmatprep.subr.bf16.mxu0 0
    %597 = vmatpush1.bf16.msra.mxu0 0
    %598 = vmatprep.subr.bf16.mxu0 0
    %599 = vmatpush1.bf16.msra.mxu0 0
    %600 = vmatprep.subr.bf16.mxu0 0
    %601 = vmatpush1.bf16.msra.mxu0 0
    %602 = vmatprep.subr.bf16.mxu0 0
    %603 = vmatpush1.bf16.msra.mxu0 0
    %604 = vmatprep.subr.bf16.mxu0 0
    %605 = vmatpush1.bf16.msra.mxu0 0
    %606 = vmatprep.subr.bf16.mxu0 0
    %607 = vmatpush1.bf16.msra.mxu0 0
    %608 = vmatprep.subr.bf16.mxu0 0
    %609 = vmatpush1.bf16.msra.mxu0 0
    %610 = vmatprep.subr.bf16.mxu0 0
    %611 = vmatpush1.bf16.msra.mxu0 0
    %612 = vmatprep.subr.bf16.mxu0 0
    %613 = vmatpush1.bf16.msra.mxu0 0
    %614 = vmatprep.subr.bf16.mxu0 0
    %615 = vmatpush1.bf16.msra.mxu0 0
    %616 = vmatprep.mubr.bf16.mxu0 0
    %617 = vmatmul.mubr.bf16.gmra.mrb[0].mxu0 %v578
    %v618 = vpop.f32.mrb[0].mxu0
    %v619 = vadd.f32 0.0, %v618
    %v620 = vpop.f32.mrb[0].mxu0
    %v621 = vpop.f32.mrb[0].mxu0
    %v622 = vpop.f32.mrb[0].mxu0
    %623 = vdwg.mxu0
    %v625 = vsel %vm550, %v574, 0
    %v628 = vsel %vm580, %v576, 0
    %630 = vmatprep.subr.bf16.mxu0 0
    %631 = vmatpush1.bf16.msra.mxu0 %v628
    %632 = vmatprep.subr.bf16.mxu0 0
    %633 = vmatpush1.bf16.msra.mxu0 0
    %634 = vmatprep.subr.bf16.mxu0 0
    %635 = vmatpush1.bf16.msra.mxu0 0
    %636 = vmatprep.subr.bf16.mxu0 0
    %637 = vmatpush1.bf16.msra.mxu0 0
    %638 = vmatprep.subr.bf16.mxu0 0
    %639 = vmatpush1.bf16.msra.mxu0 0
    %640 = vmatprep.subr.bf16.mxu0 0
    %641 = vmatpush1.bf16.msra.mxu0 0
    %642 = vmatprep.subr.bf16.mxu0 0
    %643 = vmatpush1.bf16.msra.mxu0 0
    %644 = vmatprep.subr.bf16.mxu0 0
    %645 = vmatpush1.bf16.msra.mxu0 0
    %646 = vmatprep.subr.bf16.mxu0 0
    %647 = vmatpush1.bf16.msra.mxu0 0
    %648 = vmatprep.subr.bf16.mxu0 0
    %649 = vmatpush1.bf16.msra.mxu0 0
    %650 = vmatprep.subr.bf16.mxu0 0
    %651 = vmatpush1.bf16.msra.mxu0 0
    %652 = vmatprep.subr.bf16.mxu0 0
    %653 = vmatpush1.bf16.msra.mxu0 0
    %654 = vmatprep.subr.bf16.mxu0 0
    %655 = vmatpush1.bf16.msra.mxu0 0
    %656 = vmatprep.subr.bf16.mxu0 0
    %657 = vmatpush1.bf16.msra.mxu0 0
    %658 = vmatprep.subr.bf16.mxu0 0
    %659 = vmatpush1.bf16.msra.mxu0 0
    %660 = vmatprep.subr.bf16.mxu0 0
    %661 = vmatpush1.bf16.msra.mxu0 0
    %662 = vmatprep.mubr.bf16.mxu0 0
    %663 = vmatmul.mubr.bf16.gmra.mrb[0].mxu0 %v625
    %v664 = vpop.f32.mrb[0].mxu0
    %v665 = vadd.f32 0.0, %v664
    %v666 = vpop.f32.mrb[0].mxu0
    %v667 = vpop.f32.mrb[0].mxu0
    %v668 = vpop.f32.mrb[0].mxu0
    %669 = vdwg.mxu0
    %670 = vrot.lane.b32.xlu0 %v449, 112
    %v671 = vpop.permute.xlu0 %670
    %672 = vrot.lane.b32.xlu0 %v449, 48
    %v673 = vpop.permute.xlu0 %672
    %v675 = vsel %vm454, %v671, 0
    %v678 = vsel %vm454, %v673, 0
    %680 = vmatprep.subr.bf16.mxu0 0
    %681 = vmatpush1.bf16.xpose.msra.mxu0 %v678
    %682 = vmatprep.subr.bf16.mxu0 0
    %683 = vmatpush1.bf16.xpose.msra.mxu0 0
    %684 = vmatprep.subr.bf16.mxu0 0
    %685 = vmatpush1.bf16.xpose.msra.mxu0 0
    %686 = vmatprep.subr.bf16.mxu0 0
    %687 = vmatpush1.bf16.xpose.msra.mxu0 0
    %688 = vmatprep.subr.bf16.mxu0 0
    %689 = vmatpush1.bf16.xpose.msra.mxu0 0
    %690 = vmatprep.subr.bf16.mxu0 0
    %691 = vmatpush1.bf16.xpose.msra.mxu0 0
    %692 = vmatprep.subr.bf16.mxu0 0
    %693 = vmatpush1.bf16.xpose.msra.mxu0 0
    %694 = vmatprep.subr.bf16.mxu0 0
    %695 = vmatpush1.bf16.xpose.msra.mxu0 0
    %696 = vmatprep.subr.bf16.mxu0 0
    %697 = vmatpush1.bf16.xpose.msra.mxu0 0
    %698 = vmatprep.subr.bf16.mxu0 0
    %699 = vmatpush1.bf16.xpose.msra.mxu0 0
    %700 = vmatprep.subr.bf16.mxu0 0
    %701 = vmatpush1.bf16.xpose.msra.mxu0 0
    %702 = vmatprep.subr.bf16.mxu0 0
    %703 = vmatpush1.bf16.xpose.msra.mxu0 0
    %704 = vmatprep.subr.bf16.mxu0 0
    %705 = vmatpush1.bf16.xpose.msra.mxu0 0
    %706 = vmatprep.subr.bf16.mxu0 0
    %707 = vmatpush1.bf16.xpose.msra.mxu0 0
    %708 = vmatprep.subr.bf16.mxu0 0
    %709 = vmatpush1.bf16.xpose.msra.mxu0 0
    %710 = vmatprep.subr.bf16.mxu0 0
    %711 = vmatpush1.bf16.xpose.msra.mxu0 0
    %712 = vmatprep.mubr.bf16.mxu0 0
    %713 = vmatmul.mubr.bf16.gmra.mrb[0].mxu0 %v675
    %v714 = vpop.f32.mrb[0].mxu0
    %v715 = vadd.f32 %v73, %v714
    %v716 = vpop.f32.mrb[0].mxu0
    %v717 = vpop.f32.mrb[0].mxu0
    %v718 = vpop.f32.mrb[0].mxu0
    %719 = vdwg.mxu0
    %720 = vrot.lane.b32.xlu0 %v450, 112
    %v721 = vpop.permute.xlu0 %720
    %722 = vrot.lane.b32.xlu0 %v450, 48
    %v723 = vpop.permute.xlu0 %722
    %v725 = vsel %vm454, %v721, 0
    %v728 = vsel %vm454, %v723, 0
    %730 = vmatprep.subr.bf16.mxu0 0
    %731 = vmatpush1.bf16.xpose.msra.mxu0 %v728
    %732 = vmatprep.subr.bf16.mxu0 0
    %733 = vmatpush1.bf16.xpose.msra.mxu0 0
    %734 = vmatprep.subr.bf16.mxu0 0
    %735 = vmatpush1.bf16.xpose.msra.mxu0 0
    %736 = vmatprep.subr.bf16.mxu0 0
    %737 = vmatpush1.bf16.xpose.msra.mxu0 0
    %738 = vmatprep.subr.bf16.mxu0 0
    %739 = vmatpush1.bf16.xpose.msra.mxu0 0
    %740 = vmatprep.subr.bf16.mxu0 0
    %741 = vmatpush1.bf16.xpose.msra.mxu0 0
    %742 = vmatprep.subr.bf16.mxu0 0
    %743 = vmatpush1.bf16.xpose.msra.mxu0 0
    %744 = vmatprep.subr.bf16.mxu0 0
    %745 = vmatpush1.bf16.xpose.msra.mxu0 0
    %746 = vmatprep.subr.bf16.mxu0 0
    %747 = vmatpush1.bf16.xpose.msra.mxu0 0
    %748 = vmatprep.subr.bf16.mxu0 0
    %749 = vmatpush1.bf16.xpose.msra.mxu0 0
    %750 = vmatprep.subr.bf16.mxu0 0
    %751 = vmatpush1.bf16.xpose.msra.mxu0 0
    %752 = vmatprep.subr.bf16.mxu0 0
    %753 = vmatpush1.bf16.xpose.msra.mxu0 0
    %754 = vmatprep.subr.bf16.mxu0 0
    %755 = vmatpush1.bf16.xpose.msra.mxu0 0
    %756 = vmatprep.subr.bf16.mxu0 0
    %757 = vmatpush1.bf16.xpose.msra.mxu0 0
    %758 = vmatprep.subr.bf16.mxu0 0
    %759 = vmatpush1.bf16.xpose.msra.mxu0 0
    %760 = vmatprep.subr.bf16.mxu0 0
    %761 = vmatpush1.bf16.xpose.msra.mxu0 0
    %762 = vmatprep.mubr.bf16.mxu0 0
    %763 = vmatmul.mubr.bf16.gmra.mrb[0].mxu0 %v725
    %v764 = vpop.f32.mrb[0].mxu0
    %v765 = vadd.f32 %v73, %v764
    %v766 = vpop.f32.mrb[0].mxu0
    %v767 = vpop.f32.mrb[0].mxu0
    %v768 = vpop.f32.mrb[0].mxu0
    %769 = vdwg.mxu0
    %v770 = vsel %vm550, %v715, -inf
    %771 = vmax.xlane.f32.xlu0 %v770
    %v772 = vpop.xlane.xlu0 %771
    %v773 = vsel %vm550, %v765, -inf
    %774 = vmax.xlane.f32.xlu0 %v773
    %v775 = vpop.xlane.xlu0 %774
    %v776 = vsub.f32 %v715, %v772
    %v777 = vsub.f32 %v765, %v775
    %v778 = vmul.f32 %v776, 1.442695
    %v779 = vpow.pop %v778
    %v780 = vmul.f32 %v777, 1.442695
    %v781 = vpow.pop %v780
    %v782 = vsel %vm550, %v779, 0.0
    %783 = vadd.xlane.f32.xlu0 %v782
    %v784 = vpop.xlane.xlu0 %783
    %v785 = vsel %vm550, %v781, 0.0
    %786 = vadd.xlane.f32.xlu0 %v785
    %v787 = vpop.xlane.xlu0 %786
    %v788 = vrcp.pop %v784
    %v789 = vrcp.pop %v787
    %v790 = vmul.f32 %v779, %v788
    %v791 = vmul.f32 %v781, %v789
    %v792 = vpack.c.bf16 %v790, %v790
    %v793 = vpack.c.bf16 %v791, %v791
    %795 = vrot.lane.b32.xlu0 %v575, 112
    %v796 = vpop.permute.xlu0 %795
    %v798 = vsel %vm550, %v792, 0
    %v801 = vsel %vm580, %v796, 0
    %803 = vmatprep.subr.bf16.mxu0 0
    %804 = vmatpush1.bf16.msra.mxu0 %v801
    %805 = vmatprep.subr.bf16.mxu0 0
    %806 = vmatpush1.bf16.msra.mxu0 0
    %807 = vmatprep.subr.bf16.mxu0 0
    %808 = vmatpush1.bf16.msra.mxu0 0
    %809 = vmatprep.subr.bf16.mxu0 0
    %810 = vmatpush1.bf16.msra.mxu0 0
    %811 = vmatprep.subr.bf16.mxu0 0
    %812 = vmatpush1.bf16.msra.mxu0 0
    %813 = vmatprep.subr.bf16.mxu0 0
    %814 = vmatpush1.bf16.msra.mxu0 0
    %815 = vmatprep.subr.bf16.mxu0 0
    %816 = vmatpush1.bf16.msra.mxu0 0
    %817 = vmatprep.subr.bf16.mxu0 0
    %818 = vmatpush1.bf16.msra.mxu0 0
    %819 = vmatprep.subr.bf16.mxu0 0
    %820 = vmatpush1.bf16.msra.mxu0 0
    %821 = vmatprep.subr.bf16.mxu0 0
    %822 = vmatpush1.bf16.msra.mxu0 0
    %823 = vmatprep.subr.bf16.mxu0 0
    %824 = vmatpush1.bf16.msra.mxu0 0
    %825 = vmatprep.subr.bf16.mxu0 0
    %826 = vmatpush1.bf16.msra.mxu0 0
    %827 = vmatprep.subr.bf16.mxu0 0
    %828 = vmatpush1.bf16.msra.mxu0 0
    %829 = vmatprep.subr.bf16.mxu0 0
    %830 = vmatpush1.bf16.msra.mxu0 0
    %831 = vmatprep.subr.bf16.mxu0 0
    %832 = vmatpush1.bf16.msra.mxu0 0
    %833 = vmatprep.subr.bf16.mxu0 0
    %834 = vmatpush1.bf16.msra.mxu0 0
    %835 = vmatprep.mubr.bf16.mxu0 0
    %836 = vmatmul.mubr.bf16.gmra.mrb[0].mxu0 %v798
    %v837 = vpop.f32.mrb[0].mxu0
    %v838 = vadd.f32 0.0, %v837
    %v839 = vpop.f32.mrb[0].mxu0
    %v840 = vpop.f32.mrb[0].mxu0
    %v841 = vpop.f32.mrb[0].mxu0
    %842 = vdwg.mxu0
    %844 = vrot.lane.b32.xlu0 %v576, 112
    %v845 = vpop.permute.xlu0 %844
    %v847 = vsel %vm550, %v793, 0
    %v850 = vsel %vm580, %v845, 0
    %852 = vmatprep.subr.bf16.mxu0 0
    %853 = vmatpush1.bf16.msra.mxu0 %v850
    %854 = vmatprep.subr.bf16.mxu0 0
    %855 = vmatpush1.bf16.msra.mxu0 0
    %856 = vmatprep.subr.bf16.mxu0 0
    %857 = vmatpush1.bf16.msra.mxu0 0
    %858 = vmatprep.subr.bf16.mxu0 0
    %859 = vmatpush1.bf16.msra.mxu0 0
    %860 = vmatprep.subr.bf16.mxu0 0
    %861 = vmatpush1.bf16.msra.mxu0 0
    %862 = vmatprep.subr.bf16.mxu0 0
    %863 = vmatpush1.bf16.msra.mxu0 0
    %864 = vmatprep.subr.bf16.mxu0 0
    %865 = vmatpush1.bf16.msra.mxu0 0
    %866 = vmatprep.subr.bf16.mxu0 0
    %867 = vmatpush1.bf16.msra.mxu0 0
    %868 = vmatprep.subr.bf16.mxu0 0
    %869 = vmatpush1.bf16.msra.mxu0 0
    %870 = vmatprep.subr.bf16.mxu0 0
    %871 = vmatpush1.bf16.msra.mxu0 0
    %872 = vmatprep.subr.bf16.mxu0 0
    %873 = vmatpush1.bf16.msra.mxu0 0
    %874 = vmatprep.subr.bf16.mxu0 0
    %875 = vmatpush1.bf16.msra.mxu0 0
    %876 = vmatprep.subr.bf16.mxu0 0
    %877 = vmatpush1.bf16.msra.mxu0 0
    %878 = vmatprep.subr.bf16.mxu0 0
    %879 = vmatpush1.bf16.msra.mxu0 0
    %880 = vmatprep.subr.bf16.mxu0 0
    %881 = vmatpush1.bf16.msra.mxu0 0
    %882 = vmatprep.subr.bf16.mxu0 0
    %883 = vmatpush1.bf16.msra.mxu0 0
    %884 = vmatprep.mubr.bf16.mxu0 0
    %885 = vmatmul.mubr.bf16.gmra.mrb[0].mxu0 %v847
    %v886 = vpop.f32.mrb[0].mxu0
    %v887 = vadd.f32 0.0, %v886
    %v888 = vpop.f32.mrb[0].mxu0
    %v889 = vpop.f32.mrb[0].mxu0
    %v890 = vpop.f32.mrb[0].mxu0
    %891 = vdwg.mxu0
    %892 = vrot.lane.b32.xlu0 %v449, 96
    %v893 = vpop.permute.xlu0 %892
    %894 = vrot.lane.b32.xlu0 %v449, 32
    %v895 = vpop.permute.xlu0 %894
    %v897 = vsel %vm454, %v893, 0
    %v900 = vsel %vm454, %v895, 0
    %902 = vmatprep.subr.bf16.mxu0 0
    %903 = vmatpush1.bf16.xpose.msra.mxu0 %v900
    %904 = vmatprep.subr.bf16.mxu0 0
    %905 = vmatpush1.bf16.xpose.msra.mxu0 0
    %906 = vmatprep.subr.bf16.mxu0 0
    %907 = vmatpush1.bf16.xpose.msra.mxu0 0
    %908 = vmatprep.subr.bf16.mxu0 0
    %909 = vmatpush1.bf16.xpose.msra.mxu0 0
    %910 = vmatprep.subr.bf16.mxu0 0
    %911 = vmatpush1.bf16.xpose.msra.mxu0 0
    %912 = vmatprep.subr.bf16.mxu0 0
    %913 = vmatpush1.bf16.xpose.msra.mxu0 0
    %914 = vmatprep.subr.bf16.mxu0 0
    %915 = vmatpush1.bf16.xpose.msra.mxu0 0
    %916 = vmatprep.subr.bf16.mxu0 0
    %917 = vmatpush1.bf16.xpose.msra.mxu0 0
    %918 = vmatprep.subr.bf16.mxu0 0
    %919 = vmatpush1.bf16.xpose.msra.mxu0 0
    %920 = vmatprep.subr.bf16.mxu0 0
    %921 = vmatpush1.bf16.xpose.msra.mxu0 0
    %922 = vmatprep.subr.bf16.mxu0 0
    %923 = vmatpush1.bf16.xpose.msra.mxu0 0
    %924 = vmatprep.subr.bf16.mxu0 0
    %925 = vmatpush1.bf16.xpose.msra.mxu0 0
    %926 = vmatprep.subr.bf16.mxu0 0
    %927 = vmatpush1.bf16.xpose.msra.mxu0 0
    %928 = vmatprep.subr.bf16.mxu0 0
    %929 = vmatpush1.bf16.xpose.msra.mxu0 0
    %930 = vmatprep.subr.bf16.mxu0 0
    %931 = vmatpush1.bf16.xpose.msra.mxu0 0
    %932 = vmatprep.subr.bf16.mxu0 0
    %933 = vmatpush1.bf16.xpose.msra.mxu0 0
    %934 = vmatprep.mubr.bf16.mxu0 0
    %935 = vmatmul.mubr.bf16.gmra.mrb[0].mxu0 %v897
    %v936 = vpop.f32.mrb[0].mxu0
    %v937 = vadd.f32 %v73, %v936
    %v938 = vpop.f32.mrb[0].mxu0
    %v939 = vpop.f32.mrb[0].mxu0
    %v940 = vpop.f32.mrb[0].mxu0
    %941 = vdwg.mxu0
    %942 = vrot.lane.b32.xlu0 %v450, 96
    %v943 = vpop.permute.xlu0 %942
    %944 = vrot.lane.b32.xlu0 %v450, 32
    %v945 = vpop.permute.xlu0 %944
    %v947 = vsel %vm454, %v943, 0
    %v950 = vsel %vm454, %v945, 0
    %952 = vmatprep.subr.bf16.mxu0 0
    %953 = vmatpush1.bf16.xpose.msra.mxu0 %v950
    %954 = vmatprep.subr.bf16.mxu0 0
    %955 = vmatpush1.bf16.xpose.msra.mxu0 0
    %956 = vmatprep.subr.bf16.mxu0 0
    %957 = vmatpush1.bf16.xpose.msra.mxu0 0
    %958 = vmatprep.subr.bf16.mxu0 0
    %959 = vmatpush1.bf16.xpose.msra.mxu0 0
    %960 = vmatprep.subr.bf16.mxu0 0
    %961 = vmatpush1.bf16.xpose.msra.mxu0 0
    %962 = vmatprep.subr.bf16.mxu0 0
    %963 = vmatpush1.bf16.xpose.msra.mxu0 0
    %964 = vmatprep.subr.bf16.mxu0 0
    %965 = vmatpush1.bf16.xpose.msra.mxu0 0
    %966 = vmatprep.subr.bf16.mxu0 0
    %967 = vmatpush1.bf16.xpose.msra.mxu0 0
    %968 = vmatprep.subr.bf16.mxu0 0
    %969 = vmatpush1.bf16.xpose.msra.mxu0 0
    %970 = vmatprep.subr.bf16.mxu0 0
    %971 = vmatpush1.bf16.xpose.msra.mxu0 0
    %972 = vmatprep.subr.bf16.mxu0 0
    %973 = vmatpush1.bf16.xpose.msra.mxu0 0
    %974 = vmatprep.subr.bf16.mxu0 0
    %975 = vmatpush1.bf16.xpose.msra.mxu0 0
    %976 = vmatprep.subr.bf16.mxu0 0
    %977 = vmatpush1.bf16.xpose.msra.mxu0 0
    %978 = vmatprep.subr.bf16.mxu0 0
    %979 = vmatpush1.bf16.xpose.msra.mxu0 0
    %980 = vmatprep.subr.bf16.mxu0 0
    %981 = vmatpush1.bf16.xpose.msra.mxu0 0
    %982 = vmatprep.subr.bf16.mxu0 0
    %983 = vmatpush1.bf16.xpose.msra.mxu0 0
    %984 = vmatprep.mubr.bf16.mxu0 0
    %985 = vmatmul.mubr.bf16.gmra.mrb[0].mxu0 %v947
    %v986 = vpop.f32.mrb[0].mxu0
    %v987 = vadd.f32 %v73, %v986
    %v988 = vpop.f32.mrb[0].mxu0
    %v989 = vpop.f32.mrb[0].mxu0
    %v990 = vpop.f32.mrb[0].mxu0
    %991 = vdwg.mxu0
    %v992 = vsel %vm550, %v937, -inf
    %993 = vmax.xlane.f32.xlu0 %v992
    %v994 = vpop.xlane.xlu0 %993
    %v995 = vsel %vm550, %v987, -inf
    %996 = vmax.xlane.f32.xlu0 %v995
    %v997 = vpop.xlane.xlu0 %996
    %v998 = vsub.f32 %v937, %v994
    %v999 = vsub.f32 %v987, %v997
    %v1000 = vmul.f32 %v998, 1.442695
    %v1001 = vpow.pop %v1000
    %v1002 = vmul.f32 %v999, 1.442695
    %v1003 = vpow.pop %v1002
    %v1004 = vsel %vm550, %v1001, 0.0
    %1005 = vadd.xlane.f32.xlu0 %v1004
    %v1006 = vpop.xlane.xlu0 %1005
    %v1007 = vsel %vm550, %v1003, 0.0
    %1008 = vadd.xlane.f32.xlu0 %v1007
    %v1009 = vpop.xlane.xlu0 %1008
    %v1010 = vrcp.pop %v1006
    %v1011 = vrcp.pop %v1009
    %v1012 = vmul.f32 %v1001, %v1010
    %v1013 = vmul.f32 %v1003, %v1011
    %v1014 = vpack.c.bf16 %v1012, %v1012
    %v1015 = vpack.c.bf16 %v1013, %v1013
    %1016 = vrot.lane.b32.xlu0 %v575, 96
    %v1017 = vpop.permute.xlu0 %1016
    %v1019 = vsel %vm550, %v1014, 0
    %v1022 = vsel %vm580, %v1017, 0
    %1024 = vmatprep.subr.bf16.mxu0 0
    %1025 = vmatpush1.bf16.msra.mxu0 %v1022
    %1026 = vmatprep.subr.bf16.mxu0 0
    %1027 = vmatpush1.bf16.msra.mxu0 0
    %1028 = vmatprep.subr.bf16.mxu0 0
    %1029 = vmatpush1.bf16.msra.mxu0 0
    %1030 = vmatprep.subr.bf16.mxu0 0
    %1031 = vmatpush1.bf16.msra.mxu0 0
    %1032 = vmatprep.subr.bf16.mxu0 0
    %1033 = vmatpush1.bf16.msra.mxu0 0
    %1034 = vmatprep.subr.bf16.mxu0 0
    %1035 = vmatpush1.bf16.msra.mxu0 0
    %1036 = vmatprep.subr.bf16.mxu0 0
    %1037 = vmatpush1.bf16.msra.mxu0 0
    %1038 = vmatprep.subr.bf16.mxu0 0
    %1039 = vmatpush1.bf16.msra.mxu0 0
    %1040 = vmatprep.subr.bf16.mxu0 0
    %1041 = vmatpush1.bf16.msra.mxu0 0
    %1042 = vmatprep.subr.bf16.mxu0 0
    %1043 = vmatpush1.bf16.msra.mxu0 0
    %1044 = vmatprep.subr.bf16.mxu0 0
    %1045 = vmatpush1.bf16.msra.mxu0 0
    %1046 = vmatprep.subr.bf16.mxu0 0
    %1047 = vmatpush1.bf16.msra.mxu0 0
    %1048 = vmatprep.subr.bf16.mxu0 0
    %1049 = vmatpush1.bf16.msra.mxu0 0
    %1050 = vmatprep.subr.bf16.mxu0 0
    %1051 = vmatpush1.bf16.msra.mxu0 0
    %1052 = vmatprep.subr.bf16.mxu0 0
    %1053 = vmatpush1.bf16.msra.mxu0 0
    %1054 = vmatprep.subr.bf16.mxu0 0
    %1055 = vmatpush1.bf16.msra.mxu0 0
    %1056 = vmatprep.mubr.bf16.mxu0 0
    %1057 = vmatmul.mubr.bf16.gmra.mrb[0].mxu0 %v1019
    %v1058 = vpop.f32.mrb[0].mxu0
    %v1059 = vadd.f32 0.0, %v1058
    %v1060 = vpop.f32.mrb[0].mxu0
    %v1061 = vpop.f32.mrb[0].mxu0
    %v1062 = vpop.f32.mrb[0].mxu0
    %1063 = vdwg.mxu0
    %1064 = vrot.lane.b32.xlu0 %v576, 96
    %v1065 = vpop.permute.xlu0 %1064
    %v1067 = vsel %vm550, %v1015, 0
    %v1070 = vsel %vm580, %v1065, 0
    %1072 = vmatprep.subr.bf16.mxu0 0
    %1073 = vmatpush1.bf16.msra.mxu0 %v1070
    %1074 = vmatprep.subr.bf16.mxu0 0
    %1075 = vmatpush1.bf16.msra.mxu0 0
    %1076 = vmatprep.subr.bf16.mxu0 0
    %1077 = vmatpush1.bf16.msra.mxu0 0
    %1078 = vmatprep.subr.bf16.mxu0 0
    %1079 = vmatpush1.bf16.msra.mxu0 0
    %1080 = vmatprep.subr.bf16.mxu0 0
    %1081 = vmatpush1.bf16.msra.mxu0 0
    %1082 = vmatprep.subr.bf16.mxu0 0
    %1083 = vmatpush1.bf16.msra.mxu0 0
    %1084 = vmatprep.subr.bf16.mxu0 0
    %1085 = vmatpush1.bf16.msra.mxu0 0
    %1086 = vmatprep.subr.bf16.mxu0 0
    %1087 = vmatpush1.bf16.msra.mxu0 0
    %1088 = vmatprep.subr.bf16.mxu0 0
    %1089 = vmatpush1.bf16.msra.mxu0 0
    %1090 = vmatprep.subr.bf16.mxu0 0
    %1091 = vmatpush1.bf16.msra.mxu0 0
    %1092 = vmatprep.subr.bf16.mxu0 0
    %1093 = vmatpush1.bf16.msra.mxu0 0
    %1094 = vmatprep.subr.bf16.mxu0 0
    %1095 = vmatpush1.bf16.msra.mxu0 0
    %1096 = vmatprep.subr.bf16.mxu0 0
    %1097 = vmatpush1.bf16.msra.mxu0 0
    %1098 = vmatprep.subr.bf16.mxu0 0
    %1099 = vmatpush1.bf16.msra.mxu0 0
    %1100 = vmatprep.subr.bf16.mxu0 0
    %1101 = vmatpush1.bf16.msra.mxu0 0
    %1102 = vmatprep.subr.bf16.mxu0 0
    %1103 = vmatpush1.bf16.msra.mxu0 0
    %1104 = vmatprep.mubr.bf16.mxu0 0
    %1105 = vmatmul.mubr.bf16.gmra.mrb[0].mxu0 %v1067
    %v1106 = vpop.f32.mrb[0].mxu0
    %v1107 = vadd.f32 0.0, %v1106
    %v1108 = vpop.f32.mrb[0].mxu0
    %v1109 = vpop.f32.mrb[0].mxu0
    %v1110 = vpop.f32.mrb[0].mxu0
    %1111 = vdwg.mxu0
    %1112 = vrot.lane.b32.xlu0 %v449, 80
    %v1113 = vpop.permute.xlu0 %1112
    %1114 = vrot.lane.b32.xlu0 %v449, 16
    %v1115 = vpop.permute.xlu0 %1114
    %v1117 = vsel %vm454, %v1113, 0
    %v1120 = vsel %vm454, %v1115, 0
    %1122 = vmatprep.subr.bf16.mxu0 0
    %1123 = vmatpush1.bf16.xpose.msra.mxu0 %v1120
    %1124 = vmatprep.subr.bf16.mxu0 0
    %1125 = vmatpush1.bf16.xpose.msra.mxu0 0
    %1126 = vmatprep.subr.bf16.mxu0 0
    %1127 = vmatpush1.bf16.xpose.msra.mxu0 0
    %1128 = vmatprep.subr.bf16.mxu0 0
    %1129 = vmatpush1.bf16.xpose.msra.mxu0 0
    %1130 = vmatprep.subr.bf16.mxu0 0
    %1131 = vmatpush1.bf16.xpose.msra.mxu0 0
    %1132 = vmatprep.subr.bf16.mxu0 0
    %1133 = vmatpush1.bf16.xpose.msra.mxu0 0
    %1134 = vmatprep.subr.bf16.mxu0 0
    %1135 = vmatpush1.bf16.xpose.msra.mxu0 0
    %1136 = vmatprep.subr.bf16.mxu0 0
    %1137 = vmatpush1.bf16.xpose.msra.mxu0 0
    %1138 = vmatprep.subr.bf16.mxu0 0
    %1139 = vmatpush1.bf16.xpose.msra.mxu0 0
    %1140 = vmatprep.subr.bf16.mxu0 0
    %1141 = vmatpush1.bf16.xpose.msra.mxu0 0
    %1142 = vmatprep.subr.bf16.mxu0 0
    %1143 = vmatpush1.bf16.xpose.msra.mxu0 0
    %1144 = vmatprep.subr.bf16.mxu0 0
    %1145 = vmatpush1.bf16.xpose.msra.mxu0 0
    %1146 = vmatprep.subr.bf16.mxu0 0
    %1147 = vmatpush1.bf16.xpose.msra.mxu0 0
    %1148 = vmatprep.subr.bf16.mxu0 0
    %1149 = vmatpush1.bf16.xpose.msra.mxu0 0
    %1150 = vmatprep.subr.bf16.mxu0 0
    %1151 = vmatpush1.bf16.xpose.msra.mxu0 0
    %1152 = vmatprep.subr.bf16.mxu0 0
    %1153 = vmatpush1.bf16.xpose.msra.mxu0 0
    %1154 = vmatprep.mubr.bf16.mxu0 0
    %1155 = vmatmul.mubr.bf16.gmra.mrb[0].mxu0 %v1117
    %v1156 = vpop.f32.mrb[0].mxu0
    %v1157 = vadd.f32 %v73, %v1156
    %v1158 = vpop.f32.mrb[0].mxu0
    %v1159 = vpop.f32.mrb[0].mxu0
    %v1160 = vpop.f32.mrb[0].mxu0
    %1161 = vdwg.mxu0
    %1162 = vrot.lane.b32.xlu0 %v450, 80
    %v1163 = vpop.permute.xlu0 %1162
    %1164 = vrot.lane.b32.xlu0 %v450, 16
    %v1165 = vpop.permute.xlu0 %1164
    %v1167 = vsel %vm454, %v1163, 0
    %v1170 = vsel %vm454, %v1165, 0
    %1172 = vmatprep.subr.bf16.mxu0 0
    %1173 = vmatpush1.bf16.xpose.msra.mxu0 %v1170
    %1174 = vmatprep.subr.bf16.mxu0 0
    %1175 = vmatpush1.bf16.xpose.msra.mxu0 0
    %1176 = vmatprep.subr.bf16.mxu0 0
    %1177 = vmatpush1.bf16.xpose.msra.mxu0 0
    %1178 = vmatprep.subr.bf16.mxu0 0
    %1179 = vmatpush1.bf16.xpose.msra.mxu0 0
    %1180 = vmatprep.subr.bf16.mxu0 0
    %1181 = vmatpush1.bf16.xpose.msra.mxu0 0
    %1182 = vmatprep.subr.bf16.mxu0 0
    %1183 = vmatpush1.bf16.xpose.msra.mxu0 0
    %1184 = vmatprep.subr.bf16.mxu0 0
    %1185 = vmatpush1.bf16.xpose.msra.mxu0 0
    %1186 = vmatprep.subr.bf16.mxu0 0
    %1187 = vmatpush1.bf16.xpose.msra.mxu0 0
    %1188 = vmatprep.subr.bf16.mxu0 0
    %1189 = vmatpush1.bf16.xpose.msra.mxu0 0
    %1190 = vmatprep.subr.bf16.mxu0 0
    %1191 = vmatpush1.bf16.xpose.msra.mxu0 0
    %1192 = vmatprep.subr.bf16.mxu0 0
    %1193 = vmatpush1.bf16.xpose.msra.mxu0 0
    %1194 = vmatprep.subr.bf16.mxu0 0
    %1195 = vmatpush1.bf16.xpose.msra.mxu0 0
    %1196 = vmatprep.subr.bf16.mxu0 0
    %1197 = vmatpush1.bf16.xpose.msra.mxu0 0
    %1198 = vmatprep.subr.bf16.mxu0 0
    %1199 = vmatpush1.bf16.xpose.msra.mxu0 0
    %1200 = vmatprep.subr.bf16.mxu0 0
    %1201 = vmatpush1.bf16.xpose.msra.mxu0 0
    %1202 = vmatprep.subr.bf16.mxu0 0
    %1203 = vmatpush1.bf16.xpose.msra.mxu0 0
    %1204 = vmatprep.mubr.bf16.mxu0 0
    %1205 = vmatmul.mubr.bf16.gmra.mrb[0].mxu0 %v1167
    %v1206 = vpop.f32.mrb[0].mxu0
    %v1207 = vadd.f32 %v73, %v1206
    %v1208 = vpop.f32.mrb[0].mxu0
    %v1209 = vpop.f32.mrb[0].mxu0
    %v1210 = vpop.f32.mrb[0].mxu0
    %1211 = vdwg.mxu0
    %v1212 = vsel %vm550, %v1157, -inf
    %1213 = vmax.xlane.f32.xlu0 %v1212
    %v1214 = vpop.xlane.xlu0 %1213
    %v1215 = vsel %vm550, %v1207, -inf
    %1216 = vmax.xlane.f32.xlu0 %v1215
    %v1217 = vpop.xlane.xlu0 %1216
    %v1218 = vsub.f32 %v1157, %v1214
    %v1219 = vsub.f32 %v1207, %v1217
    %v1220 = vmul.f32 %v1218, 1.442695
    %v1221 = vpow.pop %v1220
    %v1222 = vmul.f32 %v1219, 1.442695
    %v1223 = vpow.pop %v1222
    %v1224 = vsel %vm550, %v1221, 0.0
    %1225 = vadd.xlane.f32.xlu0 %v1224
    %v1226 = vpop.xlane.xlu0 %1225
    %v1227 = vsel %vm550, %v1223, 0.0
    %1228 = vadd.xlane.f32.xlu0 %v1227
    %v1229 = vpop.xlane.xlu0 %1228
    %v1230 = vrcp.pop %v1226
    %v1231 = vrcp.pop %v1229
    %v1232 = vmul.f32 %v1221, %v1230
    %v1233 = vmul.f32 %v1223, %v1231
    %v1234 = vpack.c.bf16 %v1232, %v1232
    %v1235 = vpack.c.bf16 %v1233, %v1233
    %1236 = vrot.lane.b32.xlu0 %v575, 80
    %v1237 = vpop.permute.xlu0 %1236
    %v1239 = vsel %vm550, %v1234, 0
    %v1242 = vsel %vm580, %v1237, 0
    %1244 = vmatprep.subr.bf16.mxu0 0
    %1245 = vmatpush1.bf16.msra.mxu0 %v1242
    %1246 = vmatprep.subr.bf16.mxu0 0
    %1247 = vmatpush1.bf16.msra.mxu0 0
    %1248 = vmatprep.subr.bf16.mxu0 0
    %1249 = vmatpush1.bf16.msra.mxu0 0
    %1250 = vmatprep.subr.bf16.mxu0 0
    %1251 = vmatpush1.bf16.msra.mxu0 0
    %1252 = vmatprep.subr.bf16.mxu0 0
    %1253 = vmatpush1.bf16.msra.mxu0 0
    %1254 = vmatprep.subr.bf16.mxu0 0
    %1255 = vmatpush1.bf16.msra.mxu0 0
    %1256 = vmatprep.subr.bf16.mxu0 0
    %1257 = vmatpush1.bf16.msra.mxu0 0
    %1258 = vmatprep.subr.bf16.mxu0 0
    %1259 = vmatpush1.bf16.msra.mxu0 0
    %1260 = vmatprep.subr.bf16.mxu0 0
    %1261 = vmatpush1.bf16.msra.mxu0 0
    %1262 = vmatprep.subr.bf16.mxu0 0
    %1263 = vmatpush1.bf16.msra.mxu0 0
    %1264 = vmatprep.subr.bf16.mxu0 0
    %1265 = vmatpush1.bf16.msra.mxu0 0
    %1266 = vmatprep.subr.bf16.mxu0 0
    %1267 = vmatpush1.bf16.msra.mxu0 0
    %1268 = vmatprep.subr.bf16.mxu0 0
    %1269 = vmatpush1.bf16.msra.mxu0 0
    %1270 = vmatprep.subr.bf16.mxu0 0
    %1271 = vmatpush1.bf16.msra.mxu0 0
    %1272 = vmatprep.subr.bf16.mxu0 0
    %1273 = vmatpush1.bf16.msra.mxu0 0
    %1274 = vmatprep.subr.bf16.mxu0 0
    %1275 = vmatpush1.bf16.msra.mxu0 0
    %1276 = vmatprep.mubr.bf16.mxu0 0
    %1277 = vmatmul.mubr.bf16.gmra.mrb[0].mxu0 %v1239
    %v1278 = vpop.f32.mrb[0].mxu0
    %v1279 = vadd.f32 0.0, %v1278
    %v1280 = vpop.f32.mrb[0].mxu0
    %v1281 = vpop.f32.mrb[0].mxu0
    %v1282 = vpop.f32.mrb[0].mxu0
    %1283 = vdwg.mxu0
    %1284 = vrot.lane.b32.xlu0 %v576, 80
    %v1285 = vpop.permute.xlu0 %1284
    %v1287 = vsel %vm550, %v1235, 0
    %v1290 = vsel %vm580, %v1285, 0
    %1292 = vmatprep.subr.bf16.mxu0 0
    %1293 = vmatpush1.bf16.msra.mxu0 %v1290
    %1294 = vmatprep.subr.bf16.mxu0 0
    %1295 = vmatpush1.bf16.msra.mxu0 0
    %1296 = vmatprep.subr.bf16.mxu0 0
    %1297 = vmatpush1.bf16.msra.mxu0 0
    %1298 = vmatprep.subr.bf16.mxu0 0
    %1299 = vmatpush1.bf16.msra.mxu0 0
    %1300 = vmatprep.subr.bf16.mxu0 0
    %1301 = vmatpush1.bf16.msra.mxu0 0
    %1302 = vmatprep.subr.bf16.mxu0 0
    %1303 = vmatpush1.bf16.msra.mxu0 0
    %1304 = vmatprep.subr.bf16.mxu0 0
    %1305 = vmatpush1.bf16.msra.mxu0 0
    %1306 = vmatprep.subr.bf16.mxu0 0
    %1307 = vmatpush1.bf16.msra.mxu0 0
    %1308 = vmatprep.subr.bf16.mxu0 0
    %1309 = vmatpush1.bf16.msra.mxu0 0
    %1310 = vmatprep.subr.bf16.mxu0 0
    %1311 = vmatpush1.bf16.msra.mxu0 0
    %1312 = vmatprep.subr.bf16.mxu0 0
    %1313 = vmatpush1.bf16.msra.mxu0 0
    %1314 = vmatprep.subr.bf16.mxu0 0
    %1315 = vmatpush1.bf16.msra.mxu0 0
    %1316 = vmatprep.subr.bf16.mxu0 0
    %1317 = vmatpush1.bf16.msra.mxu0 0
    %1318 = vmatprep.subr.bf16.mxu0 0
    %1319 = vmatpush1.bf16.msra.mxu0 0
    %1320 = vmatprep.subr.bf16.mxu0 0
    %1321 = vmatpush1.bf16.msra.mxu0 0
    %1322 = vmatprep.subr.bf16.mxu0 0
    %1323 = vmatpush1.bf16.msra.mxu0 0
    %1324 = vmatprep.mubr.bf16.mxu0 0
    %1325 = vmatmul.mubr.bf16.gmra.mrb[0].mxu0 %v1287
    %v1326 = vpop.f32.mrb[0].mxu0
    %v1327 = vadd.f32 0.0, %v1326
    %v1328 = vpop.f32.mrb[0].mxu0
    %v1329 = vpop.f32.mrb[0].mxu0
    %v1330 = vpop.f32.mrb[0].mxu0
    %1331 = vdwg.mxu0
    %1334 = vrot.lane.b32.xlu0 %v838, 16
    %v1335 = vpop.permute.xlu0 %1334
    %1336 = vrot.lane.b32.xlu0 %v887, 16
    %v1337 = vpop.permute.xlu0 %1336
    %1342 = vrot.lane.b32.xlu0 %v1059, 32
    %v1343 = vpop.permute.xlu0 %1342
    %1344 = vrot.lane.b32.xlu0 %v1107, 32
    %v1345 = vpop.permute.xlu0 %1344
    %1350 = vrot.lane.b32.xlu0 %v1279, 48
    %v1351 = vpop.permute.xlu0 %1350
    %1352 = vrot.lane.b32.xlu0 %v1327, 48
    %v1353 = vpop.permute.xlu0 %1352
    %v1356 = vsel %vm454, %v619, %v1335
    %v1357 = vsel %vm454, %v665, %v1337
    %vm1358 = vcmask 261120
    %v1359 = vsel %vm1358, %v1356, %v1343
    %v1360 = vsel %vm1358, %v1357, %v1345
    %vm1361 = vcmask 392192
    %v1362 = vsel %vm1361, %v1359, %v1351
    %v1363 = vsel %vm1361, %v1360, %v1353
    %v1364 = vpack.c.bf16 %v1363, %v1362
    %v1365 = vld [vmem:[%s9] sm:$0xf]
    %v1366 = vld [vmem:[%s9 + $0x4] sm:$0xf]
    %v1367 = vld [vmem:[%s9 + $0x8] sm:$0xf]
    %v1368 = vld [vmem:[%s9 + $0xc] sm:$0xf]
    %v1369 = vld [vmem:[%s9 + $0x10] sm:$0xf]
    %v1370 = vld [vmem:[%s9 + $0x14] sm:$0xf]
    %v1371 = vld [vmem:[%s9 + $0x18] sm:$0xf]
    %v1372 = vld [vmem:[%s9 + $0x1c] sm:$0xf]
    %v1381 = vunpack.c.l.b16 %v1365
    %v1382 = vunpack.c.l.b16 %v1366
    %v1383 = vunpack.c.l.b16 %v1367
    %v1384 = vunpack.c.l.b16 %v1368
    %v1385 = vunpack.c.l.b16 %v1369
    %v1386 = vunpack.c.l.b16 %v1370
    %v1387 = vunpack.c.l.b16 %v1371
    %v1388 = vunpack.c.l.b16 %v1372
    %v1389 = vpack.c.b16 %v1382, %v1381
    %v1390 = vpack.c.b16 %v1384, %v1383
    %v1391 = vpack.c.b16 %v1386, %v1385
    %v1392 = vpack.c.b16 %v1388, %v1387
    %v1398 = vsel %vm254, %v1364, 0
    %1400 = vmatprep.subr.bf16.mxu0 0
    %1401 = vmatpush1.bf16.msra.mxu0 %v1389
    %1402 = vmatprep.subr.bf16.mxu0 0
    %1403 = vmatpush1.bf16.msra.mxu0 %v1390
    %1404 = vmatprep.subr.bf16.mxu0 0
    %1405 = vmatpush1.bf16.msra.mxu0 %v1391
    %1406 = vmatprep.subr.bf16.mxu0 0
    %1407 = vmatpush1.bf16.msra.mxu0 %v1392
    %1408 = vmatprep.subr.bf16.mxu0 0
    %1409 = vmatpush1.bf16.msra.mxu0 0
    %1410 = vmatprep.subr.bf16.mxu0 0
    %1411 = vmatpush1.bf16.msra.mxu0 0
    %1412 = vmatprep.subr.bf16.mxu0 0
    %1413 = vmatpush1.bf16.msra.mxu0 0
    %1414 = vmatprep.subr.bf16.mxu0 0
    %1415 = vmatpush1.bf16.msra.mxu0 0
    %1416 = vmatprep.subr.bf16.mxu0 0
    %1417 = vmatpush1.bf16.msra.mxu0 0
    %1418 = vmatprep.subr.bf16.mxu0 0
    %1419 = vmatpush1.bf16.msra.mxu0 0
    %1420 = vmatprep.subr.bf16.mxu0 0
    %1421 = vmatpush1.bf16.msra.mxu0 0
    %1422 = vmatprep.subr.bf16.mxu0 0
    %1423 = vmatpush1.bf16.msra.mxu0 0
    %1424 = vmatprep.subr.bf16.mxu0 0
    %1425 = vmatpush1.bf16.msra.mxu0 0
    %1426 = vmatprep.subr.bf16.mxu0 0
    %1427 = vmatpush1.bf16.msra.mxu0 0
    %1428 = vmatprep.subr.bf16.mxu0 0
    %1429 = vmatpush1.bf16.msra.mxu0 0
    %1430 = vmatprep.subr.bf16.mxu0 0
    %1431 = vmatpush1.bf16.msra.mxu0 0
    %1432 = vmatprep.mubr.bf16.mxu0 0
    %1433 = vmatmul.mubr.bf16.gmra.mrb[0].mxu0 %v1398
    %v1434 = vpop.f32.mrb[0].mxu0
    %v1435 = vadd.f32 0.0, %v1434
    %v1436 = vpop.f32.mrb[0].mxu0
    %v1437 = vpop.f32.mrb[0].mxu0
    %v1438 = vadd.f32 0.0, %v1437
    %v1439 = vpop.f32.mrb[0].mxu0
    %1440 = vdwg.mxu0
    %v1441 = vadd.f32 %v296, %v1435
    %v1442 = vadd.f32 %v297, %v1438
    %v1443 = vld [vmem:[%s10] sm:$0x1]
    %v1445 = vlaneseq
    %v1446 = vshrl.u32 %v1445, 7
    %v1447 = vsub.s32 0, %v1446
    %v1448 = vrot.slane %v1443, %v1447
    %v1450 = vadd.f32 %v1441, %v1448
    %v1451 = vadd.f32 %v1442, %v1448
    %v1452 = vld [vmem:[%s11] sm:$0x1]
    %v1453 = vld [vmem:[%s12] sm:$0x1]
    %v1454 = vsel %vm254, %v1450, 0.0
    %1455 = vadd.xlane.f32.xlu0 %v1454
    %v1456 = vpop.xlane.xlu0 %1455
    %v1457 = vsel %vm254, %v1451, 0.0
    %1458 = vadd.xlane.f32.xlu0 %v1457
    %v1459 = vpop.xlane.xlu0 %1458
    %v1460 = vmul.f32 %v1456, %v261
    %v1461 = vmul.f32 %v1459, %v261
    %v1462 = vsub.f32 %v1450, %v1460
    %v1463 = vsub.f32 %v1451, %v1461
    %v1464 = vmul.f32 %v1462, %v1462
    %v1465 = vmul.f32 %v1463, %v1463
    %v1466 = vsel %vm254, %v1464, 0.0
    %1467 = vadd.xlane.f32.xlu0 %v1466
    %v1468 = vpop.xlane.xlu0 %1467
    %v1469 = vsel %vm254, %v1465, 0.0
    %1470 = vadd.xlane.f32.xlu0 %v1469
    %v1471 = vpop.xlane.xlu0 %1470
    %v1472 = vmul.f32 %v1468, %v261
    %v1473 = vmul.f32 %v1471, %v261
    %v1474 = vadd.f32 %v1472, 1e-05
    %v1475 = vadd.f32 %v1473, 1e-05
    %v1476 = vrsqrt.pop %v1474
    %v1477 = vrsqrt.pop %v1475
    %v1478 = vmul.f32 %v1462, %v1476
    %v1479 = vmul.f32 %v1463, %v1477
    %v1481 = vlaneseq
    %v1482 = vshrl.u32 %v1481, 7
    %v1483 = vsub.s32 0, %v1482
    %v1484 = vrot.slane %v1452, %v1483
    %v1486 = vmul.f32 %v1478, %v1484
    %v1487 = vmul.f32 %v1479, %v1484
    %v1489 = vlaneseq
    %v1490 = vshrl.u32 %v1489, 7
    %v1491 = vsub.s32 0, %v1490
    %v1492 = vrot.slane %v1453, %v1491
    %v1494 = vadd.f32 %v1486, %v1492
    %v1495 = vadd.f32 %v1487, %v1492
    %v1496 = vpack.c.bf16 %v1495, %v1494
    %v1497 = vld [vmem:[%s13] sm:$0xff]
    %v1498 = vld [vmem:[%s13 + $0x8] sm:$0xff]
    %v1499 = vld [vmem:[%s13 + $0x10] sm:$0xff]
    %v1500 = vld [vmem:[%s13 + $0x18] sm:$0xff]
    %v1501 = vld [vmem:[%s13 + $0x20] sm:$0xff]
    %v1502 = vld [vmem:[%s13 + $0x28] sm:$0xff]
    %v1503 = vld [vmem:[%s13 + $0x30] sm:$0xff]
    %v1504 = vld [vmem:[%s13 + $0x38] sm:$0xff]
    %v1505 = vld [vmem:[%s14] sm:$0x3]
    %v1507 = vlaneseq
    %v1508 = vshrl.u32 %v1507, 7
    %v1509 = vsub.s32 0, %v1508
    %v1510 = vrot.slane %v1505, %v1509
    %v1511 = vlaneseq
    %v1512 = vshrl.u32 %v1511, 7
    %v1513 = vsub.s32 1, %v1512
    %v1514 = vrot.slane %v1505, %v1513
    %v1525 = vunpack.c.l.b16 %v1497
    %v1526 = vunpack.c.h.b16 %v1497
    %v1527 = vunpack.c.l.b16 %v1498
    %v1528 = vunpack.c.h.b16 %v1498
    %v1529 = vunpack.c.l.b16 %v1499
    %v1530 = vunpack.c.h.b16 %v1499
    %v1531 = vunpack.c.l.b16 %v1500
    %v1532 = vunpack.c.h.b16 %v1500
    %v1533 = vunpack.c.l.b16 %v1501
    %v1534 = vunpack.c.h.b16 %v1501
    %v1535 = vunpack.c.l.b16 %v1502
    %v1536 = vunpack.c.h.b16 %v1502
    %v1537 = vunpack.c.l.b16 %v1503
    %v1538 = vunpack.c.h.b16 %v1503
    %v1539 = vunpack.c.l.b16 %v1504
    %v1540 = vunpack.c.h.b16 %v1504
    %v1541 = vpack.c.b16 %v1527, %v1525
    %v1542 = vpack.c.b16 %v1528, %v1526
    %v1543 = vpack.c.b16 %v1531, %v1529
    %v1544 = vpack.c.b16 %v1532, %v1530
    %v1545 = vpack.c.b16 %v1535, %v1533
    %v1546 = vpack.c.b16 %v1536, %v1534
    %v1547 = vpack.c.b16 %v1539, %v1537
    %v1548 = vpack.c.b16 %v1540, %v1538
    %v1558 = vsel %vm254, %v1496, 0
    %1560 = vmatprep.subr.bf16.mxu0 %v1542
    %1561 = vmatpush1.bf16.msra.mxu0 %v1541
    %1562 = vmatprep.subr.bf16.mxu0 %v1544
    %1563 = vmatpush1.bf16.msra.mxu0 %v1543
    %1564 = vmatprep.subr.bf16.mxu0 %v1546
    %1565 = vmatpush1.bf16.msra.mxu0 %v1545
    %1566 = vmatprep.subr.bf16.mxu0 %v1548
    %1567 = vmatpush1.bf16.msra.mxu0 %v1547
    %1568 = vmatprep.subr.bf16.mxu0 0
    %1569 = vmatpush1.bf16.msra.mxu0 0
    %1570 = vmatprep.subr.bf16.mxu0 0
    %1571 = vmatpush1.bf16.msra.mxu0 0
    %1572 = vmatprep.subr.bf16.mxu0 0
    %1573 = vmatpush1.bf16.msra.mxu0 0
    %1574 = vmatprep.subr.bf16.mxu0 0
    %1575 = vmatpush1.bf16.msra.mxu0 0
    %1576 = vmatprep.subr.bf16.mxu0 0
    %1577 = vmatpush1.bf16.msra.mxu0 0
    %1578 = vmatprep.subr.bf16.mxu0 0
    %1579 = vmatpush1.bf16.msra.mxu0 0
    %1580 = vmatprep.subr.bf16.mxu0 0
    %1581 = vmatpush1.bf16.msra.mxu0 0
    %1582 = vmatprep.subr.bf16.mxu0 0
    %1583 = vmatpush1.bf16.msra.mxu0 0
    %1584 = vmatprep.subr.bf16.mxu0 0
    %1585 = vmatpush1.bf16.msra.mxu0 0
    %1586 = vmatprep.subr.bf16.mxu0 0
    %1587 = vmatpush1.bf16.msra.mxu0 0
    %1588 = vmatprep.subr.bf16.mxu0 0
    %1589 = vmatpush1.bf16.msra.mxu0 0
    %1590 = vmatprep.subr.bf16.mxu0 0
    %1591 = vmatpush1.bf16.msra.mxu0 0
    %1592 = vmatprep.mubr.bf16.mxu0 0
    %1593 = vmatmul.mubr.bf16.gmra.mrb[0].mxu0 %v1558
    %v1594 = vpop.f32.mrb[0].mxu0
    %v1595 = vadd.f32 %v1510, %v1594
    %v1596 = vpop.f32.mrb[0].mxu0
    %v1597 = vadd.f32 %v1514, %v1596
    %v1598 = vpop.f32.mrb[0].mxu0
    %v1599 = vadd.f32 %v1510, %v1598
    %v1600 = vpop.f32.mrb[0].mxu0
    %v1601 = vadd.f32 %v1514, %v1600
    %1602 = vdwg.mxu0
    %v1603 = vmul.f32 %v1595, -1.702
    %v1604 = vmul.f32 %v1597, -1.702
    %v1605 = vmul.f32 %v1599, -1.702
    %v1606 = vmul.f32 %v1601, -1.702
    %v1607 = vmul.f32 %v1603, 1.442695
    %v1608 = vpow.pop %v1607
    %v1609 = vmul.f32 %v1604, 1.442695
    %v1610 = vpow.pop %v1609
    %v1611 = vmul.f32 %v1605, 1.442695
    %v1612 = vpow.pop %v1611
    %v1613 = vmul.f32 %v1606, 1.442695
    %v1614 = vpow.pop %v1613
    %v1615 = vadd.f32 %v1608, 1.0
    %v1616 = vadd.f32 %v1610, 1.0
    %v1617 = vadd.f32 %v1612, 1.0
    %v1618 = vadd.f32 %v1614, 1.0
    %v1619 = vrcp.pop %v1615
    %v1620 = vmul.f32 %v1595, %v1619
    %v1621 = vrcp.pop %v1616
    %v1622 = vmul.f32 %v1597, %v1621
    %v1623 = vrcp.pop %v1617
    %v1624 = vmul.f32 %v1599, %v1623
    %v1625 = vrcp.pop %v1618
    %v1626 = vmul.f32 %v1601, %v1625
    %v1627 = vpack.c.bf16 %v1624, %v1620
    %v1628 = vpack.c.bf16 %v1626, %v1622
    %v1629 = vld [vmem:[%s15] sm:$0xf]
    %v1630 = vld [vmem:[%s15 + $0x4] sm:$0xf]
    %v1631 = vld [vmem:[%s15 + $0x8] sm:$0xf]
    %v1632 = vld [vmem:[%s15 + $0xc] sm:$0xf]
    %v1633 = vld [vmem:[%s15 + $0x10] sm:$0xf]
    %v1634 = vld [vmem:[%s15 + $0x14] sm:$0xf]
    %v1635 = vld [vmem:[%s15 + $0x18] sm:$0xf]
    %v1636 = vld [vmem:[%s15 + $0x1c] sm:$0xf]
    %v1637 = vld [vmem:[%s15 + $0x20] sm:$0xf]
    %v1638 = vld [vmem:[%s15 + $0x24] sm:$0xf]
    %v1639 = vld [vmem:[%s15 + $0x28] sm:$0xf]
    %v1640 = vld [vmem:[%s15 + $0x2c] sm:$0xf]
    %v1641 = vld [vmem:[%s15 + $0x30] sm:$0xf]
    %v1642 = vld [vmem:[%s15 + $0x34] sm:$0xf]
    %v1643 = vld [vmem:[%s15 + $0x38] sm:$0xf]
    %v1644 = vld [vmem:[%s15 + $0x3c] sm:$0xf]
    %v1645 = vld [vmem:[%s15 + $0x40] sm:$0xf]
    %v1646 = vld [vmem:[%s15 + $0x44] sm:$0xf]
    %v1647 = vld [vmem:[%s15 + $0x48] sm:$0xf]
    %v1648 = vld [vmem:[%s15 + $0x4c] sm:$0xf]
    %v1649 = vld [vmem:[%s15 + $0x50] sm:$0xf]
    %v1650 = vld [vmem:[%s15 + $0x54] sm:$0xf]
    %v1651 = vld [vmem:[%s15 + $0x58] sm:$0xf]
    %v1652 = vld [vmem:[%s15 + $0x5c] sm:$0xf]
    %v1653 = vld [vmem:[%s15 + $0x60] sm:$0xf]
    %v1654 = vld [vmem:[%s15 + $0x64] sm:$0xf]
    %v1655 = vld [vmem:[%s15 + $0x68] sm:$0xf]
    %v1656 = vld [vmem:[%s15 + $0x6c] sm:$0xf]
    %v1657 = vld [vmem:[%s15 + $0x70] sm:$0xf]
    %v1658 = vld [vmem:[%s15 + $0x74] sm:$0xf]
    %v1659 = vld [vmem:[%s15 + $0x78] sm:$0xf]
    %v1660 = vld [vmem:[%s15 + $0x7c] sm:$0xf]
    %v1693 = vunpack.c.l.b16 %v1629
    %v1694 = vunpack.c.l.b16 %v1630
    %v1695 = vunpack.c.l.b16 %v1631
    %v1696 = vunpack.c.l.b16 %v1632
    %v1697 = vunpack.c.l.b16 %v1633
    %v1698 = vunpack.c.l.b16 %v1634
    %v1699 = vunpack.c.l.b16 %v1635
    %v1700 = vunpack.c.l.b16 %v1636
    %v1701 = vunpack.c.l.b16 %v1637
    %v1702 = vunpack.c.l.b16 %v1638
    %v1703 = vunpack.c.l.b16 %v1639
    %v1704 = vunpack.c.l.b16 %v1640
    %v1705 = vunpack.c.l.b16 %v1641
    %v1706 = vunpack.c.l.b16 %v1642
    %v1707 = vunpack.c.l.b16 %v1643
    %v1708 = vunpack.c.l.b16 %v1644
    %v1709 = vunpack.c.l.b16 %v1645
    %v1710 = vunpack.c.l.b16 %v1646
    %v1711 = vunpack.c.l.b16 %v1647
    %v1712 = vunpack.c.l.b16 %v1648
    %v1713 = vunpack.c.l.b16 %v1649
    %v1714 = vunpack.c.l.b16 %v1650
    %v1715 = vunpack.c.l.b16 %v1651
    %v1716 = vunpack.c.l.b16 %v1652
    %v1717 = vunpack.c.l.b16 %v1653
    %v1718 = vunpack.c.l.b16 %v1654
    %v1719 = vunpack.c.l.b16 %v1655
    %v1720 = vunpack.c.l.b16 %v1656
    %v1721 = vunpack.c.l.b16 %v1657
    %v1722 = vunpack.c.l.b16 %v1658
    %v1723 = vunpack.c.l.b16 %v1659
    %v1724 = vunpack.c.l.b16 %v1660
    %v1725 = vpack.c.b16 %v1694, %v1693
    %v1726 = vpack.c.b16 %v1696, %v1695
    %v1727 = vpack.c.b16 %v1698, %v1697
    %v1728 = vpack.c.b16 %v1700, %v1699
    %v1729 = vpack.c.b16 %v1702, %v1701
    %v1730 = vpack.c.b16 %v1704, %v1703
    %v1731 = vpack.c.b16 %v1706, %v1705
    %v1732 = vpack.c.b16 %v1708, %v1707
    %v1733 = vpack.c.b16 %v1710, %v1709
    %v1734 = vpack.c.b16 %v1712, %v1711
    %v1735 = vpack.c.b16 %v1714, %v1713
    %v1736 = vpack.c.b16 %v1716, %v1715
    %v1737 = vpack.c.b16 %v1718, %v1717
    %v1738 = vpack.c.b16 %v1720, %v1719
    %v1739 = vpack.c.b16 %v1722, %v1721
    %v1740 = vpack.c.b16 %v1724, %v1723
    %1757 = vmatprep.subr.bf16.mxu0 0
    %1758 = vmatpush1.bf16.msra.mxu0 %v1725
    %1759 = vmatprep.subr.bf16.mxu0 0
    %1760 = vmatpush1.bf16.msra.mxu0 %v1726
    %1761 = vmatprep.subr.bf16.mxu0 0
    %1762 = vmatpush1.bf16.msra.mxu0 %v1727
    %1763 = vmatprep.subr.bf16.mxu0 0
    %1764 = vmatpush1.bf16.msra.mxu0 %v1728
    %1765 = vmatprep.subr.bf16.mxu0 0
    %1766 = vmatpush1.bf16.msra.mxu0 %v1729
    %1767 = vmatprep.subr.bf16.mxu0 0
    %1768 = vmatpush1.bf16.msra.mxu0 %v1730
    %1769 = vmatprep.subr.bf16.mxu0 0
    %1770 = vmatpush1.bf16.msra.mxu0 %v1731
    %1771 = vmatprep.subr.bf16.mxu0 0
    %1772 = vmatpush1.bf16.msra.mxu0 %v1732
    %1773 = vmatprep.subr.bf16.mxu0 0
    %1774 = vmatpush1.bf16.msra.mxu0 %v1733
    %1775 = vmatprep.subr.bf16.mxu0 0
    %1776 = vmatpush1.bf16.msra.mxu0 %v1734
    %1777 = vmatprep.subr.bf16.mxu0 0
    %1778 = vmatpush1.bf16.msra.mxu0 %v1735
    %1779 = vmatprep.subr.bf16.mxu0 0
    %1780 = vmatpush1.bf16.msra.mxu0 %v1736
    %1781 = vmatprep.subr.bf16.mxu0 0
    %1782 = vmatpush1.bf16.msra.mxu0 %v1737
    %1783 = vmatprep.subr.bf16.mxu0 0
    %1784 = vmatpush1.bf16.msra.mxu0 %v1738
    %1785 = vmatprep.subr.bf16.mxu0 0
    %1786 = vmatpush1.bf16.msra.mxu0 %v1739
    %1787 = vmatprep.subr.bf16.mxu0 0
    %1788 = vmatpush1.bf16.msra.mxu0 %v1740
    %1789 = vmatprep.mubr.bf16.mxu0 %v1628
    %1790 = vmatmul.mubr.bf16.gmra.mrb[0].mxu0 %v1627
    %v1791 = vpop.f32.mrb[0].mxu0
    %v1792 = vadd.f32 0.0, %v1791
    %v1793 = vpop.f32.mrb[0].mxu0
    %v1794 = vpop.f32.mrb[0].mxu0
    %v1795 = vadd.f32 0.0, %v1794
    %v1796 = vpop.f32.mrb[0].mxu0
    %1797 = vdwg.mxu0
    %v1798 = vadd.f32 %v1450, %v1792
    %v1799 = vadd.f32 %v1451, %v1795
    %v1800 = vld [vmem:[%s16] sm:$0x1]
    %v1802 = vlaneseq
    %v1803 = vshrl.u32 %v1802, 7
    %v1804 = vsub.s32 0, %v1803
    %v1805 = vrot.slane %v1800, %v1804
    %v1807 = vadd.f32 %v1798, %v1805
    %v1808 = vadd.f32 %v1799, %v1805
    %s1809 = scalar_lea.vmem %s5, 1
    %v1810 = vld [vmem:[%s1809] sm:$0x1]
    %s1811 = scalar_lea.vmem %s6, 1
    %v1812 = vld [vmem:[%s1811] sm:$0x1]
    %v1813 = vsel %vm254, %v1807, 0.0
    %1814 = vadd.xlane.f32.xlu0 %v1813
    %v1815 = vpop.xlane.xlu0 %1814
    %v1816 = vsel %vm254, %v1808, 0.0
    %1817 = vadd.xlane.f32.xlu0 %v1816
    %v1818 = vpop.xlane.xlu0 %1817
    %v1819 = vmul.f32 %v1815, %v261
    %v1820 = vmul.f32 %v1818, %v261
    %v1821 = vsub.f32 %v1807, %v1819
    %v1822 = vsub.f32 %v1808, %v1820
    %v1823 = vmul.f32 %v1821, %v1821
    %v1824 = vmul.f32 %v1822, %v1822
    %v1825 = vsel %vm254, %v1823, 0.0
    %1826 = vadd.xlane.f32.xlu0 %v1825
    %v1827 = vpop.xlane.xlu0 %1826
    %v1828 = vsel %vm254, %v1824, 0.0
    %1829 = vadd.xlane.f32.xlu0 %v1828
    %v1830 = vpop.xlane.xlu0 %1829
    %v1831 = vmul.f32 %v1827, %v261
    %v1832 = vmul.f32 %v1830, %v261
    %v1833 = vadd.f32 %v1831, 1e-05
    %v1834 = vadd.f32 %v1832, 1e-05
    %v1835 = vrsqrt.pop %v1833
    %v1836 = vrsqrt.pop %v1834
    %v1837 = vmul.f32 %v1821, %v1835
    %v1838 = vmul.f32 %v1822, %v1836
    %v1840 = vlaneseq
    %v1841 = vshrl.u32 %v1840, 7
    %v1842 = vsub.s32 0, %v1841
    %v1843 = vrot.slane %v1810, %v1842
    %v1845 = vmul.f32 %v1837, %v1843
    %v1846 = vmul.f32 %v1838, %v1843
    %v1848 = vlaneseq
    %v1849 = vshrl.u32 %v1848, 7
    %v1850 = vsub.s32 0, %v1849
    %v1851 = vrot.slane %v1812, %v1850
    %v1853 = vadd.f32 %v1845, %v1851
    %v1854 = vadd.f32 %v1846, %v1851
    %v1855 = vpack.c.bf16 %v1854, %v1853
    %s1856 = scalar_lea.vmem %s7, 64
    %v1857 = vld [vmem:[%s1856] sm:$0xff]
    %v1858 = vld [vmem:[%s1856 + $0x8] sm:$0xff]
    %v1859 = vld [vmem:[%s1856 + $0x10] sm:$0xff]
    %v1860 = vld [vmem:[%s1856 + $0x18] sm:$0xff]
    %v1861 = vld [vmem:[%s1856 + $0x20] sm:$0xff]
    %v1862 = vld [vmem:[%s1856 + $0x28] sm:$0xff]
    %v1863 = vld [vmem:[%s1856 + $0x30] sm:$0xff]
    %v1864 = vld [vmem:[%s1856 + $0x38] sm:$0xff]
    %s1865 = scalar_lea.vmem %s8, 2
    %v1866 = vld [vmem:[%s1865] sm:$0x3]
    %v1868 = vlaneseq
    %v1869 = vshrl.u32 %v1868, 7
    %v1870 = vsub.s32 0, %v1869
    %v1871 = vrot.slane %v1866, %v1870
    %v1872 = vlaneseq
    %v1873 = vshrl.u32 %v1872, 7
    %v1874 = vsub.s32 1, %v1873
    %v1875 = vrot.slane %v1866, %v1874
    %v1886 = vunpack.c.l.b16 %v1857
    %v1887 = vunpack.c.h.b16 %v1857
    %v1888 = vunpack.c.l.b16 %v1858
    %v1889 = vunpack.c.h.b16 %v1858
    %v1890 = vunpack.c.l.b16 %v1859
    %v1891 = vunpack.c.h.b16 %v1859
    %v1892 = vunpack.c.l.b16 %v1860
    %v1893 = vunpack.c.h.b16 %v1860
    %v1894 = vunpack.c.l.b16 %v1861
    %v1895 = vunpack.c.h.b16 %v1861
    %v1896 = vunpack.c.l.b16 %v1862
    %v1897 = vunpack.c.h.b16 %v1862
    %v1898 = vunpack.c.l.b16 %v1863
    %v1899 = vunpack.c.h.b16 %v1863
    %v1900 = vunpack.c.l.b16 %v1864
    %v1901 = vunpack.c.h.b16 %v1864
    %v1902 = vpack.c.b16 %v1888, %v1886
    %v1903 = vpack.c.b16 %v1889, %v1887
    %v1904 = vpack.c.b16 %v1892, %v1890
    %v1905 = vpack.c.b16 %v1893, %v1891
    %v1906 = vpack.c.b16 %v1896, %v1894
    %v1907 = vpack.c.b16 %v1897, %v1895
    %v1908 = vpack.c.b16 %v1900, %v1898
    %v1909 = vpack.c.b16 %v1901, %v1899
    %v1919 = vsel %vm254, %v1855, 0
    %1921 = vmatprep.subr.bf16.mxu0 %v1903
    %1922 = vmatpush1.bf16.msra.mxu0 %v1902
    %1923 = vmatprep.subr.bf16.mxu0 %v1905
    %1924 = vmatpush1.bf16.msra.mxu0 %v1904
    %1925 = vmatprep.subr.bf16.mxu0 %v1907
    %1926 = vmatpush1.bf16.msra.mxu0 %v1906
    %1927 = vmatprep.subr.bf16.mxu0 %v1909
    %1928 = vmatpush1.bf16.msra.mxu0 %v1908
    %1929 = vmatprep.subr.bf16.mxu0 0
    %1930 = vmatpush1.bf16.msra.mxu0 0
    %1931 = vmatprep.subr.bf16.mxu0 0
    %1932 = vmatpush1.bf16.msra.mxu0 0
    %1933 = vmatprep.subr.bf16.mxu0 0
    %1934 = vmatpush1.bf16.msra.mxu0 0
    %1935 = vmatprep.subr.bf16.mxu0 0
    %1936 = vmatpush1.bf16.msra.mxu0 0
    %1937 = vmatprep.subr.bf16.mxu0 0
    %1938 = vmatpush1.bf16.msra.mxu0 0
    %1939 = vmatprep.subr.bf16.mxu0 0
    %1940 = vmatpush1.bf16.msra.mxu0 0
    %1941 = vmatprep.subr.bf16.mxu0 0
    %1942 = vmatpush1.bf16.msra.mxu0 0
    %1943 = vmatprep.subr.bf16.mxu0 0
    %1944 = vmatpush1.bf16.msra.mxu0 0
    %1945 = vmatprep.subr.bf16.mxu0 0
    %1946 = vmatpush1.bf16.msra.mxu0 0
    %1947 = vmatprep.subr.bf16.mxu0 0
    %1948 = vmatpush1.bf16.msra.mxu0 0
    %1949 = vmatprep.subr.bf16.mxu0 0
    %1950 = vmatpush1.bf16.msra.mxu0 0
    %1951 = vmatprep.subr.bf16.mxu0 0
    %1952 = vmatpush1.bf16.msra.mxu0 0
    %1953 = vmatprep.mubr.bf16.mxu0 0
    %1954 = vmatmul.mubr.bf16.gmra.mrb[0].mxu0 %v1919
    %v1955 = vpop.f32.mrb[0].mxu0
    %v1956 = vadd.f32 %v1871, %v1955
    %v1957 = vpop.f32.mrb[0].mxu0
    %v1958 = vadd.f32 %v1875, %v1957
    %v1959 = vpop.f32.mrb[0].mxu0
    %v1960 = vadd.f32 %v1871, %v1959
    %v1961 = vpop.f32.mrb[0].mxu0
    %v1962 = vadd.f32 %v1875, %v1961
    %1963 = vdwg.mxu0
    %v1964 = vpack.c.bf16 %v1956, %v1956
    %v1965 = vpack.c.bf16 %v1960, %v1960
    %1967 = vrot.lane.b32.xlu0 %v1964, 64
    %v1968 = vpop.permute.xlu0 %1967
    %v1970 = vsel %vm454, %v1964, 0
    %v1973 = vsel %vm454, %v1968, 0
    %1975 = vmatprep.subr.bf16.mxu0 0
    %1976 = vmatpush1.bf16.xpose.msra.mxu0 %v1973
    %1977 = vmatprep.subr.bf16.mxu0 0
    %1978 = vmatpush1.bf16.xpose.msra.mxu0 0
    %1979 = vmatprep.subr.bf16.mxu0 0
    %1980 = vmatpush1.bf16.xpose.msra.mxu0 0
    %1981 = vmatprep.subr.bf16.mxu0 0
    %1982 = vmatpush1.bf16.xpose.msra.mxu0 0
    %1983 = vmatprep.subr.bf16.mxu0 0
    %1984 = vmatpush1.bf16.xpose.msra.mxu0 0
    %1985 = vmatprep.subr.bf16.mxu0 0
    %1986 = vmatpush1.bf16.xpose.msra.mxu0 0
    %1987 = vmatprep.subr.bf16.mxu0 0
    %1988 = vmatpush1.bf16.xpose.msra.mxu0 0
    %1989 = vmatprep.subr.bf16.mxu0 0
    %1990 = vmatpush1.bf16.xpose.msra.mxu0 0
    %1991 = vmatprep.subr.bf16.mxu0 0
    %1992 = vmatpush1.bf16.xpose.msra.mxu0 0
    %1993 = vmatprep.subr.bf16.mxu0 0
    %1994 = vmatpush1.bf16.xpose.msra.mxu0 0
    %1995 = vmatprep.subr.bf16.mxu0 0
    %1996 = vmatpush1.bf16.xpose.msra.mxu0 0
    %1997 = vmatprep.subr.bf16.mxu0 0
    %1998 = vmatpush1.bf16.xpose.msra.mxu0 0
    %1999 = vmatprep.subr.bf16.mxu0 0
    %2000 = vmatpush1.bf16.xpose.msra.mxu0 0
    %2001 = vmatprep.subr.bf16.mxu0 0
    %2002 = vmatpush1.bf16.xpose.msra.mxu0 0
    %2003 = vmatprep.subr.bf16.mxu0 0
    %2004 = vmatpush1.bf16.xpose.msra.mxu0 0
    %2005 = vmatprep.subr.bf16.mxu0 0
    %2006 = vmatpush1.bf16.xpose.msra.mxu0 0
    %2007 = vmatprep.mubr.bf16.mxu0 0
    %2008 = vmatmul.mubr.bf16.gmra.mrb[0].mxu0 %v1970
    %v2009 = vpop.f32.mrb[0].mxu0
    %v2010 = vadd.f32 %v73, %v2009
    %v2011 = vpop.f32.mrb[0].mxu0
    %v2012 = vpop.f32.mrb[0].mxu0
    %v2013 = vpop.f32.mrb[0].mxu0
    %2014 = vdwg.mxu0
    %2016 = vrot.lane.b32.xlu0 %v1965, 64
    %v2017 = vpop.permute.xlu0 %2016
    %v2019 = vsel %vm454, %v1965, 0
    %v2022 = vsel %vm454, %v2017, 0
    %2024 = vmatprep.subr.bf16.mxu0 0
    %2025 = vmatpush1.bf16.xpose.msra.mxu0 %v2022
    %2026 = vmatprep.subr.bf16.mxu0 0
    %2027 = vmatpush1.bf16.xpose.msra.mxu0 0
    %2028 = vmatprep.subr.bf16.mxu0 0
    %2029 = vmatpush1.bf16.xpose.msra.mxu0 0
    %2030 = vmatprep.subr.bf16.mxu0 0
    %2031 = vmatpush1.bf16.xpose.msra.mxu0 0
    %2032 = vmatprep.subr.bf16.mxu0 0
    %2033 = vmatpush1.bf16.xpose.msra.mxu0 0
    %2034 = vmatprep.subr.bf16.mxu0 0
    %2035 = vmatpush1.bf16.xpose.msra.mxu0 0
    %2036 = vmatprep.subr.bf16.mxu0 0
    %2037 = vmatpush1.bf16.xpose.msra.mxu0 0
    %2038 = vmatprep.subr.bf16.mxu0 0
    %2039 = vmatpush1.bf16.xpose.msra.mxu0 0
    %2040 = vmatprep.subr.bf16.mxu0 0
    %2041 = vmatpush1.bf16.xpose.msra.mxu0 0
    %2042 = vmatprep.subr.bf16.mxu0 0
    %2043 = vmatpush1.bf16.xpose.msra.mxu0 0
    %2044 = vmatprep.subr.bf16.mxu0 0
    %2045 = vmatpush1.bf16.xpose.msra.mxu0 0
    %2046 = vmatprep.subr.bf16.mxu0 0
    %2047 = vmatpush1.bf16.xpose.msra.mxu0 0
    %2048 = vmatprep.subr.bf16.mxu0 0
    %2049 = vmatpush1.bf16.xpose.msra.mxu0 0
    %2050 = vmatprep.subr.bf16.mxu0 0
    %2051 = vmatpush1.bf16.xpose.msra.mxu0 0
    %2052 = vmatprep.subr.bf16.mxu0 0
    %2053 = vmatpush1.bf16.xpose.msra.mxu0 0
    %2054 = vmatprep.subr.bf16.mxu0 0
    %2055 = vmatpush1.bf16.xpose.msra.mxu0 0
    %2056 = vmatprep.mubr.bf16.mxu0 0
    %2057 = vmatmul.mubr.bf16.gmra.mrb[0].mxu0 %v2019
    %v2058 = vpop.f32.mrb[0].mxu0
    %v2059 = vadd.f32 %v73, %v2058
    %v2060 = vpop.f32.mrb[0].mxu0
    %v2061 = vpop.f32.mrb[0].mxu0
    %v2062 = vpop.f32.mrb[0].mxu0
    %2063 = vdwg.mxu0
    %v2064 = vsel %vm550, %v2010, -inf
    %2065 = vmax.xlane.f32.xlu0 %v2064
    %v2066 = vpop.xlane.xlu0 %2065
    %v2067 = vsel %vm550, %v2059, -inf
    %2068 = vmax.xlane.f32.xlu0 %v2067
    %v2069 = vpop.xlane.xlu0 %2068
    %v2070 = vsub.f32 %v2010, %v2066
    %v2071 = vsub.f32 %v2059, %v2069
    %v2072 = vmul.f32 %v2070, 1.442695
    %v2073 = vpow.pop %v2072
    %v2074 = vmul.f32 %v2071, 1.442695
    %v2075 = vpow.pop %v2074
    %v2076 = vsel %vm550, %v2073, 0.0
    %2077 = vadd.xlane.f32.xlu0 %v2076
    %v2078 = vpop.xlane.xlu0 %2077
    %v2079 = vsel %vm550, %v2075, 0.0
    %2080 = vadd.xlane.f32.xlu0 %v2079
    %v2081 = vpop.xlane.xlu0 %2080
    %v2082 = vrcp.pop %v2078
    %v2083 = vrcp.pop %v2081
    %v2084 = vmul.f32 %v2073, %v2082
    %v2085 = vmul.f32 %v2075, %v2083
    %v2086 = vpack.c.bf16 %v2084, %v2084
    %v2087 = vpack.c.bf16 %v2085, %v2085
    %v2088 = vpack.c.bf16 %v1958, %v1958
    %v2089 = vpack.c.bf16 %v1962, %v1962
    %v2091 = vsel %vm550, %v2086, 0
    %v2094 = vsel %vm580, %v2088, 0
    %2096 = vmatprep.subr.bf16.mxu0 0
    %2097 = vmatpush1.bf16.msra.mxu0 %v2094
    %2098 = vmatprep.subr.bf16.mxu0 0
    %2099 = vmatpush1.bf16.msra.mxu0 0
    %2100 = vmatprep.subr.bf16.mxu0 0
    %2101 = vmatpush1.bf16.msra.mxu0 0
    %2102 = vmatprep.subr.bf16.mxu0 0
    %2103 = vmatpush1.bf16.msra.mxu0 0
    %2104 = vmatprep.subr.bf16.mxu0 0
    %2105 = vmatpush1.bf16.msra.mxu0 0
    %2106 = vmatprep.subr.bf16.mxu0 0
    %2107 = vmatpush1.bf16.msra.mxu0 0
    %2108 = vmatprep.subr.bf16.mxu0 0
    %2109 = vmatpush1.bf16.msra.mxu0 0
    %2110 = vmatprep.subr.bf16.mxu0 0
    %2111 = vmatpush1.bf16.msra.mxu0 0
    %2112 = vmatprep.subr.bf16.mxu0 0
    %2113 = vmatpush1.bf16.msra.mxu0 0
    %2114 = vmatprep.subr.bf16.mxu0 0
    %2115 = vmatpush1.bf16.msra.mxu0 0
    %2116 = vmatprep.subr.bf16.mxu0 0
    %2117 = vmatpush1.bf16.msra.mxu0 0
    %2118 = vmatprep.subr.bf16.mxu0 0
    %2119 = vmatpush1.bf16.msra.mxu0 0
    %2120 = vmatprep.subr.bf16.mxu0 0
    %2121 = vmatpush1.bf16.msra.mxu0 0
    %2122 = vmatprep.subr.bf16.mxu0 0
    %2123 = vmatpush1.bf16.msra.mxu0 0
    %2124 = vmatprep.subr.bf16.mxu0 0
    %2125 = vmatpush1.bf16.msra.mxu0 0
    %2126 = vmatprep.subr.bf16.mxu0 0
    %2127 = vmatpush1.bf16.msra.mxu0 0
    %2128 = vmatprep.mubr.bf16.mxu0 0
    %2129 = vmatmul.mubr.bf16.gmra.mrb[0].mxu0 %v2091
    %v2130 = vpop.f32.mrb[0].mxu0
    %v2131 = vadd.f32 0.0, %v2130
    %v2132 = vpop.f32.mrb[0].mxu0
    %v2133 = vpop.f32.mrb[0].mxu0
    %v2134 = vpop.f32.mrb[0].mxu0
    %2135 = vdwg.mxu0
    %v2137 = vsel %vm550, %v2087, 0
    %v2140 = vsel %vm580, %v2089, 0
    %2142 = vmatprep.subr.bf16.mxu0 0
    %2143 = vmatpush1.bf16.msra.mxu0 %v2140
    %2144 = vmatprep.subr.bf16.mxu0 0
    %2145 = vmatpush1.bf16.msra.mxu0 0
    %2146 = vmatprep.subr.bf16.mxu0 0
    %2147 = vmatpush1.bf16.msra.mxu0 0
    %2148 = vmatprep.subr.bf16.mxu0 0
    %2149 = vmatpush1.bf16.msra.mxu0 0
    %2150 = vmatprep.subr.bf16.mxu0 0
    %2151 = vmatpush1.bf16.msra.mxu0 0
    %2152 = vmatprep.subr.bf16.mxu0 0
    %2153 = vmatpush1.bf16.msra.mxu0 0
    %2154 = vmatprep.subr.bf16.mxu0 0
    %2155 = vmatpush1.bf16.msra.mxu0 0
    %2156 = vmatprep.subr.bf16.mxu0 0
    %2157 = vmatpush1.bf16.msra.mxu0 0
    %2158 = vmatprep.subr.bf16.mxu0 0
    %2159 = vmatpush1.bf16.msra.mxu0 0
    %2160 = vmatprep.subr.bf16.mxu0 0
    %2161 = vmatpush1.bf16.msra.mxu0 0
    %2162 = vmatprep.subr.bf16.mxu0 0
    %2163 = vmatpush1.bf16.msra.mxu0 0
    %2164 = vmatprep.subr.bf16.mxu0 0
    %2165 = vmatpush1.bf16.msra.mxu0 0
    %2166 = vmatprep.subr.bf16.mxu0 0
    %2167 = vmatpush1.bf16.msra.mxu0 0
    %2168 = vmatprep.subr.bf16.mxu0 0
    %2169 = vmatpush1.bf16.msra.mxu0 0
    %2170 = vmatprep.subr.bf16.mxu0 0
    %2171 = vmatpush1.bf16.msra.mxu0 0
    %2172 = vmatprep.subr.bf16.mxu0 0
    %2173 = vmatpush1.bf16.msra.mxu0 0
    %2174 = vmatprep.mubr.bf16.mxu0 0
    %2175 = vmatmul.mubr.bf16.gmra.mrb[0].mxu0 %v2137
    %v2176 = vpop.f32.mrb[0].mxu0
    %v2177 = vadd.f32 0.0, %v2176
    %v2178 = vpop.f32.mrb[0].mxu0
    %v2179 = vpop.f32.mrb[0].mxu0
    %v2180 = vpop.f32.mrb[0].mxu0
    %2181 = vdwg.mxu0
    %2182 = vrot.lane.b32.xlu0 %v1964, 112
    %v2183 = vpop.permute.xlu0 %2182
    %2184 = vrot.lane.b32.xlu0 %v1964, 48
    %v2185 = vpop.permute.xlu0 %2184
    %v2187 = vsel %vm454, %v2183, 0
    %v2190 = vsel %vm454, %v2185, 0
    %2192 = vmatprep.subr.bf16.mxu0 0
    %2193 = vmatpush1.bf16.xpose.msra.mxu0 %v2190
    %2194 = vmatprep.subr.bf16.mxu0 0
    %2195 = vmatpush1.bf16.xpose.msra.mxu0 0
    %2196 = vmatprep.subr.bf16.mxu0 0
    %2197 = vmatpush1.bf16.xpose.msra.mxu0 0
    %2198 = vmatprep.subr.bf16.mxu0 0
    %2199 = vmatpush1.bf16.xpose.msra.mxu0 0
    %2200 = vmatprep.subr.bf16.mxu0 0
    %2201 = vmatpush1.bf16.xpose.msra.mxu0 0
    %2202 = vmatprep.subr.bf16.mxu0 0
    %2203 = vmatpush1.bf16.xpose.msra.mxu0 0
    %2204 = vmatprep.subr.bf16.mxu0 0
    %2205 = vmatpush1.bf16.xpose.msra.mxu0 0
    %2206 = vmatprep.subr.bf16.mxu0 0
    %2207 = vmatpush1.bf16.xpose.msra.mxu0 0
    %2208 = vmatprep.subr.bf16.mxu0 0
    %2209 = vmatpush1.bf16.xpose.msra.mxu0 0
    %2210 = vmatprep.subr.bf16.mxu0 0
    %2211 = vmatpush1.bf16.xpose.msra.mxu0 0
    %2212 = vmatprep.subr.bf16.mxu0 0
    %2213 = vmatpush1.bf16.xpose.msra.mxu0 0
    %2214 = vmatprep.subr.bf16.mxu0 0
    %2215 = vmatpush1.bf16.xpose.msra.mxu0 0
    %2216 = vmatprep.subr.bf16.mxu0 0
    %2217 = vmatpush1.bf16.xpose.msra.mxu0 0
    %2218 = vmatprep.subr.bf16.mxu0 0
    %2219 = vmatpush1.bf16.xpose.msra.mxu0 0
    %2220 = vmatprep.subr.bf16.mxu0 0
    %2221 = vmatpush1.bf16.xpose.msra.mxu0 0
    %2222 = vmatprep.subr.bf16.mxu0 0
    %2223 = vmatpush1.bf16.xpose.msra.mxu0 0
    %2224 = vmatprep.mubr.bf16.mxu0 0
    %2225 = vmatmul.mubr.bf16.gmra.mrb[0].mxu0 %v2187
    %v2226 = vpop.f32.mrb[0].mxu0
    %v2227 = vadd.f32 %v73, %v2226
    %v2228 = vpop.f32.mrb[0].mxu0
    %v2229 = vpop.f32.mrb[0].mxu0
    %v2230 = vpop.f32.mrb[0].mxu0
    %2231 = vdwg.mxu0
    %2232 = vrot.lane.b32.xlu0 %v1965, 112
    %v2233 = vpop.permute.xlu0 %2232
    %2234 = vrot.lane.b32.xlu0 %v1965, 48
    %v2235 = vpop.permute.xlu0 %2234
    %v2237 = vsel %vm454, %v2233, 0
    %v2240 = vsel %vm454, %v2235, 0
    %2242 = vmatprep.subr.bf16.mxu0 0
    %2243 = vmatpush1.bf16.xpose.msra.mxu0 %v2240
    %2244 = vmatprep.subr.bf16.mxu0 0
    %2245 = vmatpush1.bf16.xpose.msra.mxu0 0
    %2246 = vmatprep.subr.bf16.mxu0 0
    %2247 = vmatpush1.bf16.xpose.msra.mxu0 0
    %2248 = vmatprep.subr.bf16.mxu0 0
    %2249 = vmatpush1.bf16.xpose.msra.mxu0 0
    %2250 = vmatprep.subr.bf16.mxu0 0
    %2251 = vmatpush1.bf16.xpose.msra.mxu0 0
    %2252 = vmatprep.subr.bf16.mxu0 0
    %2253 = vmatpush1.bf16.xpose.msra.mxu0 0
    %2254 = vmatprep.subr.bf16.mxu0 0
    %2255 = vmatpush1.bf16.xpose.msra.mxu0 0
    %2256 = vmatprep.subr.bf16.mxu0 0
    %2257 = vmatpush1.bf16.xpose.msra.mxu0 0
    %2258 = vmatprep.subr.bf16.mxu0 0
    %2259 = vmatpush1.bf16.xpose.msra.mxu0 0
    %2260 = vmatprep.subr.bf16.mxu0 0
    %2261 = vmatpush1.bf16.xpose.msra.mxu0 0
    %2262 = vmatprep.subr.bf16.mxu0 0
    %2263 = vmatpush1.bf16.xpose.msra.mxu0 0
    %2264 = vmatprep.subr.bf16.mxu0 0
    %2265 = vmatpush1.bf16.xpose.msra.mxu0 0
    %2266 = vmatprep.subr.bf16.mxu0 0
    %2267 = vmatpush1.bf16.xpose.msra.mxu0 0
    %2268 = vmatprep.subr.bf16.mxu0 0
    %2269 = vmatpush1.bf16.xpose.msra.mxu0 0
    %2270 = vmatprep.subr.bf16.mxu0 0
    %2271 = vmatpush1.bf16.xpose.msra.mxu0 0
    %2272 = vmatprep.subr.bf16.mxu0 0
    %2273 = vmatpush1.bf16.xpose.msra.mxu0 0
    %2274 = vmatprep.mubr.bf16.mxu0 0
    %2275 = vmatmul.mubr.bf16.gmra.mrb[0].mxu0 %v2237
    %v2276 = vpop.f32.mrb[0].mxu0
    %v2277 = vadd.f32 %v73, %v2276
    %v2278 = vpop.f32.mrb[0].mxu0
    %v2279 = vpop.f32.mrb[0].mxu0
    %v2280 = vpop.f32.mrb[0].mxu0
    %2281 = vdwg.mxu0
    %v2282 = vsel %vm550, %v2227, -inf
    %2283 = vmax.xlane.f32.xlu0 %v2282
    %v2284 = vpop.xlane.xlu0 %2283
    %v2285 = vsel %vm550, %v2277, -inf
    %2286 = vmax.xlane.f32.xlu0 %v2285
    %v2287 = vpop.xlane.xlu0 %2286
    %v2288 = vsub.f32 %v2227, %v2284
    %v2289 = vsub.f32 %v2277, %v2287
    %v2290 = vmul.f32 %v2288, 1.442695
    %v2291 = vpow.pop %v2290
    %v2292 = vmul.f32 %v2289, 1.442695
    %v2293 = vpow.pop %v2292
    %v2294 = vsel %vm550, %v2291, 0.0
    %2295 = vadd.xlane.f32.xlu0 %v2294
    %v2296 = vpop.xlane.xlu0 %2295
    %v2297 = vsel %vm550, %v2293, 0.0
    %2298 = vadd.xlane.f32.xlu0 %v2297
    %v2299 = vpop.xlane.xlu0 %2298
    %v2300 = vrcp.pop %v2296
    %v2301 = vrcp.pop %v2299
    %v2302 = vmul.f32 %v2291, %v2300
    %v2303 = vmul.f32 %v2293, %v2301
    %v2304 = vpack.c.bf16 %v2302, %v2302
    %v2305 = vpack.c.bf16 %v2303, %v2303
    %2307 = vrot.lane.b32.xlu0 %v2088, 112
    %v2308 = vpop.permute.xlu0 %2307
    %v2310 = vsel %vm550, %v2304, 0
    %v2313 = vsel %vm580, %v2308, 0
    %2315 = vmatprep.subr.bf16.mxu0 0
    %2316 = vmatpush1.bf16.msra.mxu0 %v2313
    %2317 = vmatprep.subr.bf16.mxu0 0
    %2318 = vmatpush1.bf16.msra.mxu0 0
    %2319 = vmatprep.subr.bf16.mxu0 0
    %2320 = vmatpush1.bf16.msra.mxu0 0
    %2321 = vmatprep.subr.bf16.mxu0 0
    %2322 = vmatpush1.bf16.msra.mxu0 0
    %2323 = vmatprep.subr.bf16.mxu0 0
    %2324 = vmatpush1.bf16.msra.mxu0 0
    %2325 = vmatprep.subr.bf16.mxu0 0
    %2326 = vmatpush1.bf16.msra.mxu0 0
    %2327 = vmatprep.subr.bf16.mxu0 0
    %2328 = vmatpush1.bf16.msra.mxu0 0
    %2329 = vmatprep.subr.bf16.mxu0 0
    %2330 = vmatpush1.bf16.msra.mxu0 0
    %2331 = vmatprep.subr.bf16.mxu0 0
    %2332 = vmatpush1.bf16.msra.mxu0 0
    %2333 = vmatprep.subr.bf16.mxu0 0
    %2334 = vmatpush1.bf16.msra.mxu0 0
    %2335 = vmatprep.subr.bf16.mxu0 0
    %2336 = vmatpush1.bf16.msra.mxu0 0
    %2337 = vmatprep.subr.bf16.mxu0 0
    %2338 = vmatpush1.bf16.msra.mxu0 0
    %2339 = vmatprep.subr.bf16.mxu0 0
    %2340 = vmatpush1.bf16.msra.mxu0 0
    %2341 = vmatprep.subr.bf16.mxu0 0
    %2342 = vmatpush1.bf16.msra.mxu0 0
    %2343 = vmatprep.subr.bf16.mxu0 0
    %2344 = vmatpush1.bf16.msra.mxu0 0
    %2345 = vmatprep.subr.bf16.mxu0 0
    %2346 = vmatpush1.bf16.msra.mxu0 0
    %2347 = vmatprep.mubr.bf16.mxu0 0
    %2348 = vmatmul.mubr.bf16.gmra.mrb[0].mxu0 %v2310
    %v2349 = vpop.f32.mrb[0].mxu0
    %v2350 = vadd.f32 0.0, %v2349
    %v2351 = vpop.f32.mrb[0].mxu0
    %v2352 = vpop.f32.mrb[0].mxu0
    %v2353 = vpop.f32.mrb[0].mxu0
    %2354 = vdwg.mxu0
    %2356 = vrot.lane.b32.xlu0 %v2089, 112
    %v2357 = vpop.permute.xlu0 %2356
    %v2359 = vsel %vm550, %v2305, 0
    %v2362 = vsel %vm580, %v2357, 0
    %2364 = vmatprep.subr.bf16.mxu0 0
    %2365 = vmatpush1.bf16.msra.mxu0 %v2362
    %2366 = vmatprep.subr.bf16.mxu0 0
    %2367 = vmatpush1.bf16.msra.mxu0 0
    %2368 = vmatprep.subr.bf16.mxu0 0
    %2369 = vmatpush1.bf16.msra.mxu0 0
    %2370 = vmatprep.subr.bf16.mxu0 0
    %2371 = vmatpush1.bf16.msra.mxu0 0
    %2372 = vmatprep.subr.bf16.mxu0 0
    %2373 = vmatpush1.bf16.msra.mxu0 0
    %2374 = vmatprep.subr.bf16.mxu0 0
    %2375 = vmatpush1.bf16.msra.mxu0 0
    %2376 = vmatprep.subr.bf16.mxu0 0
    %2377 = vmatpush1.bf16.msra.mxu0 0
    %2378 = vmatprep.subr.bf16.mxu0 0
    %2379 = vmatpush1.bf16.msra.mxu0 0
    %2380 = vmatprep.subr.bf16.mxu0 0
    %2381 = vmatpush1.bf16.msra.mxu0 0
    %2382 = vmatprep.subr.bf16.mxu0 0
    %2383 = vmatpush1.bf16.msra.mxu0 0
    %2384 = vmatprep.subr.bf16.mxu0 0
    %2385 = vmatpush1.bf16.msra.mxu0 0
    %2386 = vmatprep.subr.bf16.mxu0 0
    %2387 = vmatpush1.bf16.msra.mxu0 0
    %2388 = vmatprep.subr.bf16.mxu0 0
    %2389 = vmatpush1.bf16.msra.mxu0 0
    %2390 = vmatprep.subr.bf16.mxu0 0
    %2391 = vmatpush1.bf16.msra.mxu0 0
    %2392 = vmatprep.subr.bf16.mxu0 0
    %2393 = vmatpush1.bf16.msra.mxu0 0
    %2394 = vmatprep.subr.bf16.mxu0 0
    %2395 = vmatpush1.bf16.msra.mxu0 0
    %2396 = vmatprep.mubr.bf16.mxu0 0
    %2397 = vmatmul.mubr.bf16.gmra.mrb[0].mxu0 %v2359
    %v2398 = vpop.f32.mrb[0].mxu0
    %v2399 = vadd.f32 0.0, %v2398
    %v2400 = vpop.f32.mrb[0].mxu0
    %v2401 = vpop.f32.mrb[0].mxu0
    %v2402 = vpop.f32.mrb[0].mxu0
    %2403 = vdwg.mxu0
    %2404 = vrot.lane.b32.xlu0 %v1964, 96
    %v2405 = vpop.permute.xlu0 %2404
    %2406 = vrot.lane.b32.xlu0 %v1964, 32
    %v2407 = vpop.permute.xlu0 %2406
    %v2409 = vsel %vm454, %v2405, 0
    %v2412 = vsel %vm454, %v2407, 0
    %2414 = vmatprep.subr.bf16.mxu0 0
    %2415 = vmatpush1.bf16.xpose.msra.mxu0 %v2412
    %2416 = vmatprep.subr.bf16.mxu0 0
    %2417 = vmatpush1.bf16.xpose.msra.mxu0 0
    %2418 = vmatprep.subr.bf16.mxu0 0
    %2419 = vmatpush1.bf16.xpose.msra.mxu0 0
    %2420 = vmatprep.subr.bf16.mxu0 0
    %2421 = vmatpush1.bf16.xpose.msra.mxu0 0
    %2422 = vmatprep.subr.bf16.mxu0 0
    %2423 = vmatpush1.bf16.xpose.msra.mxu0 0
    %2424 = vmatprep.subr.bf16.mxu0 0
    %2425 = vmatpush1.bf16.xpose.msra.mxu0 0
    %2426 = vmatprep.subr.bf16.mxu0 0
    %2427 = vmatpush1.bf16.xpose.msra.mxu0 0
    %2428 = vmatprep.subr.bf16.mxu0 0
    %2429 = vmatpush1.bf16.xpose.msra.mxu0 0
    %2430 = vmatprep.subr.bf16.mxu0 0
    %2431 = vmatpush1.bf16.xpose.msra.mxu0 0
    %2432 = vmatprep.subr.bf16.mxu0 0
    %2433 = vmatpush1.bf16.xpose.msra.mxu0 0
    %2434 = vmatprep.subr.bf16.mxu0 0
    %2435 = vmatpush1.bf16.xpose.msra.mxu0 0
    %2436 = vmatprep.subr.bf16.mxu0 0
    %2437 = vmatpush1.bf16.xpose.msra.mxu0 0
    %2438 = vmatprep.subr.bf16.mxu0 0
    %2439 = vmatpush1.bf16.xpose.msra.mxu0 0
    %2440 = vmatprep.subr.bf16.mxu0 0
    %2441 = vmatpush1.bf16.xpose.msra.mxu0 0
    %2442 = vmatprep.subr.bf16.mxu0 0
    %2443 = vmatpush1.bf16.xpose.msra.mxu0 0
    %2444 = vmatprep.subr.bf16.mxu0 0
    %2445 = vmatpush1.bf16.xpose.msra.mxu0 0
    %2446 = vmatprep.mubr.bf16.mxu0 0
    %2447 = vmatmul.mubr.bf16.gmra.mrb[0].mxu0 %v2409
    %v2448 = vpop.f32.mrb[0].mxu0
    %v2449 = vadd.f32 %v73, %v2448
    %v2450 = vpop.f32.mrb[0].mxu0
    %v2451 = vpop.f32.mrb[0].mxu0
    %v2452 = vpop.f32.mrb[0].mxu0
    %2453 = vdwg.mxu0
    %2454 = vrot.lane.b32.xlu0 %v1965, 96
    %v2455 = vpop.permute.xlu0 %2454
    %2456 = vrot.lane.b32.xlu0 %v1965, 32
    %v2457 = vpop.permute.xlu0 %2456
    %v2459 = vsel %vm454, %v2455, 0
    %v2462 = vsel %vm454, %v2457, 0
    %2464 = vmatprep.subr.bf16.mxu0 0
    %2465 = vmatpush1.bf16.xpose.msra.mxu0 %v2462
    %2466 = vmatprep.subr.bf16.mxu0 0
    %2467 = vmatpush1.bf16.xpose.msra.mxu0 0
    %2468 = vmatprep.subr.bf16.mxu0 0
    %2469 = vmatpush1.bf16.xpose.msra.mxu0 0
    %2470 = vmatprep.subr.bf16.mxu0 0
    %2471 = vmatpush1.bf16.xpose.msra.mxu0 0
    %2472 = vmatprep.subr.bf16.mxu0 0
    %2473 = vmatpush1.bf16.xpose.msra.mxu0 0
    %2474 = vmatprep.subr.bf16.mxu0 0
    %2475 = vmatpush1.bf16.xpose.msra.mxu0 0
    %2476 = vmatprep.subr.bf16.mxu0 0
    %2477 = vmatpush1.bf16.xpose.msra.mxu0 0
    %2478 = vmatprep.subr.bf16.mxu0 0
    %2479 = vmatpush1.bf16.xpose.msra.mxu0 0
    %2480 = vmatprep.subr.bf16.mxu0 0
    %2481 = vmatpush1.bf16.xpose.msra.mxu0 0
    %2482 = vmatprep.subr.bf16.mxu0 0
    %2483 = vmatpush1.bf16.xpose.msra.mxu0 0
    %2484 = vmatprep.subr.bf16.mxu0 0
    %2485 = vmatpush1.bf16.xpose.msra.mxu0 0
    %2486 = vmatprep.subr.bf16.mxu0 0
    %2487 = vmatpush1.bf16.xpose.msra.mxu0 0
    %2488 = vmatprep.subr.bf16.mxu0 0
    %2489 = vmatpush1.bf16.xpose.msra.mxu0 0
    %2490 = vmatprep.subr.bf16.mxu0 0
    %2491 = vmatpush1.bf16.xpose.msra.mxu0 0
    %2492 = vmatprep.subr.bf16.mxu0 0
    %2493 = vmatpush1.bf16.xpose.msra.mxu0 0
    %2494 = vmatprep.subr.bf16.mxu0 0
    %2495 = vmatpush1.bf16.xpose.msra.mxu0 0
    %2496 = vmatprep.mubr.bf16.mxu0 0
    %2497 = vmatmul.mubr.bf16.gmra.mrb[0].mxu0 %v2459
    %v2498 = vpop.f32.mrb[0].mxu0
    %v2499 = vadd.f32 %v73, %v2498
    %v2500 = vpop.f32.mrb[0].mxu0
    %v2501 = vpop.f32.mrb[0].mxu0
    %v2502 = vpop.f32.mrb[0].mxu0
    %2503 = vdwg.mxu0
    %v2504 = vsel %vm550, %v2449, -inf
    %2505 = vmax.xlane.f32.xlu0 %v2504
    %v2506 = vpop.xlane.xlu0 %2505
    %v2507 = vsel %vm550, %v2499, -inf
    %2508 = vmax.xlane.f32.xlu0 %v2507
    %v2509 = vpop.xlane.xlu0 %2508
    %v2510 = vsub.f32 %v2449, %v2506
    %v2511 = vsub.f32 %v2499, %v2509
    %v2512 = vmul.f32 %v2510, 1.442695
    %v2513 = vpow.pop %v2512
    %v2514 = vmul.f32 %v2511, 1.442695
    %v2515 = vpow.pop %v2514
    %v2516 = vsel %vm550, %v2513, 0.0
    %2517 = vadd.xlane.f32.xlu0 %v2516
    %v2518 = vpop.xlane.xlu0 %2517
    %v2519 = vsel %vm550, %v2515, 0.0
    %2520 = vadd.xlane.f32.xlu0 %v2519
    %v2521 = vpop.xlane.xlu0 %2520
    %v2522 = vrcp.pop %v2518
    %v2523 = vrcp.pop %v2521
    %v2524 = vmul.f32 %v2513, %v2522
    %v2525 = vmul.f32 %v2515, %v2523
    %v2526 = vpack.c.bf16 %v2524, %v2524
    %v2527 = vpack.c.bf16 %v2525, %v2525
    %2528 = vrot.lane.b32.xlu0 %v2088, 96
    %v2529 = vpop.permute.xlu0 %2528
    %v2531 = vsel %vm550, %v2526, 0
    %v2534 = vsel %vm580, %v2529, 0
    %2536 = vmatprep.subr.bf16.mxu0 0
    %2537 = vmatpush1.bf16.msra.mxu0 %v2534
    %2538 = vmatprep.subr.bf16.mxu0 0
    %2539 = vmatpush1.bf16.msra.mxu0 0
    %2540 = vmatprep.subr.bf16.mxu0 0
    %2541 = vmatpush1.bf16.msra.mxu0 0
    %2542 = vmatprep.subr.bf16.mxu0 0
    %2543 = vmatpush1.bf16.msra.mxu0 0
    %2544 = vmatprep.subr.bf16.mxu0 0
    %2545 = vmatpush1.bf16.msra.mxu0 0
    %2546 = vmatprep.subr.bf16.mxu0 0
    %2547 = vmatpush1.bf16.msra.mxu0 0
    %2548 = vmatprep.subr.bf16.mxu0 0
    %2549 = vmatpush1.bf16.msra.mxu0 0
    %2550 = vmatprep.subr.bf16.mxu0 0
    %2551 = vmatpush1.bf16.msra.mxu0 0
    %2552 = vmatprep.subr.bf16.mxu0 0
    %2553 = vmatpush1.bf16.msra.mxu0 0
    %2554 = vmatprep.subr.bf16.mxu0 0
    %2555 = vmatpush1.bf16.msra.mxu0 0
    %2556 = vmatprep.subr.bf16.mxu0 0
    %2557 = vmatpush1.bf16.msra.mxu0 0
    %2558 = vmatprep.subr.bf16.mxu0 0
    %2559 = vmatpush1.bf16.msra.mxu0 0
    %2560 = vmatprep.subr.bf16.mxu0 0
    %2561 = vmatpush1.bf16.msra.mxu0 0
    %2562 = vmatprep.subr.bf16.mxu0 0
    %2563 = vmatpush1.bf16.msra.mxu0 0
    %2564 = vmatprep.subr.bf16.mxu0 0
    %2565 = vmatpush1.bf16.msra.mxu0 0
    %2566 = vmatprep.subr.bf16.mxu0 0
    %2567 = vmatpush1.bf16.msra.mxu0 0
    %2568 = vmatprep.mubr.bf16.mxu0 0
    %2569 = vmatmul.mubr.bf16.gmra.mrb[0].mxu0 %v2531
    %v2570 = vpop.f32.mrb[0].mxu0
    %v2571 = vadd.f32 0.0, %v2570
    %v2572 = vpop.f32.mrb[0].mxu0
    %v2573 = vpop.f32.mrb[0].mxu0
    %v2574 = vpop.f32.mrb[0].mxu0
    %2575 = vdwg.mxu0
    %2576 = vrot.lane.b32.xlu0 %v2089, 96
    %v2577 = vpop.permute.xlu0 %2576
    %v2579 = vsel %vm550, %v2527, 0
    %v2582 = vsel %vm580, %v2577, 0
    %2584 = vmatprep.subr.bf16.mxu0 0
    %2585 = vmatpush1.bf16.msra.mxu0 %v2582
    %2586 = vmatprep.subr.bf16.mxu0 0
    %2587 = vmatpush1.bf16.msra.mxu0 0
    %2588 = vmatprep.subr.bf16.mxu0 0
    %2589 = vmatpush1.bf16.msra.mxu0 0
    %2590 = vmatprep.subr.bf16.mxu0 0
    %2591 = vmatpush1.bf16.msra.mxu0 0
    %2592 = vmatprep.subr.bf16.mxu0 0
    %2593 = vmatpush1.bf16.msra.mxu0 0
    %2594 = vmatprep.subr.bf16.mxu0 0
    %2595 = vmatpush1.bf16.msra.mxu0 0
    %2596 = vmatprep.subr.bf16.mxu0 0
    %2597 = vmatpush1.bf16.msra.mxu0 0
    %2598 = vmatprep.subr.bf16.mxu0 0
    %2599 = vmatpush1.bf16.msra.mxu0 0
    %2600 = vmatprep.subr.bf16.mxu0 0
    %2601 = vmatpush1.bf16.msra.mxu0 0
    %2602 = vmatprep.subr.bf16.mxu0 0
    %2603 = vmatpush1.bf16.msra.mxu0 0
    %2604 = vmatprep.subr.bf16.mxu0 0
    %2605 = vmatpush1.bf16.msra.mxu0 0
    %2606 = vmatprep.subr.bf16.mxu0 0
    %2607 = vmatpush1.bf16.msra.mxu0 0
    %2608 = vmatprep.subr.bf16.mxu0 0
    %2609 = vmatpush1.bf16.msra.mxu0 0
    %2610 = vmatprep.subr.bf16.mxu0 0
    %2611 = vmatpush1.bf16.msra.mxu0 0
    %2612 = vmatprep.subr.bf16.mxu0 0
    %2613 = vmatpush1.bf16.msra.mxu0 0
    %2614 = vmatprep.subr.bf16.mxu0 0
    %2615 = vmatpush1.bf16.msra.mxu0 0
    %2616 = vmatprep.mubr.bf16.mxu0 0
    %2617 = vmatmul.mubr.bf16.gmra.mrb[0].mxu0 %v2579
    %v2618 = vpop.f32.mrb[0].mxu0
    %v2619 = vadd.f32 0.0, %v2618
    %v2620 = vpop.f32.mrb[0].mxu0
    %v2621 = vpop.f32.mrb[0].mxu0
    %v2622 = vpop.f32.mrb[0].mxu0
    %2623 = vdwg.mxu0
    %2624 = vrot.lane.b32.xlu0 %v1964, 80
    %v2625 = vpop.permute.xlu0 %2624
    %2626 = vrot.lane.b32.xlu0 %v1964, 16
    %v2627 = vpop.permute.xlu0 %2626
    %v2629 = vsel %vm454, %v2625, 0
    %v2632 = vsel %vm454, %v2627, 0
    %2634 = vmatprep.subr.bf16.mxu0 0
    %2635 = vmatpush1.bf16.xpose.msra.mxu0 %v2632
    %2636 = vmatprep.subr.bf16.mxu0 0
    %2637 = vmatpush1.bf16.xpose.msra.mxu0 0
    %2638 = vmatprep.subr.bf16.mxu0 0
    %2639 = vmatpush1.bf16.xpose.msra.mxu0 0
    %2640 = vmatprep.subr.bf16.mxu0 0
    %2641 = vmatpush1.bf16.xpose.msra.mxu0 0
    %2642 = vmatprep.subr.bf16.mxu0 0
    %2643 = vmatpush1.bf16.xpose.msra.mxu0 0
    %2644 = vmatprep.subr.bf16.mxu0 0
    %2645 = vmatpush1.bf16.xpose.msra.mxu0 0
    %2646 = vmatprep.subr.bf16.mxu0 0
    %2647 = vmatpush1.bf16.xpose.msra.mxu0 0
    %2648 = vmatprep.subr.bf16.mxu0 0
    %2649 = vmatpush1.bf16.xpose.msra.mxu0 0
    %2650 = vmatprep.subr.bf16.mxu0 0
    %2651 = vmatpush1.bf16.xpose.msra.mxu0 0
    %2652 = vmatprep.subr.bf16.mxu0 0
    %2653 = vmatpush1.bf16.xpose.msra.mxu0 0
    %2654 = vmatprep.subr.bf16.mxu0 0
    %2655 = vmatpush1.bf16.xpose.msra.mxu0 0
    %2656 = vmatprep.subr.bf16.mxu0 0
    %2657 = vmatpush1.bf16.xpose.msra.mxu0 0
    %2658 = vmatprep.subr.bf16.mxu0 0
    %2659 = vmatpush1.bf16.xpose.msra.mxu0 0
    %2660 = vmatprep.subr.bf16.mxu0 0
    %2661 = vmatpush1.bf16.xpose.msra.mxu0 0
    %2662 = vmatprep.subr.bf16.mxu0 0
    %2663 = vmatpush1.bf16.xpose.msra.mxu0 0
    %2664 = vmatprep.subr.bf16.mxu0 0
    %2665 = vmatpush1.bf16.xpose.msra.mxu0 0
    %2666 = vmatprep.mubr.bf16.mxu0 0
    %2667 = vmatmul.mubr.bf16.gmra.mrb[0].mxu0 %v2629
    %v2668 = vpop.f32.mrb[0].mxu0
    %v2669 = vadd.f32 %v73, %v2668
    %v2670 = vpop.f32.mrb[0].mxu0
    %v2671 = vpop.f32.mrb[0].mxu0
    %v2672 = vpop.f32.mrb[0].mxu0
    %2673 = vdwg.mxu0
    %2674 = vrot.lane.b32.xlu0 %v1965, 80
    %v2675 = vpop.permute.xlu0 %2674
    %2676 = vrot.lane.b32.xlu0 %v1965, 16
    %v2677 = vpop.permute.xlu0 %2676
    %v2679 = vsel %vm454, %v2675, 0
    %v2682 = vsel %vm454, %v2677, 0
    %2684 = vmatprep.subr.bf16.mxu0 0
    %2685 = vmatpush1.bf16.xpose.msra.mxu0 %v2682
    %2686 = vmatprep.subr.bf16.mxu0 0
    %2687 = vmatpush1.bf16.xpose.msra.mxu0 0
    %2688 = vmatprep.subr.bf16.mxu0 0
    %2689 = vmatpush1.bf16.xpose.msra.mxu0 0
    %2690 = vmatprep.subr.bf16.mxu0 0
    %2691 = vmatpush1.bf16.xpose.msra.mxu0 0
    %2692 = vmatprep.subr.bf16.mxu0 0
    %2693 = vmatpush1.bf16.xpose.msra.mxu0 0
    %2694 = vmatprep.subr.bf16.mxu0 0
    %2695 = vmatpush1.bf16.xpose.msra.mxu0 0
    %2696 = vmatprep.subr.bf16.mxu0 0
    %2697 = vmatpush1.bf16.xpose.msra.mxu0 0
    %2698 = vmatprep.subr.bf16.mxu0 0
    %2699 = vmatpush1.bf16.xpose.msra.mxu0 0
    %2700 = vmatprep.subr.bf16.mxu0 0
    %2701 = vmatpush1.bf16.xpose.msra.mxu0 0
    %2702 = vmatprep.subr.bf16.mxu0 0
    %2703 = vmatpush1.bf16.xpose.msra.mxu0 0
    %2704 = vmatprep.subr.bf16.mxu0 0
    %2705 = vmatpush1.bf16.xpose.msra.mxu0 0
    %2706 = vmatprep.subr.bf16.mxu0 0
    %2707 = vmatpush1.bf16.xpose.msra.mxu0 0
    %2708 = vmatprep.subr.bf16.mxu0 0
    %2709 = vmatpush1.bf16.xpose.msra.mxu0 0
    %2710 = vmatprep.subr.bf16.mxu0 0
    %2711 = vmatpush1.bf16.xpose.msra.mxu0 0
    %2712 = vmatprep.subr.bf16.mxu0 0
    %2713 = vmatpush1.bf16.xpose.msra.mxu0 0
    %2714 = vmatprep.subr.bf16.mxu0 0
    %2715 = vmatpush1.bf16.xpose.msra.mxu0 0
    %2716 = vmatprep.mubr.bf16.mxu0 0
    %2717 = vmatmul.mubr.bf16.gmra.mrb[0].mxu0 %v2679
    %v2718 = vpop.f32.mrb[0].mxu0
    %v2719 = vadd.f32 %v73, %v2718
    %v2720 = vpop.f32.mrb[0].mxu0
    %v2721 = vpop.f32.mrb[0].mxu0
    %v2722 = vpop.f32.mrb[0].mxu0
    %2723 = vdwg.mxu0
    %v2724 = vsel %vm550, %v2669, -inf
    %2725 = vmax.xlane.f32.xlu0 %v2724
    %v2726 = vpop.xlane.xlu0 %2725
    %v2727 = vsel %vm550, %v2719, -inf
    %2728 = vmax.xlane.f32.xlu0 %v2727
    %v2729 = vpop.xlane.xlu0 %2728
    %v2730 = vsub.f32 %v2669, %v2726
    %v2731 = vsub.f32 %v2719, %v2729
    %v2732 = vmul.f32 %v2730, 1.442695
    %v2733 = vpow.pop %v2732
    %v2734 = vmul.f32 %v2731, 1.442695
    %v2735 = vpow.pop %v2734
    %v2736 = vsel %vm550, %v2733, 0.0
    %2737 = vadd.xlane.f32.xlu0 %v2736
    %v2738 = vpop.xlane.xlu0 %2737
    %v2739 = vsel %vm550, %v2735, 0.0
    %2740 = vadd.xlane.f32.xlu0 %v2739
    %v2741 = vpop.xlane.xlu0 %2740
    %v2742 = vrcp.pop %v2738
    %v2743 = vrcp.pop %v2741
    %v2744 = vmul.f32 %v2733, %v2742
    %v2745 = vmul.f32 %v2735, %v2743
    %v2746 = vpack.c.bf16 %v2744, %v2744
    %v2747 = vpack.c.bf16 %v2745, %v2745
    %2748 = vrot.lane.b32.xlu0 %v2088, 80
    %v2749 = vpop.permute.xlu0 %2748
    %v2751 = vsel %vm550, %v2746, 0
    %v2754 = vsel %vm580, %v2749, 0
    %2756 = vmatprep.subr.bf16.mxu0 0
    %2757 = vmatpush1.bf16.msra.mxu0 %v2754
    %2758 = vmatprep.subr.bf16.mxu0 0
    %2759 = vmatpush1.bf16.msra.mxu0 0
    %2760 = vmatprep.subr.bf16.mxu0 0
    %2761 = vmatpush1.bf16.msra.mxu0 0
    %2762 = vmatprep.subr.bf16.mxu0 0
    %2763 = vmatpush1.bf16.msra.mxu0 0
    %2764 = vmatprep.subr.bf16.mxu0 0
    %2765 = vmatpush1.bf16.msra.mxu0 0
    %2766 = vmatprep.subr.bf16.mxu0 0
    %2767 = vmatpush1.bf16.msra.mxu0 0
    %2768 = vmatprep.subr.bf16.mxu0 0
    %2769 = vmatpush1.bf16.msra.mxu0 0
    %2770 = vmatprep.subr.bf16.mxu0 0
    %2771 = vmatpush1.bf16.msra.mxu0 0
    %2772 = vmatprep.subr.bf16.mxu0 0
    %2773 = vmatpush1.bf16.msra.mxu0 0
    %2774 = vmatprep.subr.bf16.mxu0 0
    %2775 = vmatpush1.bf16.msra.mxu0 0
    %2776 = vmatprep.subr.bf16.mxu0 0
    %2777 = vmatpush1.bf16.msra.mxu0 0
    %2778 = vmatprep.subr.bf16.mxu0 0
    %2779 = vmatpush1.bf16.msra.mxu0 0
    %2780 = vmatprep.subr.bf16.mxu0 0
    %2781 = vmatpush1.bf16.msra.mxu0 0
    %2782 = vmatprep.subr.bf16.mxu0 0
    %2783 = vmatpush1.bf16.msra.mxu0 0
    %2784 = vmatprep.subr.bf16.mxu0 0
    %2785 = vmatpush1.bf16.msra.mxu0 0
    %2786 = vmatprep.subr.bf16.mxu0 0
    %2787 = vmatpush1.bf16.msra.mxu0 0
    %2788 = vmatprep.mubr.bf16.mxu0 0
    %2789 = vmatmul.mubr.bf16.gmra.mrb[0].mxu0 %v2751
    %v2790 = vpop.f32.mrb[0].mxu0
    %v2791 = vadd.f32 0.0, %v2790
    %v2792 = vpop.f32.mrb[0].mxu0
    %v2793 = vpop.f32.mrb[0].mxu0
    %v2794 = vpop.f32.mrb[0].mxu0
    %2795 = vdwg.mxu0
    %2796 = vrot.lane.b32.xlu0 %v2089, 80
    %v2797 = vpop.permute.xlu0 %2796
    %v2799 = vsel %vm550, %v2747, 0
    %v2802 = vsel %vm580, %v2797, 0
    %2804 = vmatprep.subr.bf16.mxu0 0
    %2805 = vmatpush1.bf16.msra.mxu0 %v2802
    %2806 = vmatprep.subr.bf16.mxu0 0
    %2807 = vmatpush1.bf16.msra.mxu0 0
    %2808 = vmatprep.subr.bf16.mxu0 0
    %2809 = vmatpush1.bf16.msra.mxu0 0
    %2810 = vmatprep.subr.bf16.mxu0 0
    %2811 = vmatpush1.bf16.msra.mxu0 0
    %2812 = vmatprep.subr.bf16.mxu0 0
    %2813 = vmatpush1.bf16.msra.mxu0 0
    %2814 = vmatprep.subr.bf16.mxu0 0
    %2815 = vmatpush1.bf16.msra.mxu0 0
    %2816 = vmatprep.subr.bf16.mxu0 0
    %2817 = vmatpush1.bf16.msra.mxu0 0
    %2818 = vmatprep.subr.bf16.mxu0 0
    %2819 = vmatpush1.bf16.msra.mxu0 0
    %2820 = vmatprep.subr.bf16.mxu0 0
    %2821 = vmatpush1.bf16.msra.mxu0 0
    %2822 = vmatprep.subr.bf16.mxu0 0
    %2823 = vmatpush1.bf16.msra.mxu0 0
    %2824 = vmatprep.subr.bf16.mxu0 0
    %2825 = vmatpush1.bf16.msra.mxu0 0
    %2826 = vmatprep.subr.bf16.mxu0 0
    %2827 = vmatpush1.bf16.msra.mxu0 0
    %2828 = vmatprep.subr.bf16.mxu0 0
    %2829 = vmatpush1.bf16.msra.mxu0 0
    %2830 = vmatprep.subr.bf16.mxu0 0
    %2831 = vmatpush1.bf16.msra.mxu0 0
    %2832 = vmatprep.subr.bf16.mxu0 0
    %2833 = vmatpush1.bf16.msra.mxu0 0
    %2834 = vmatprep.subr.bf16.mxu0 0
    %2835 = vmatpush1.bf16.msra.mxu0 0
    %2836 = vmatprep.mubr.bf16.mxu0 0
    %2837 = vmatmul.mubr.bf16.gmra.mrb[0].mxu0 %v2799
    %v2838 = vpop.f32.mrb[0].mxu0
    %v2839 = vadd.f32 0.0, %v2838
    %v2840 = vpop.f32.mrb[0].mxu0
    %v2841 = vpop.f32.mrb[0].mxu0
    %v2842 = vpop.f32.mrb[0].mxu0
    %2843 = vdwg.mxu0
    %2846 = vrot.lane.b32.xlu0 %v2350, 16
    %v2847 = vpop.permute.xlu0 %2846
    %2848 = vrot.lane.b32.xlu0 %v2399, 16
    %v2849 = vpop.permute.xlu0 %2848
    %2854 = vrot.lane.b32.xlu0 %v2571, 32
    %v2855 = vpop.permute.xlu0 %2854
    %2856 = vrot.lane.b32.xlu0 %v2619, 32
    %v2857 = vpop.permute.xlu0 %2856
    %2862 = vrot.lane.b32.xlu0 %v2791, 48
    %v2863 = vpop.permute.xlu0 %2862
    %2864 = vrot.lane.b32.xlu0 %v2839, 48
    %v2865 = vpop.permute.xlu0 %2864
    %v2868 = vsel %vm454, %v2131, %v2847
    %v2869 = vsel %vm454, %v2177, %v2849
    %v2870 = vsel %vm1358, %v2868, %v2855
    %v2871 = vsel %vm1358, %v2869, %v2857
    %v2872 = vsel %vm1361, %v2870, %v2863
    %v2873 = vsel %vm1361, %v2871, %v2865
    %v2874 = vpack.c.bf16 %v2873, %v2872
    %s2875 = scalar_lea.vmem %s9, 32
    %v2876 = vld [vmem:[%s2875] sm:$0xf]
    %v2877 = vld [vmem:[%s2875 + $0x4] sm:$0xf]
    %v2878 = vld [vmem:[%s2875 + $0x8] sm:$0xf]
    %v2879 = vld [vmem:[%s2875 + $0xc] sm:$0xf]
    %v2880 = vld [vmem:[%s2875 + $0x10] sm:$0xf]
    %v2881 = vld [vmem:[%s2875 + $0x14] sm:$0xf]
    %v2882 = vld [vmem:[%s2875 + $0x18] sm:$0xf]
    %v2883 = vld [vmem:[%s2875 + $0x1c] sm:$0xf]
    %v2892 = vunpack.c.l.b16 %v2876
    %v2893 = vunpack.c.l.b16 %v2877
    %v2894 = vunpack.c.l.b16 %v2878
    %v2895 = vunpack.c.l.b16 %v2879
    %v2896 = vunpack.c.l.b16 %v2880
    %v2897 = vunpack.c.l.b16 %v2881
    %v2898 = vunpack.c.l.b16 %v2882
    %v2899 = vunpack.c.l.b16 %v2883
    %v2900 = vpack.c.b16 %v2893, %v2892
    %v2901 = vpack.c.b16 %v2895, %v2894
    %v2902 = vpack.c.b16 %v2897, %v2896
    %v2903 = vpack.c.b16 %v2899, %v2898
    %v2909 = vsel %vm254, %v2874, 0
    %2911 = vmatprep.subr.bf16.mxu0 0
    %2912 = vmatpush1.bf16.msra.mxu0 %v2900
    %2913 = vmatprep.subr.bf16.mxu0 0
    %2914 = vmatpush1.bf16.msra.mxu0 %v2901
    %2915 = vmatprep.subr.bf16.mxu0 0
    %2916 = vmatpush1.bf16.msra.mxu0 %v2902
    %2917 = vmatprep.subr.bf16.mxu0 0
    %2918 = vmatpush1.bf16.msra.mxu0 %v2903
    %2919 = vmatprep.subr.bf16.mxu0 0
    %2920 = vmatpush1.bf16.msra.mxu0 0
    %2921 = vmatprep.subr.bf16.mxu0 0
    %2922 = vmatpush1.bf16.msra.mxu0 0
    %2923 = vmatprep.subr.bf16.mxu0 0
    %2924 = vmatpush1.bf16.msra.mxu0 0
    %2925 = vmatprep.subr.bf16.mxu0 0
    %2926 = vmatpush1.bf16.msra.mxu0 0
    %2927 = vmatprep.subr.bf16.mxu0 0
    %2928 = vmatpush1.bf16.msra.mxu0 0
    %2929 = vmatprep.subr.bf16.mxu0 0
    %2930 = vmatpush1.bf16.msra.mxu0 0
    %2931 = vmatprep.subr.bf16.mxu0 0
    %2932 = vmatpush1.bf16.msra.mxu0 0
    %2933 = vmatprep.subr.bf16.mxu0 0
    %2934 = vmatpush1.bf16.msra.mxu0 0
    %2935 = vmatprep.subr.bf16.mxu0 0
    %2936 = vmatpush1.bf16.msra.mxu0 0
    %2937 = vmatprep.subr.bf16.mxu0 0
    %2938 = vmatpush1.bf16.msra.mxu0 0
    %2939 = vmatprep.subr.bf16.mxu0 0
    %2940 = vmatpush1.bf16.msra.mxu0 0
    %2941 = vmatprep.subr.bf16.mxu0 0
    %2942 = vmatpush1.bf16.msra.mxu0 0
    %2943 = vmatprep.mubr.bf16.mxu0 0
    %2944 = vmatmul.mubr.bf16.gmra.mrb[0].mxu0 %v2909
    %v2945 = vpop.f32.mrb[0].mxu0
    %v2946 = vadd.f32 0.0, %v2945
    %v2947 = vpop.f32.mrb[0].mxu0
    %v2948 = vpop.f32.mrb[0].mxu0
    %v2949 = vadd.f32 0.0, %v2948
    %v2950 = vpop.f32.mrb[0].mxu0
    %2951 = vdwg.mxu0
    %v2952 = vadd.f32 %v1807, %v2946
    %v2953 = vadd.f32 %v1808, %v2949
    %s2954 = scalar_lea.vmem %s10, 1
    %v2955 = vld [vmem:[%s2954] sm:$0x1]
    %v2957 = vlaneseq
    %v2958 = vshrl.u32 %v2957, 7
    %v2959 = vsub.s32 0, %v2958
    %v2960 = vrot.slane %v2955, %v2959
    %v2962 = vadd.f32 %v2952, %v2960
    %v2963 = vadd.f32 %v2953, %v2960
    %s2964 = scalar_lea.vmem %s11, 1
    %v2965 = vld [vmem:[%s2964] sm:$0x1]
    %s2966 = scalar_lea.vmem %s12, 1
    %v2967 = vld [vmem:[%s2966] sm:$0x1]
    %v2968 = vsel %vm254, %v2962, 0.0
    %2969 = vadd.xlane.f32.xlu0 %v2968
    %v2970 = vpop.xlane.xlu0 %2969
    %v2971 = vsel %vm254, %v2963, 0.0
    %2972 = vadd.xlane.f32.xlu0 %v2971
    %v2973 = vpop.xlane.xlu0 %2972
    %v2974 = vmul.f32 %v2970, %v261
    %v2975 = vmul.f32 %v2973, %v261
    %v2976 = vsub.f32 %v2962, %v2974
    %v2977 = vsub.f32 %v2963, %v2975
    %v2978 = vmul.f32 %v2976, %v2976
    %v2979 = vmul.f32 %v2977, %v2977
    %v2980 = vsel %vm254, %v2978, 0.0
    %2981 = vadd.xlane.f32.xlu0 %v2980
    %v2982 = vpop.xlane.xlu0 %2981
    %v2983 = vsel %vm254, %v2979, 0.0
    %2984 = vadd.xlane.f32.xlu0 %v2983
    %v2985 = vpop.xlane.xlu0 %2984
    %v2986 = vmul.f32 %v2982, %v261
    %v2987 = vmul.f32 %v2985, %v261
    %v2988 = vadd.f32 %v2986, 1e-05
    %v2989 = vadd.f32 %v2987, 1e-05
    %v2990 = vrsqrt.pop %v2988
    %v2991 = vrsqrt.pop %v2989
    %v2992 = vmul.f32 %v2976, %v2990
    %v2993 = vmul.f32 %v2977, %v2991
    %v2995 = vlaneseq
    %v2996 = vshrl.u32 %v2995, 7
    %v2997 = vsub.s32 0, %v2996
    %v2998 = vrot.slane %v2965, %v2997
    %v3000 = vmul.f32 %v2992, %v2998
    %v3001 = vmul.f32 %v2993, %v2998
    %v3003 = vlaneseq
    %v3004 = vshrl.u32 %v3003, 7
    %v3005 = vsub.s32 0, %v3004
    %v3006 = vrot.slane %v2967, %v3005
    %v3008 = vadd.f32 %v3000, %v3006
    %v3009 = vadd.f32 %v3001, %v3006
    %v3010 = vpack.c.bf16 %v3009, %v3008
    %s3011 = scalar_lea.vmem %s13, 64
    %v3012 = vld [vmem:[%s3011] sm:$0xff]
    %v3013 = vld [vmem:[%s3011 + $0x8] sm:$0xff]
    %v3014 = vld [vmem:[%s3011 + $0x10] sm:$0xff]
    %v3015 = vld [vmem:[%s3011 + $0x18] sm:$0xff]
    %v3016 = vld [vmem:[%s3011 + $0x20] sm:$0xff]
    %v3017 = vld [vmem:[%s3011 + $0x28] sm:$0xff]
    %v3018 = vld [vmem:[%s3011 + $0x30] sm:$0xff]
    %v3019 = vld [vmem:[%s3011 + $0x38] sm:$0xff]
    %s3020 = scalar_lea.vmem %s14, 2
    %v3021 = vld [vmem:[%s3020] sm:$0x3]
    %v3023 = vlaneseq
    %v3024 = vshrl.u32 %v3023, 7
    %v3025 = vsub.s32 0, %v3024
    %v3026 = vrot.slane %v3021, %v3025
    %v3027 = vlaneseq
    %v3028 = vshrl.u32 %v3027, 7
    %v3029 = vsub.s32 1, %v3028
    %v3030 = vrot.slane %v3021, %v3029
    %v3041 = vunpack.c.l.b16 %v3012
    %v3042 = vunpack.c.h.b16 %v3012
    %v3043 = vunpack.c.l.b16 %v3013
    %v3044 = vunpack.c.h.b16 %v3013
    %v3045 = vunpack.c.l.b16 %v3014
    %v3046 = vunpack.c.h.b16 %v3014
    %v3047 = vunpack.c.l.b16 %v3015
    %v3048 = vunpack.c.h.b16 %v3015
    %v3049 = vunpack.c.l.b16 %v3016
    %v3050 = vunpack.c.h.b16 %v3016
    %v3051 = vunpack.c.l.b16 %v3017
    %v3052 = vunpack.c.h.b16 %v3017
    %v3053 = vunpack.c.l.b16 %v3018
    %v3054 = vunpack.c.h.b16 %v3018
    %v3055 = vunpack.c.l.b16 %v3019
    %v3056 = vunpack.c.h.b16 %v3019
    %v3057 = vpack.c.b16 %v3043, %v3041
    %v3058 = vpack.c.b16 %v3044, %v3042
    %v3059 = vpack.c.b16 %v3047, %v3045
    %v3060 = vpack.c.b16 %v3048, %v3046
    %v3061 = vpack.c.b16 %v3051, %v3049
    %v3062 = vpack.c.b16 %v3052, %v3050
    %v3063 = vpack.c.b16 %v3055, %v3053
    %v3064 = vpack.c.b16 %v3056, %v3054
    %v3074 = vsel %vm254, %v3010, 0
    %3076 = vmatprep.subr.bf16.mxu0 %v3058
    %3077 = vmatpush1.bf16.msra.mxu0 %v3057
    %3078 = vmatprep.subr.bf16.mxu0 %v3060
    %3079 = vmatpush1.bf16.msra.mxu0 %v3059
    %3080 = vmatprep.subr.bf16.mxu0 %v3062
    %3081 = vmatpush1.bf16.msra.mxu0 %v3061
    %3082 = vmatprep.subr.bf16.mxu0 %v3064
    %3083 = vmatpush1.bf16.msra.mxu0 %v3063
    %3084 = vmatprep.subr.bf16.mxu0 0
    %3085 = vmatpush1.bf16.msra.mxu0 0
    %3086 = vmatprep.subr.bf16.mxu0 0
    %3087 = vmatpush1.bf16.msra.mxu0 0
    %3088 = vmatprep.subr.bf16.mxu0 0
    %3089 = vmatpush1.bf16.msra.mxu0 0
    %3090 = vmatprep.subr.bf16.mxu0 0
    %3091 = vmatpush1.bf16.msra.mxu0 0
    %3092 = vmatprep.subr.bf16.mxu0 0
    %3093 = vmatpush1.bf16.msra.mxu0 0
    %3094 = vmatprep.subr.bf16.mxu0 0
    %3095 = vmatpush1.bf16.msra.mxu0 0
    %3096 = vmatprep.subr.bf16.mxu0 0
    %3097 = vmatpush1.bf16.msra.mxu0 0
    %3098 = vmatprep.subr.bf16.mxu0 0
    %3099 = vmatpush1.bf16.msra.mxu0 0
    %3100 = vmatprep.subr.bf16.mxu0 0
    %3101 = vmatpush1.bf16.msra.mxu0 0
    %3102 = vmatprep.subr.bf16.mxu0 0
    %3103 = vmatpush1.bf16.msra.mxu0 0
    %3104 = vmatprep.subr.bf16.mxu0 0
    %3105 = vmatpush1.bf16.msra.mxu0 0
    %3106 = vmatprep.subr.bf16.mxu0 0
    %3107 = vmatpush1.bf16.msra.mxu0 0
    %3108 = vmatprep.mubr.bf16.mxu0 0
    %3109 = vmatmul.mubr.bf16.gmra.mrb[0].mxu0 %v3074
    %v3110 = vpop.f32.mrb[0].mxu0
    %v3111 = vadd.f32 %v3026, %v3110
    %v3112 = vpop.f32.mrb[0].mxu0
    %v3113 = vadd.f32 %v3030, %v3112
    %v3114 = vpop.f32.mrb[0].mxu0
    %v3115 = vadd.f32 %v3026, %v3114
    %v3116 = vpop.f32.mrb[0].mxu0
    %v3117 = vadd.f32 %v3030, %v3116
    %3118 = vdwg.mxu0
    %v3119 = vmul.f32 %v3111, -1.702
    %v3120 = vmul.f32 %v3113, -1.702
    %v3121 = vmul.f32 %v3115, -1.702
    %v3122 = vmul.f32 %v3117, -1.702
    %v3123 = vmul.f32 %v3119, 1.442695
    %v3124 = vpow.pop %v3123
    %v3125 = vmul.f32 %v3120, 1.442695
    %v3126 = vpow.pop %v3125
    %v3127 = vmul.f32 %v3121, 1.442695
    %v3128 = vpow.pop %v3127
    %v3129 = vmul.f32 %v3122, 1.442695
    %v3130 = vpow.pop %v3129
    %v3131 = vadd.f32 %v3124, 1.0
    %v3132 = vadd.f32 %v3126, 1.0
    %v3133 = vadd.f32 %v3128, 1.0
    %v3134 = vadd.f32 %v3130, 1.0
    %v3135 = vrcp.pop %v3131
    %v3136 = vmul.f32 %v3111, %v3135
    %v3137 = vrcp.pop %v3132
    %v3138 = vmul.f32 %v3113, %v3137
    %v3139 = vrcp.pop %v3133
    %v3140 = vmul.f32 %v3115, %v3139
    %v3141 = vrcp.pop %v3134
    %v3142 = vmul.f32 %v3117, %v3141
    %v3143 = vpack.c.bf16 %v3140, %v3136
    %v3144 = vpack.c.bf16 %v3142, %v3138
    %s3145 = scalar_lea.vmem %s15, 128
    %v3146 = vld [vmem:[%s3145] sm:$0xf]
    %v3147 = vld [vmem:[%s3145 + $0x4] sm:$0xf]
    %v3148 = vld [vmem:[%s3145 + $0x8] sm:$0xf]
    %v3149 = vld [vmem:[%s3145 + $0xc] sm:$0xf]
    %v3150 = vld [vmem:[%s3145 + $0x10] sm:$0xf]
    %v3151 = vld [vmem:[%s3145 + $0x14] sm:$0xf]
    %v3152 = vld [vmem:[%s3145 + $0x18] sm:$0xf]
    %v3153 = vld [vmem:[%s3145 + $0x1c] sm:$0xf]
    %v3154 = vld [vmem:[%s3145 + $0x20] sm:$0xf]
    %v3155 = vld [vmem:[%s3145 + $0x24] sm:$0xf]
    %v3156 = vld [vmem:[%s3145 + $0x28] sm:$0xf]
    %v3157 = vld [vmem:[%s3145 + $0x2c] sm:$0xf]
    %v3158 = vld [vmem:[%s3145 + $0x30] sm:$0xf]
    %v3159 = vld [vmem:[%s3145 + $0x34] sm:$0xf]
    %v3160 = vld [vmem:[%s3145 + $0x38] sm:$0xf]
    %v3161 = vld [vmem:[%s3145 + $0x3c] sm:$0xf]
    %v3162 = vld [vmem:[%s3145 + $0x40] sm:$0xf]
    %v3163 = vld [vmem:[%s3145 + $0x44] sm:$0xf]
    %v3164 = vld [vmem:[%s3145 + $0x48] sm:$0xf]
    %v3165 = vld [vmem:[%s3145 + $0x4c] sm:$0xf]
    %v3166 = vld [vmem:[%s3145 + $0x50] sm:$0xf]
    %v3167 = vld [vmem:[%s3145 + $0x54] sm:$0xf]
    %v3168 = vld [vmem:[%s3145 + $0x58] sm:$0xf]
    %v3169 = vld [vmem:[%s3145 + $0x5c] sm:$0xf]
    %v3170 = vld [vmem:[%s3145 + $0x60] sm:$0xf]
    %v3171 = vld [vmem:[%s3145 + $0x64] sm:$0xf]
    %v3172 = vld [vmem:[%s3145 + $0x68] sm:$0xf]
    %v3173 = vld [vmem:[%s3145 + $0x6c] sm:$0xf]
    %v3174 = vld [vmem:[%s3145 + $0x70] sm:$0xf]
    %v3175 = vld [vmem:[%s3145 + $0x74] sm:$0xf]
    %v3176 = vld [vmem:[%s3145 + $0x78] sm:$0xf]
    %v3177 = vld [vmem:[%s3145 + $0x7c] sm:$0xf]
    %v3210 = vunpack.c.l.b16 %v3146
    %v3211 = vunpack.c.l.b16 %v3147
    %v3212 = vunpack.c.l.b16 %v3148
    %v3213 = vunpack.c.l.b16 %v3149
    %v3214 = vunpack.c.l.b16 %v3150
    %v3215 = vunpack.c.l.b16 %v3151
    %v3216 = vunpack.c.l.b16 %v3152
    %v3217 = vunpack.c.l.b16 %v3153
    %v3218 = vunpack.c.l.b16 %v3154
    %v3219 = vunpack.c.l.b16 %v3155
    %v3220 = vunpack.c.l.b16 %v3156
    %v3221 = vunpack.c.l.b16 %v3157
    %v3222 = vunpack.c.l.b16 %v3158
    %v3223 = vunpack.c.l.b16 %v3159
    %v3224 = vunpack.c.l.b16 %v3160
    %v3225 = vunpack.c.l.b16 %v3161
    %v3226 = vunpack.c.l.b16 %v3162
    %v3227 = vunpack.c.l.b16 %v3163
    %v3228 = vunpack.c.l.b16 %v3164
    %v3229 = vunpack.c.l.b16 %v3165
    %v3230 = vunpack.c.l.b16 %v3166
    %v3231 = vunpack.c.l.b16 %v3167
    %v3232 = vunpack.c.l.b16 %v3168
    %v3233 = vunpack.c.l.b16 %v3169
    %v3234 = vunpack.c.l.b16 %v3170
    %v3235 = vunpack.c.l.b16 %v3171
    %v3236 = vunpack.c.l.b16 %v3172
    %v3237 = vunpack.c.l.b16 %v3173
    %v3238 = vunpack.c.l.b16 %v3174
    %v3239 = vunpack.c.l.b16 %v3175
    %v3240 = vunpack.c.l.b16 %v3176
    %v3241 = vunpack.c.l.b16 %v3177
    %v3242 = vpack.c.b16 %v3211, %v3210
    %v3243 = vpack.c.b16 %v3213, %v3212
    %v3244 = vpack.c.b16 %v3215, %v3214
    %v3245 = vpack.c.b16 %v3217, %v3216
    %v3246 = vpack.c.b16 %v3219, %v3218
    %v3247 = vpack.c.b16 %v3221, %v3220
    %v3248 = vpack.c.b16 %v3223, %v3222
    %v3249 = vpack.c.b16 %v3225, %v3224
    %v3250 = vpack.c.b16 %v3227, %v3226
    %v3251 = vpack.c.b16 %v3229, %v3228
    %v3252 = vpack.c.b16 %v3231, %v3230
    %v3253 = vpack.c.b16 %v3233, %v3232
    %v3254 = vpack.c.b16 %v3235, %v3234
    %v3255 = vpack.c.b16 %v3237, %v3236
    %v3256 = vpack.c.b16 %v3239, %v3238
    %v3257 = vpack.c.b16 %v3241, %v3240
    %3274 = vmatprep.subr.bf16.mxu0 0
    %3275 = vmatpush1.bf16.msra.mxu0 %v3242
    %3276 = vmatprep.subr.bf16.mxu0 0
    %3277 = vmatpush1.bf16.msra.mxu0 %v3243
    %3278 = vmatprep.subr.bf16.mxu0 0
    %3279 = vmatpush1.bf16.msra.mxu0 %v3244
    %3280 = vmatprep.subr.bf16.mxu0 0
    %3281 = vmatpush1.bf16.msra.mxu0 %v3245
    %3282 = vmatprep.subr.bf16.mxu0 0
    %3283 = vmatpush1.bf16.msra.mxu0 %v3246
    %3284 = vmatprep.subr.bf16.mxu0 0
    %3285 = vmatpush1.bf16.msra.mxu0 %v3247
    %3286 = vmatprep.subr.bf16.mxu0 0
    %3287 = vmatpush1.bf16.msra.mxu0 %v3248
    %3288 = vmatprep.subr.bf16.mxu0 0
    %3289 = vmatpush1.bf16.msra.mxu0 %v3249
    %3290 = vmatprep.subr.bf16.mxu0 0
    %3291 = vmatpush1.bf16.msra.mxu0 %v3250
    %3292 = vmatprep.subr.bf16.mxu0 0
    %3293 = vmatpush1.bf16.msra.mxu0 %v3251
    %3294 = vmatprep.subr.bf16.mxu0 0
    %3295 = vmatpush1.bf16.msra.mxu0 %v3252
    %3296 = vmatprep.subr.bf16.mxu0 0
    %3297 = vmatpush1.bf16.msra.mxu0 %v3253
    %3298 = vmatprep.subr.bf16.mxu0 0
    %3299 = vmatpush1.bf16.msra.mxu0 %v3254
    %3300 = vmatprep.subr.bf16.mxu0 0
    %3301 = vmatpush1.bf16.msra.mxu0 %v3255
    %3302 = vmatprep.subr.bf16.mxu0 0
    %3303 = vmatpush1.bf16.msra.mxu0 %v3256
    %3304 = vmatprep.subr.bf16.mxu0 0
    %3305 = vmatpush1.bf16.msra.mxu0 %v3257
    %3306 = vmatprep.mubr.bf16.mxu0 %v3144
    %3307 = vmatmul.mubr.bf16.gmra.mrb[0].mxu0 %v3143
    %v3308 = vpop.f32.mrb[0].mxu0
    %v3309 = vadd.f32 0.0, %v3308
    %v3310 = vpop.f32.mrb[0].mxu0
    %v3311 = vpop.f32.mrb[0].mxu0
    %v3312 = vadd.f32 0.0, %v3311
    %v3313 = vpop.f32.mrb[0].mxu0
    %3314 = vdwg.mxu0
    %v3315 = vadd.f32 %v2962, %v3309
    %v3316 = vadd.f32 %v2963, %v3312
    %s3317 = scalar_lea.vmem %s16, 1
    %v3318 = vld [vmem:[%s3317] sm:$0x1]
    %v3320 = vlaneseq
    %v3321 = vshrl.u32 %v3320, 7
    %v3322 = vsub.s32 0, %v3321
    %v3323 = vrot.slane %v3318, %v3322
    %v3325 = vadd.f32 %v3315, %v3323
    %v3326 = vadd.f32 %v3316, %v3323
    %v3327 = vld [vmem:[%s17] sm:$0x1]
    %v3328 = vld [vmem:[%s18] sm:$0x1]
    %v3331 = vrot.slane %v3326, 7
    %vm3332 = vcmask 1041409
    %v3333 = vsel %vm3332, %v3331, %v3325
    %vm3335 = vcmask 517120
    %v3336 = vsel %vm3335, %v3333, 0.0
    %3337 = vadd.xlane.f32.xlu0 %v3336
    %v3338 = vpop.xlane.xlu0 %3337
    %v3339 = vmul.f32 %v3338, %v261
    %v3341 = vrot.slane %v3339, 1
    %v3344 = vsub.f32 %v3325, %v3339
    %v3345 = vsub.f32 %v3326, %v3341
    %v3346 = vmul.f32 %v3344, %v3344
    %v3347 = vmul.f32 %v3345, %v3345
    %v3350 = vrot.slane %v3347, 7
    %v3351 = vsel %vm3332, %v3350, %v3346
    %v3353 = vsel %vm3335, %v3351, 0.0
    %3354 = vadd.xlane.f32.xlu0 %v3353
    %v3355 = vpop.xlane.xlu0 %3354
    %v3356 = vmul.f32 %v3355, %v261
    %v3357 = vadd.f32 %v3356, 1e-05
    %v3358 = vrsqrt.pop %v3357
    %v3360 = vrot.slane %v3358, 1
    %v3363 = vmul.f32 %v3344, %v3358
    %v3364 = vmul.f32 %v3345, %v3360
    %v3366 = vlaneseq
    %v3367 = vshrl.u32 %v3366, 7
    %v3368 = vsub.s32 0, %v3367
    %v3369 = vrot.slane %v3327, %v3368
    %v3371 = vmul.f32 %v3363, %v3369
    %v3372 = vmul.f32 %v3364, %v3369
    %v3374 = vlaneseq
    %v3375 = vshrl.u32 %v3374, 7
    %v3376 = vsub.s32 0, %v3375
    %v3377 = vrot.slane %v3328, %v3376
    %v3379 = vadd.f32 %v3371, %v3377
    %v3380 = vadd.f32 %v3372, %v3377
    %v3381 = vpack.c.bf16 %v3379, %v3379
    %v3382 = vpack.c.bf16 %v3380, %v3380
    %v3383 = vld [vmem:[%s19] sm:$0xff]
    %v3384 = vld [vmem:[%s19 + $0x8] sm:$0xff]
    %v3385 = vld [vmem:[%s19 + $0x10] sm:$0xff]
    %v3386 = vld [vmem:[%s19 + $0x18] sm:$0xff]
    %v3387 = vld [vmem:[%s19 + $0x20] sm:$0xff]
    %v3388 = vld [vmem:[%s19 + $0x28] sm:$0xff]
    %v3389 = vld [vmem:[%s19 + $0x30] sm:$0xff]
    %v3390 = vld [vmem:[%s19 + $0x38] sm:$0xff]
    %v3391 = vld [vmem:[%s19 + $0x40] sm:$0xff]
    %v3392 = vld [vmem:[%s19 + $0x48] sm:$0xff]
    %v3393 = vld [vmem:[%s19 + $0x50] sm:$0xff]
    %v3394 = vld [vmem:[%s19 + $0x58] sm:$0xff]
    %v3395 = vld [vmem:[%s19 + $0x60] sm:$0xff]
    %v3396 = vld [vmem:[%s19 + $0x68] sm:$0xff]
    %v3397 = vld [vmem:[%s19 + $0x70] sm:$0xff]
    %v3398 = vld [vmem:[%s19 + $0x78] sm:$0xff]
    %v3399 = vld [vmem:[%s20] sm:$0xf]
    %v3401 = vlaneseq
    %v3402 = vshrl.u32 %v3401, 7
    %v3403 = vsub.s32 0, %v3402
    %v3404 = vrot.slane %v3399, %v3403
    %v3405 = vlaneseq
    %v3406 = vshrl.u32 %v3405, 7
    %v3407 = vsub.s32 1, %v3406
    %v3408 = vrot.slane %v3399, %v3407
    %v3409 = vlaneseq
    %v3410 = vshrl.u32 %v3409, 7
    %v3411 = vsub.s32 2, %v3410
    %v3412 = vrot.slane %v3399, %v3411
    %v3413 = vlaneseq
    %v3414 = vshrl.u32 %v3413, 7
    %v3415 = vsub.s32 3, %v3414
    %v3416 = vrot.slane %v3399, %v3415
    %v3423 = vunpack.c.l.b16 %v3381
    %v3424 = vunpack.c.l.b16 %v3382
    %v3425 = vrot.slane %v3424, 7
    %v3426 = vsel %vm3332, %v3425, %v3423
    %v3427 = vpack.c.b16 %v3426, %v3426
    %v3444 = vunpack.c.l.b16 %v3383
    %v3445 = vunpack.c.h.b16 %v3383
    %v3446 = vunpack.c.l.b16 %v3384
    %v3447 = vunpack.c.h.b16 %v3384
    %v3448 = vunpack.c.l.b16 %v3385
    %v3449 = vunpack.c.h.b16 %v3385
    %v3450 = vunpack.c.l.b16 %v3386
    %v3451 = vunpack.c.h.b16 %v3386
    %v3452 = vunpack.c.l.b16 %v3387
    %v3453 = vunpack.c.h.b16 %v3387
    %v3454 = vunpack.c.l.b16 %v3388
    %v3455 = vunpack.c.h.b16 %v3388
    %v3456 = vunpack.c.l.b16 %v3389
    %v3457 = vunpack.c.h.b16 %v3389
    %v3458 = vunpack.c.l.b16 %v3390
    %v3459 = vunpack.c.h.b16 %v3390
    %v3460 = vunpack.c.l.b16 %v3391
    %v3461 = vunpack.c.h.b16 %v3391
    %v3462 = vunpack.c.l.b16 %v3392
    %v3463 = vunpack.c.h.b16 %v3392
    %v3464 = vunpack.c.l.b16 %v3393
    %v3465 = vunpack.c.h.b16 %v3393
    %v3466 = vunpack.c.l.b16 %v3394
    %v3467 = vunpack.c.h.b16 %v3394
    %v3468 = vunpack.c.l.b16 %v3395
    %v3469 = vunpack.c.h.b16 %v3395
    %v3470 = vunpack.c.l.b16 %v3396
    %v3471 = vunpack.c.h.b16 %v3396
    %v3472 = vunpack.c.l.b16 %v3397
    %v3473 = vunpack.c.h.b16 %v3397
    %v3474 = vunpack.c.l.b16 %v3398
    %v3475 = vunpack.c.h.b16 %v3398
    %v3476 = vpack.c.b16 %v3448, %v3444
    %v3477 = vpack.c.b16 %v3449, %v3445
    %v3478 = vpack.c.b16 %v3450, %v3446
    %v3479 = vpack.c.b16 %v3451, %v3447
    %v3480 = vpack.c.b16 %v3456, %v3452
    %v3481 = vpack.c.b16 %v3457, %v3453
    %v3482 = vpack.c.b16 %v3458, %v3454
    %v3483 = vpack.c.b16 %v3459, %v3455
    %v3484 = vpack.c.b16 %v3464, %v3460
    %v3485 = vpack.c.b16 %v3465, %v3461
    %v3486 = vpack.c.b16 %v3466, %v3462
    %v3487 = vpack.c.b16 %v3467, %v3463
    %v3488 = vpack.c.b16 %v3472, %v3468
    %v3489 = vpack.c.b16 %v3473, %v3469
    %v3490 = vpack.c.b16 %v3474, %v3470
    %v3491 = vpack.c.b16 %v3475, %v3471
    %v3509 = vsel %vm254, %v3427, 0
    %3511 = vmatprep.subr.bf16.mxu0 %v3477
    %3512 = vmatpush1.bf16.msra.mxu0 %v3476
    %3513 = vmatprep.subr.bf16.mxu0 %v3481
    %3514 = vmatpush1.bf16.msra.mxu0 %v3480
    %3515 = vmatprep.subr.bf16.mxu0 %v3485
    %3516 = vmatpush1.bf16.msra.mxu0 %v3484
    %3517 = vmatprep.subr.bf16.mxu0 %v3489
    %3518 = vmatpush1.bf16.msra.mxu0 %v3488
    %3519 = vmatprep.subr.bf16.mxu0 0
    %3520 = vmatpush1.bf16.msra.mxu0 0
    %3521 = vmatprep.subr.bf16.mxu0 0
    %3522 = vmatpush1.bf16.msra.mxu0 0
    %3523 = vmatprep.subr.bf16.mxu0 0
    %3524 = vmatpush1.bf16.msra.mxu0 0
    %3525 = vmatprep.subr.bf16.mxu0 0
    %3526 = vmatpush1.bf16.msra.mxu0 0
    %3527 = vmatprep.subr.bf16.mxu0 0
    %3528 = vmatpush1.bf16.msra.mxu0 0
    %3529 = vmatprep.subr.bf16.mxu0 0
    %3530 = vmatpush1.bf16.msra.mxu0 0
    %3531 = vmatprep.subr.bf16.mxu0 0
    %3532 = vmatpush1.bf16.msra.mxu0 0
    %3533 = vmatprep.subr.bf16.mxu0 0
    %3534 = vmatpush1.bf16.msra.mxu0 0
    %3535 = vmatprep.subr.bf16.mxu0 0
    %3536 = vmatpush1.bf16.msra.mxu0 0
    %3537 = vmatprep.subr.bf16.mxu0 0
    %3538 = vmatpush1.bf16.msra.mxu0 0
    %3539 = vmatprep.subr.bf16.mxu0 0
    %3540 = vmatpush1.bf16.msra.mxu0 0
    %3541 = vmatprep.subr.bf16.mxu0 0
    %3542 = vmatpush1.bf16.msra.mxu0 0
    %3543 = vmatprep.mubr.bf16.mxu0 0
    %3544 = vmatmul.mubr.bf16.gmra.mrb[0].mxu0 %v3509
    %v3545 = vpop.f32.mrb[0].mxu0
    %v3546 = vadd.f32 %v3404, %v3545
    %v3547 = vpop.f32.mrb[0].mxu0
    %v3548 = vadd.f32 %v3408, %v3547
    %v3549 = vpop.f32.mrb[0].mxu0
    %v3550 = vpop.f32.mrb[0].mxu0
    %3551 = vdwg.mxu0
    %3552 = vmatprep.subr.bf16.mxu0 %v3479
    %3553 = vmatpush1.bf16.msra.mxu0 %v3478
    %3554 = vmatprep.subr.bf16.mxu0 %v3483
    %3555 = vmatpush1.bf16.msra.mxu0 %v3482
    %3556 = vmatprep.subr.bf16.mxu0 %v3487
    %3557 = vmatpush1.bf16.msra.mxu0 %v3486
    %3558 = vmatprep.subr.bf16.mxu0 %v3491
    %3559 = vmatpush1.bf16.msra.mxu0 %v3490
    %3560 = vmatprep.subr.bf16.mxu0 0
    %3561 = vmatpush1.bf16.msra.mxu0 0
    %3562 = vmatprep.subr.bf16.mxu0 0
    %3563 = vmatpush1.bf16.msra.mxu0 0
    %3564 = vmatprep.subr.bf16.mxu0 0
    %3565 = vmatpush1.bf16.msra.mxu0 0
    %3566 = vmatprep.subr.bf16.mxu0 0
    %3567 = vmatpush1.bf16.msra.mxu0 0
    %3568 = vmatprep.subr.bf16.mxu0 0
    %3569 = vmatpush1.bf16.msra.mxu0 0
    %3570 = vmatprep.subr.bf16.mxu0 0
    %3571 = vmatpush1.bf16.msra.mxu0 0
    %3572 = vmatprep.subr.bf16.mxu0 0
    %3573 = vmatpush1.bf16.msra.mxu0 0
    %3574 = vmatprep.subr.bf16.mxu0 0
    %3575 = vmatpush1.bf16.msra.mxu0 0
    %3576 = vmatprep.subr.bf16.mxu0 0
    %3577 = vmatpush1.bf16.msra.mxu0 0
    %3578 = vmatprep.subr.bf16.mxu0 0
    %3579 = vmatpush1.bf16.msra.mxu0 0
    %3580 = vmatprep.subr.bf16.mxu0 0
    %3581 = vmatpush1.bf16.msra.mxu0 0
    %3582 = vmatprep.subr.bf16.mxu0 0
    %3583 = vmatpush1.bf16.msra.mxu0 0
    %3584 = vmatprep.mubr.bf16.mxu0 0
    %3585 = vmatmul.mubr.bf16.gmra.mrb[0].mxu0 %v3509
    %v3586 = vpop.f32.mrb[0].mxu0
    %v3587 = vadd.f32 %v3412, %v3586
    %v3588 = vpop.f32.mrb[0].mxu0
    %v3589 = vadd.f32 %v3416, %v3588
    %v3590 = vpop.f32.mrb[0].mxu0
    %v3591 = vpop.f32.mrb[0].mxu0
    %3592 = vdwg.mxu0
    %v3597 = vcombine.low %v3546, %v3548
    %v3598 = vcombine.low %v3587, %v3589
    %v3600 = vunpack.c.l.s4 1983009808
    %v3601 = vunpack.c.0.s8 %v3600
    %v3602 = vlaneseq
    %v3603 = vshrl.u32 %v3602, 7
    %v3604 = vsub.s32 %v3601, %v3603
    %v3605 = vrot.slane %v3597, %v3604
    %v3607 = vunpack.c.l.s4 1983009808
    %v3608 = vunpack.c.0.s8 %v3607
    %v3609 = vlaneseq
    %v3610 = vshrl.u32 %v3609, 7
    %v3611 = vsub.s32 %v3608, %v3610
    %v3612 = vrot.slane %v3598, %v3611
    %v3613 = vcombine.low %v3605, %v3612
    %3615 = vst [vmem:[#allocation2] sm:$0xff] %v3613
    // Predicated region
    $region86: #{rgb_encoder_forward.1} parent=1 // pred_check
      _
    $region87: #{rgb_encoder_forward.1} parent=1 // pred_check_branch
      %3617 = sbr.rel (0) target = $region89
    $region88: #{rgb_encoder_forward.1} parent=1 // pred_region
      %s3619 = ssub.s32 128, 128
      %3620 = vsyncadd [#allocation3], %s3619
      %s3622 = sshll.u32 [#allocation2], 4
      %s3623 = int_to_ptr.vmem [resolvable:$true] %s3622
      %3625 = dma.vmem_to_hbm [thread:$0]  %s3623, 128, %s21, [#allocation3]
    $region89: #{rgb_encoder_forward.1} parent=1 // pred_fallthru
      _
    // Predicated region
    $region90: #{rgb_encoder_forward.1} parent=1 // pred_check
      _
    $region91: #{rgb_encoder_forward.1} parent=1 // pred_check_branch
      %3627 = sbr.rel (0) target = $region93
    $region92: #{rgb_encoder_forward.1} parent=1 // pred_region
      %3628 = dma.done [#allocation3], 128
    $region93: #{rgb_encoder_forward.1} parent=1 // pred_fallthru
      _
    %3629 = vsyncpa [#allocation3], 1

</llo_original>
